<compile_context>
chip_gen: v7x
topology: tpu7x:2x2x1
jax: 0.10.0
libtpu: 0.0.40
codegen_flags: <defaults>
</compile_context>

<pallas_src>
import jax
import jax.numpy as jnp
import numpy as np
from jax import lax
from jax.experimental import pallas as pl
from jax.experimental.pallas import tpu as pltpu


# ----------------------------------------------------------------------------
# Fused LSTM-stack + gather + FC kernel (single invocation, no grid).
# ----------------------------------------------------------------------------
def _make_fused_kernel(layer_num, T, B, H):
    G = 4 * H

    def kernel(*refs):
        # ---- unpack refs (inputs, outputs, scratch — in pallas_call order) --
        xproj0_ref, len_ref, sc_ref = refs[0:3]
        pos = 3
        w_hh = [None] * layer_num
        w_ih = [None] * layer_num
        b = [None] * layer_num
        w_hh[0] = refs[pos]
        pos += 1
        for l in range(1, layer_num):
            w_ih[l] = refs[pos]
            w_hh[l] = refs[pos + 1]
            b[l] = refs[pos + 2]
            pos += 3
        w_fc_h_ref, w_fc_sc_ref, b_fc_ref = refs[pos:pos + 3]
        pos += 3
        rep_ref, prob_ref = refs[pos:pos + 2]
        pos += 2
        proj_scr = refs[pos]                             # (T, B, 4H) VMEM

        # Lane mask selecting the g-gate block (lanes [2H, 3H)).
        lane = lax.broadcasted_iota(jnp.int32, (B, G), 1)
        g_mask = (lane >= 2 * H) & (lane < 3 * H)

        last_t = len_ref[...] - 1                        # (B, 1) int32

        def gate_act(gates):
            # One full-vreg tanh EUP push for all four gates:
            #   sigmoid(x) = 0.5 * (tanh(x / 2) + 1)
            pre = jnp.where(g_mask, gates, 0.5 * gates)
            th = jnp.tanh(pre)
            return jnp.where(g_mask, th, 0.5 * th + 0.5)

        def lstm_step(gates_in, h, c, w_hh_val):
            # gates_in already holds x_t @ W_ih.T + b (precomputed).
            gates = gates_in + jnp.dot(h, w_hh_val,
                                       preferred_element_type=jnp.float32)
            act = gate_act(gates)
            i_g = act[:, 0 * H:1 * H]
            f_g = act[:, 1 * H:2 * H]
            g_g = act[:, 2 * H:3 * H]
            o_g = act[:, 3 * H:4 * H]
            c_new = f_g * c + i_g * g_g
            h_new = o_g * jnp.tanh(c_new)
            return h_new, c_new

        rep = None
        for layer in range(layer_num):
            w_hh_val = w_hh[layer][...]
            is_last = layer == layer_num - 1
            proj_in = xproj0_ref if layer == 0 else proj_scr

            h0 = jnp.zeros((B, H), jnp.float32)
            c0 = jnp.zeros((B, H), jnp.float32)

            if is_last:
                # Last layer: carry h/c/rep in vregs; gather t == length-1
                # in-kernel; no (T,B,H) sequence ever written anywhere.
                def body_last(t, carry, _p=proj_in, _w=w_hh_val):
                    h, c, r = carry
                    h_new, c_new = lstm_step(_p[t], h, c, _w)
                    r = jnp.where(t == last_t, h_new, r)
                    return h_new, c_new, r

                _, _, rep = lax.fori_loop(
                    0, T, body_last,
                    (h0, c0, jnp.zeros((B, H), jnp.float32)),
                    unroll=True)
            else:
                # Intermediate layer: project h_t straight into the NEXT
                # layer's gate pre-activations (off the serial chain), written
                # into VMEM scratch.  Reading proj_scr[t] happens before the
                # write in the same iteration, so in-place reuse is safe.
                w_ih_next = w_ih[layer + 1][...]
                b_next = b[layer + 1][...]

                def body(t, carry, _p=proj_in, _w=w_hh_val,
                         _wn=w_ih_next, _bn=b_next):
                    h, c = carry
                    h_new, c_new = lstm_step(_p[t], h, c, _w)
                    proj_scr[t] = (
                        jnp.dot(h_new, _wn,
                                preferred_element_type=jnp.float32) + _bn)
                    return h_new, c_new

                lax.fori_loop(0, T, body, (h0, c0), unroll=True)

        rep_ref[...] = rep.astype(rep_ref.dtype)

        # Fused FC epilogue: fc(concat(rep, shortcut)) with the weight split
        # into hidden / shortcut halves (avoids an in-kernel concat).
        prob = (jnp.dot(rep, w_fc_h_ref[...], preferred_element_type=jnp.float32)
                + jnp.dot(sc_ref[...], w_fc_sc_ref[...],
                          preferred_element_type=jnp.float32)
                + b_fc_ref[...])
        prob_ref[...] = prob.astype(prob_ref.dtype)
        # Dropout(0.8): identity in eval mode (see TODO at top of file).

    return kernel


def _full_spec(a):
    zeros = (0,) * a.ndim
    return pl.BlockSpec(a.shape, lambda: zeros)


def shortcut_lstm_forward(params, x, x_length, shortcut_var):
    """x: (T, B, D) f32 (zero-padded), x_length: (B,) int32, shortcut: (B, 26)."""
    T, B, D = x.shape
    layer_num = len(params["lstm"])
    H = params["lstm"][0]["w_hh_t"].shape[0]
    G = 4 * H

    l0 = params["lstm"][0]
    # Hoisted layer-0 input projection: one (T*B, D) x (D, 4H) matmul in XLA.
    xproj0 = jnp.einsum("tbd,dg->tbg", x, l0["w_ih_t"]) + l0["b"]

    lengths = x_length.astype(jnp.int32).reshape(B, 1)

    w_fc = params["fc"]["w_t"]            # (H + 26, 2)
    w_fc_h = w_fc[:H]                     # (H, 2)
    w_fc_sc = w_fc[H:]                    # (26, 2)
    b_fc = params["fc"]["b"]              # (1, 2)

    inputs = [xproj0, lengths, shortcut_var, l0["w_hh_t"]]
    for lp in params["lstm"][1:]:
        inputs += [lp["w_ih_t"], lp["w_hh_t"], lp["b"]]
    inputs += [w_fc_h, w_fc_sc, b_fc]

    kernel = _make_fused_kernel(layer_num, T, B, H)

    rep, prob = pl.pallas_call(
        kernel,
        out_shape=(jax.ShapeDtypeStruct((B, H), jnp.float32),
                   jax.ShapeDtypeStruct((B, 2), jnp.float32)),
        in_specs=[_full_spec(a) for a in inputs],
        out_specs=(pl.BlockSpec((B, H), lambda: (0, 0)),
                   pl.BlockSpec((B, 2), lambda: (0, 0))),
        scratch_shapes=[
            pltpu.VMEM((T, B, G), jnp.float32),   # next-layer gate pre-acts
        ],
    )(*inputs)
    return rep, prob


shortcut_lstm_classifier_forward = jax.jit(shortcut_lstm_forward)


# ----------------------------------------------------------------------------
# Parameters (mirrors PyTorch LSTM/Linear shapes) and a pure-JAX reference.
# ----------------------------------------------------------------------------
def init_params(key, input_size, hidden_size, layer_num):
    params = {"lstm": [], "fc": {}}
    k = 1.0 / jnp.sqrt(hidden_size)
    for layer in range(layer_num):
        d_in = input_size if layer == 0 else hidden_size
        key, k1, k2, k3, k4 = jax.random.split(key, 5)
        w_ih = jax.random.uniform(k1, (4 * hidden_size, d_in), jnp.float32, -k, k)
        w_hh = jax.random.uniform(k2, (4 * hidden_size, hidden_size), jnp.float32, -k, k)
        b_ih = jax.random.uniform(k3, (4 * hidden_size,), jnp.float32, -k, k)
        b_hh = jax.random.uniform(k4, (4 * hidden_size,), jnp.float32, -k, k)
        params["lstm"].append(
            {"w_ih_t": w_ih.T, "w_hh_t": w_hh.T,
             "b": (b_ih + b_hh).reshape(1, -1)})
    fc_in = hidden_size + 24 + 2
    kf = 1.0 / jnp.sqrt(fc_in)
    key, k5, k6 = jax.random.split(key, 3)
    w_fc = jax.random.uniform(k5, (2, fc_in), jnp.float32, -kf, kf)
    b_fc = jax.random.uniform(k6, (2,), jnp.float32, -kf, kf)
    params["fc"] = {"w_t": w_fc.T, "b": b_fc.reshape(1, -1)}
    return params


def _reference_forward(params, x, x_length, shortcut_var):
    out = x
    for lp in params["lstm"]:
        T, B, _ = out.shape
        H = lp["w_hh_t"].shape[0]

        def step(carry, x_t, lp=lp, H=H):
            h, c = carry
            gates = x_t @ lp["w_ih_t"] + h @ lp["w_hh_t"] + lp["b"]
            i = jax.nn.sigmoid(gates[:, 0 * H:1 * H])
            f = jax.nn.sigmoid(gates[:, 1 * H:2 * H])
            g = jnp.tanh(gates[:, 2 * H:3 * H])
            o = jax.nn.sigmoid(gates[:, 3 * H:4 * H])
            c = f * c + i * g
            h = o * jnp.tanh(c)
            return (h, c), h

        (_, _), out = lax.scan(
            step, (jnp.zeros((B, H), jnp.float32), jnp.zeros((B, H), jnp.float32)), out)
    B = out.shape[1]
    rep = out[x_length - 1, jnp.arange(B), :]
    sc = jnp.concatenate([rep, shortcut_var], axis=1)
    prob = sc @ params["fc"]["w_t"] + params["fc"]["b"]
    return rep, prob


if __name__ == "__main__":
    input_size = 16
    hidden_size = 32
    layer_num = 2
    seq_len = 8
    batch = 4

    key = jax.random.PRNGKey(0)
    kx, ks, kp = jax.random.split(key, 3)

    x = jax.random.normal(kx, (seq_len, batch, input_size), jnp.float32)
    x_length = jnp.array([8, 5, 7, 3], dtype=jnp.int32)
    # zero out padded timesteps (as pad_sequence would produce)
    t_idx = jnp.arange(seq_len)[:, None, None]
    x = jnp.where(t_idx < x_length[None, :, None], x, 0.0)
    shortcut_var = jax.random.normal(ks, (batch, 24 + 2), jnp.float32)

    params = init_params(kp, input_size, hidden_size, layer_num)

    representation, prob = shortcut_lstm_classifier_forward(
        params, x, x_length, shortcut_var)
    jax.block_until_ready((representation, prob))

    assert representation.shape == (batch, hidden_size)
    assert prob.shape == (batch, 2)

    rep_ref, prob_ref = _reference_forward(params, x, x_length, shortcut_var)
    np.testing.assert_allclose(np.asarray(representation), np.asarray(rep_ref),
                               atol=2e-2, rtol=2e-2)
    np.testing.assert_allclose(np.asarray(prob), np.asarray(prob_ref),
                               atol=2e-2, rtol=2e-2)

    print("KERNEL_OK")
</pallas_src>

<mosaic_0001>
module attributes {stable_mosaic.version = 11 : i64} {
  func.func @kernel(%arg0: memref<8x4x128xf32, #tpu.memory_space<vmem>>, %arg1: memref<4x1xi32, #tpu.memory_space<vmem>>, %arg2: memref<4x26xf32, #tpu.memory_space<vmem>>, %arg3: memref<32x128xf32, #tpu.memory_space<vmem>>, %arg4: memref<32x128xf32, #tpu.memory_space<vmem>>, %arg5: memref<32x128xf32, #tpu.memory_space<vmem>>, %arg6: memref<1x128xf32, #tpu.memory_space<vmem>>, %arg7: memref<32x2xf32, #tpu.memory_space<vmem>>, %arg8: memref<26x2xf32, #tpu.memory_space<vmem>>, %arg9: memref<1x2xf32, #tpu.memory_space<vmem>>, %arg10: memref<4x32xf32, #tpu.memory_space<vmem>>, %arg11: memref<4x2xf32, #tpu.memory_space<vmem>>, %arg12: memref<8x4x128xf32, #tpu.memory_space<vmem>>) attributes {dimension_semantics = [], scalar_prefetch = 0 : i64, scratch_operands = 1 : i64, tpu.core_type = #tpu.core_type<tc>} {
    %0 = tpu.iota {dimensions = array<i32: 1>} : vector<4x128xi32>
    %c64_i32 = arith.constant 64 : i32
    %1 = vector.broadcast %c64_i32 : i32 to vector<4x128xi32>
    %2 = arith.cmpi sge, %0, %1 : vector<4x128xi32>
    %c96_i32 = arith.constant 96 : i32
    %3 = vector.broadcast %c96_i32 : i32 to vector<4x128xi32>
    %4 = arith.cmpi slt, %0, %3 : vector<4x128xi32>
    %5 = arith.andi %2, %4 : vector<4x128xi1>
    %c0 = arith.constant 0 : index
    %c0_0 = arith.constant 0 : index
    %6 = vector.load %arg1[%c0, %c0_0] : memref<4x1xi32, #tpu.memory_space<vmem>>, vector<4x1xi32>
    %c1_i32 = arith.constant 1 : i32
    %7 = vector.broadcast %c1_i32 : i32 to vector<4x1xi32>
    %8 = arith.subi %6, %7 : vector<4x1xi32>
    %c0_1 = arith.constant 0 : index
    %c0_2 = arith.constant 0 : index
    %9 = vector.load %arg3[%c0_1, %c0_2] : memref<32x128xf32, #tpu.memory_space<vmem>>, vector<32x128xf32>
    %cst = arith.constant 0.000000e+00 : f32
    %10 = vector.broadcast %cst : f32 to vector<4x32xf32>
    %cst_3 = arith.constant 0.000000e+00 : f32
    %11 = vector.broadcast %cst_3 : f32 to vector<4x32xf32>
    %c0_4 = arith.constant 0 : index
    %c0_5 = arith.constant 0 : index
    %12 = vector.load %arg4[%c0_4, %c0_5] : memref<32x128xf32, #tpu.memory_space<vmem>>, vector<32x128xf32>
    %c0_6 = arith.constant 0 : index
    %c0_7 = arith.constant 0 : index
    %13 = vector.load %arg6[%c0_6, %c0_7] : memref<1x128xf32, #tpu.memory_space<vmem>>, vector<1x128xf32>
    %c0_i32 = arith.constant 0 : i32
    %14 = arith.index_cast %c0_i32 : i32 to index
    %c0_8 = arith.constant 0 : index
    %c0_9 = arith.constant 0 : index
    %15 = vector.load %arg0[%14, %c0_8, %c0_9] : memref<8x4x128xf32, #tpu.memory_space<vmem>>, vector<1x4x128xf32>
    %16 = vector.shape_cast %15 : vector<1x4x128xf32> to vector<4x128xf32>
    %cst_10 = arith.constant dense<0.000000e+00> : vector<4x128xf32>
    %17 = tpu.matmul %10, %9, %cst_10 {dimension_numbers = #tpu.dot_dimension_numbers<[1], [0], [0], [1], [0, 0, 1, 1], [], []>} : vector<4x32xf32>, vector<32x128xf32>, vector<4x128xf32> -> vector<4x128xf32>
    %18 = arith.addf %16, %17 : vector<4x128xf32>
    %cst_11 = arith.constant 5.000000e-01 : f32
    %19 = vector.broadcast %cst_11 : f32 to vector<4x128xf32>
    %20 = arith.mulf %19, %18 : vector<4x128xf32>
    %21 = arith.select %5, %18, %20 : vector<4x128xi1>, vector<4x128xf32>
    %22 = math.tanh %21 : vector<4x128xf32>
    %cst_12 = arith.constant 5.000000e-01 : f32
    %23 = vector.broadcast %cst_12 : f32 to vector<4x128xf32>
    %24 = arith.mulf %23, %22 : vector<4x128xf32>
    %cst_13 = arith.constant 5.000000e-01 : f32
    %25 = vector.broadcast %cst_13 : f32 to vector<4x128xf32>
    %26 = arith.addf %24, %25 : vector<4x128xf32>
    %27 = arith.select %5, %22, %26 : vector<4x128xi1>, vector<4x128xf32>
    %28 = vector.extract_strided_slice %27 {offsets = [0, 0], sizes = [4, 32], strides = [1, 1]} : vector<4x128xf32> to vector<4x32xf32>
    %29 = vector.extract_strided_slice %27 {offsets = [0, 32], sizes = [4, 32], strides = [1, 1]} : vector<4x128xf32> to vector<4x32xf32>
    %30 = vector.extract_strided_slice %27 {offsets = [0, 64], sizes = [4, 32], strides = [1, 1]} : vector<4x128xf32> to vector<4x32xf32>
    %31 = vector.extract_strided_slice %27 {offsets = [0, 96], sizes = [4, 32], strides = [1, 1]} : vector<4x128xf32> to vector<4x32xf32>
    %32 = arith.mulf %29, %11 : vector<4x32xf32>
    %33 = arith.mulf %28, %30 : vector<4x32xf32>
    %34 = arith.addf %32, %33 : vector<4x32xf32>
    %35 = math.tanh %34 : vector<4x32xf32>
    %36 = arith.mulf %31, %35 : vector<4x32xf32>
    %cst_14 = arith.constant dense<0.000000e+00> : vector<4x128xf32>
    %37 = tpu.matmul %36, %12, %cst_14 {dimension_numbers = #tpu.dot_dimension_numbers<[1], [0], [0], [1], [0, 0, 1, 1], [], []>} : vector<4x32xf32>, vector<32x128xf32>, vector<4x128xf32> -> vector<4x128xf32>
    %38 = vector.broadcast %13 : vector<1x128xf32> to vector<4x128xf32>
    %39 = arith.addf %37, %38 : vector<4x128xf32>
    %40 = arith.index_cast %c0_i32 : i32 to index
    %c0_15 = arith.constant 0 : index
    %c0_16 = arith.constant 0 : index
    %41 = vector.load %arg12[%40, %c0_15, %c0_16] : memref<8x4x128xf32, #tpu.memory_space<vmem>>, vector<1x4x128xf32>
    %42 = vector.shape_cast %41 : vector<1x4x128xf32> to vector<4x128xf32>
    %43 = vector.shape_cast %39 : vector<4x128xf32> to vector<1x4x128xf32>
    tpu.vector_store %arg12[%40, %c0_15, %c0_16], %43 {strides = array<i32>} : memref<8x4x128xf32, #tpu.memory_space<vmem>>, vector<1x4x128xf32>,
    %c1_i32_17 = arith.constant 1 : i32
    %44 = arith.index_cast %c1_i32_17 : i32 to index
    %c0_18 = arith.constant 0 : index
    %c0_19 = arith.constant 0 : index
    %45 = vector.load %arg0[%44, %c0_18, %c0_19] : memref<8x4x128xf32, #tpu.memory_space<vmem>>, vector<1x4x128xf32>
    %46 = vector.shape_cast %45 : vector<1x4x128xf32> to vector<4x128xf32>
    %cst_20 = arith.constant dense<0.000000e+00> : vector<4x128xf32>
    %47 = tpu.matmul %36, %9, %cst_20 {dimension_numbers = #tpu.dot_dimension_numbers<[1], [0], [0], [1], [0, 0, 1, 1], [], []>} : vector<4x32xf32>, vector<32x128xf32>, vector<4x128xf32> -> vector<4x128xf32>
    %48 = arith.addf %46, %47 : vector<4x128xf32>
    %cst_21 = arith.constant 5.000000e-01 : f32
    %49 = vector.broadcast %cst_21 : f32 to vector<4x128xf32>
    %50 = arith.mulf %49, %48 : vector<4x128xf32>
    %51 = arith.select %5, %48, %50 : vector<4x128xi1>, vector<4x128xf32>
    %52 = math.tanh %51 : vector<4x128xf32>
    %cst_22 = arith.constant 5.000000e-01 : f32
    %53 = vector.broadcast %cst_22 : f32 to vector<4x128xf32>
    %54 = arith.mulf %53, %52 : vector<4x128xf32>
    %cst_23 = arith.constant 5.000000e-01 : f32
    %55 = vector.broadcast %cst_23 : f32 to vector<4x128xf32>
    %56 = arith.addf %54, %55 : vector<4x128xf32>
    %57 = arith.select %5, %52, %56 : vector<4x128xi1>, vector<4x128xf32>
    %58 = vector.extract_strided_slice %57 {offsets = [0, 0], sizes = [4, 32], strides = [1, 1]} : vector<4x128xf32> to vector<4x32xf32>
    %59 = vector.extract_strided_slice %57 {offsets = [0, 32], sizes = [4, 32], strides = [1, 1]} : vector<4x128xf32> to vector<4x32xf32>
    %60 = vector.extract_strided_slice %57 {offsets = [0, 64], sizes = [4, 32], strides = [1, 1]} : vector<4x128xf32> to vector<4x32xf32>
    %61 = vector.extract_strided_slice %57 {offsets = [0, 96], sizes = [4, 32], strides = [1, 1]} : vector<4x128xf32> to vector<4x32xf32>
    %62 = arith.mulf %59, %34 : vector<4x32xf32>
    %63 = arith.mulf %58, %60 : vector<4x32xf32>
    %64 = arith.addf %62, %63 : vector<4x32xf32>
    %65 = math.tanh %64 : vector<4x32xf32>
    %66 = arith.mulf %61, %65 : vector<4x32xf32>
    %cst_24 = arith.constant dense<0.000000e+00> : vector<4x128xf32>
    %67 = tpu.matmul %66, %12, %cst_24 {dimension_numbers = #tpu.dot_dimension_numbers<[1], [0], [0], [1], [0, 0, 1, 1], [], []>} : vector<4x32xf32>, vector<32x128xf32>, vector<4x128xf32> -> vector<4x128xf32>
    %68 = vector.broadcast %13 : vector<1x128xf32> to vector<4x128xf32>
    %69 = arith.addf %67, %68 : vector<4x128xf32>
    %70 = arith.index_cast %c1_i32_17 : i32 to index
    %c0_25 = arith.constant 0 : index
    %c0_26 = arith.constant 0 : index
    %71 = vector.load %arg12[%70, %c0_25, %c0_26] : memref<8x4x128xf32, #tpu.memory_space<vmem>>, vector<1x4x128xf32>
    %72 = vector.shape_cast %71 : vector<1x4x128xf32> to vector<4x128xf32>
    %73 = vector.shape_cast %69 : vector<4x128xf32> to vector<1x4x128xf32>
    tpu.vector_store %arg12[%70, %c0_25, %c0_26], %73 {strides = array<i32>} : memref<8x4x128xf32, #tpu.memory_space<vmem>>, vector<1x4x128xf32>,
    %c2_i32 = arith.constant 2 : i32
    %74 = arith.index_cast %c2_i32 : i32 to index
    %c0_27 = arith.constant 0 : index
    %c0_28 = arith.constant 0 : index
    %75 = vector.load %arg0[%74, %c0_27, %c0_28] : memref<8x4x128xf32, #tpu.memory_space<vmem>>, vector<1x4x128xf32>
    %76 = vector.shape_cast %75 : vector<1x4x128xf32> to vector<4x128xf32>
    %cst_29 = arith.constant dense<0.000000e+00> : vector<4x128xf32>
    %77 = tpu.matmul %66, %9, %cst_29 {dimension_numbers = #tpu.dot_dimension_numbers<[1], [0], [0], [1], [0, 0, 1, 1], [], []>} : vector<4x32xf32>, vector<32x128xf32>, vector<4x128xf32> -> vector<4x128xf32>
    %78 = arith.addf %76, %77 : vector<4x128xf32>
    %cst_30 = arith.constant 5.000000e-01 : f32
    %79 = vector.broadcast %cst_30 : f32 to vector<4x128xf32>
    %80 = arith.mulf %79, %78 : vector<4x128xf32>
    %81 = arith.select %5, %78, %80 : vector<4x128xi1>, vector<4x128xf32>
    %82 = math.tanh %81 : vector<4x128xf32>
    %cst_31 = arith.constant 5.000000e-01 : f32
    %83 = vector.broadcast %cst_31 : f32 to vector<4x128xf32>
    %84 = arith.mulf %83, %82 : vector<4x128xf32>
    %cst_32 = arith.constant 5.000000e-01 : f32
    %85 = vector.broadcast %cst_32 : f32 to vector<4x128xf32>
    %86 = arith.addf %84, %85 : vector<4x128xf32>
    %87 = arith.select %5, %82, %86 : vector<4x128xi1>, vector<4x128xf32>
    %88 = vector.extract_strided_slice %87 {offsets = [0, 0], sizes = [4, 32], strides = [1, 1]} : vector<4x128xf32> to vector<4x32xf32>
    %89 = vector.extract_strided_slice %87 {offsets = [0, 32], sizes = [4, 32], strides = [1, 1]} : vector<4x128xf32> to vector<4x32xf32>
    %90 = vector.extract_strided_slice %87 {offsets = [0, 64], sizes = [4, 32], strides = [1, 1]} : vector<4x128xf32> to vector<4x32xf32>
    %91 = vector.extract_strided_slice %87 {offsets = [0, 96], sizes = [4, 32], strides = [1, 1]} : vector<4x128xf32> to vector<4x32xf32>
    %92 = arith.mulf %89, %64 : vector<4x32xf32>
    %93 = arith.mulf %88, %90 : vector<4x32xf32>
    %94 = arith.addf %92, %93 : vector<4x32xf32>
    %95 = math.tanh %94 : vector<4x32xf32>
    %96 = arith.mulf %91, %95 : vector<4x32xf32>
    %cst_33 = arith.constant dense<0.000000e+00> : vector<4x128xf32>
    %97 = tpu.matmul %96, %12, %cst_33 {dimension_numbers = #tpu.dot_dimension_numbers<[1], [0], [0], [1], [0, 0, 1, 1], [], []>} : vector<4x32xf32>, vector<32x128xf32>, vector<4x128xf32> -> vector<4x128xf32>
    %98 = vector.broadcast %13 : vector<1x128xf32> to vector<4x128xf32>
    %99 = arith.addf %97, %98 : vector<4x128xf32>
    %100 = arith.index_cast %c2_i32 : i32 to index
    %c0_34 = arith.constant 0 : index
    %c0_35 = arith.constant 0 : index
    %101 = vector.load %arg12[%100, %c0_34, %c0_35] : memref<8x4x128xf32, #tpu.memory_space<vmem>>, vector<1x4x128xf32>
    %102 = vector.shape_cast %101 : vector<1x4x128xf32> to vector<4x128xf32>
    %103 = vector.shape_cast %99 : vector<4x128xf32> to vector<1x4x128xf32>
    tpu.vector_store %arg12[%100, %c0_34, %c0_35], %103 {strides = array<i32>} : memref<8x4x128xf32, #tpu.memory_space<vmem>>, vector<1x4x128xf32>,
    %c3_i32 = arith.constant 3 : i32
    %104 = arith.index_cast %c3_i32 : i32 to index
    %c0_36 = arith.constant 0 : index
    %c0_37 = arith.constant 0 : index
    %105 = vector.load %arg0[%104, %c0_36, %c0_37] : memref<8x4x128xf32, #tpu.memory_space<vmem>>, vector<1x4x128xf32>
    %106 = vector.shape_cast %105 : vector<1x4x128xf32> to vector<4x128xf32>
    %cst_38 = arith.constant dense<0.000000e+00> : vector<4x128xf32>
    %107 = tpu.matmul %96, %9, %cst_38 {dimension_numbers = #tpu.dot_dimension_numbers<[1], [0], [0], [1], [0, 0, 1, 1], [], []>} : vector<4x32xf32>, vector<32x128xf32>, vector<4x128xf32> -> vector<4x128xf32>
    %108 = arith.addf %106, %107 : vector<4x128xf32>
    %cst_39 = arith.constant 5.000000e-01 : f32
    %109 = vector.broadcast %cst_39 : f32 to vector<4x128xf32>
    %110 = arith.mulf %109, %108 : vector<4x128xf32>
    %111 = arith.select %5, %108, %110 : vector<4x128xi1>, vector<4x128xf32>
    %112 = math.tanh %111 : vector<4x128xf32>
    %cst_40 = arith.constant 5.000000e-01 : f32
    %113 = vector.broadcast %cst_40 : f32 to vector<4x128xf32>
    %114 = arith.mulf %113, %112 : vector<4x128xf32>
    %cst_41 = arith.constant 5.000000e-01 : f32
    %115 = vector.broadcast %cst_41 : f32 to vector<4x128xf32>
    %116 = arith.addf %114, %115 : vector<4x128xf32>
    %117 = arith.select %5, %112, %116 : vector<4x128xi1>, vector<4x128xf32>
    %118 = vector.extract_strided_slice %117 {offsets = [0, 0], sizes = [4, 32], strides = [1, 1]} : vector<4x128xf32> to vector<4x32xf32>
    %119 = vector.extract_strided_slice %117 {offsets = [0, 32], sizes = [4, 32], strides = [1, 1]} : vector<4x128xf32> to vector<4x32xf32>
    %120 = vector.extract_strided_slice %117 {offsets = [0, 64], sizes = [4, 32], strides = [1, 1]} : vector<4x128xf32> to vector<4x32xf32>
    %121 = vector.extract_strided_slice %117 {offsets = [0, 96], sizes = [4, 32], strides = [1, 1]} : vector<4x128xf32> to vector<4x32xf32>
    %122 = arith.mulf %119, %94 : vector<4x32xf32>
    %123 = arith.mulf %118, %120 : vector<4x32xf32>
    %124 = arith.addf %122, %123 : vector<4x32xf32>
    %125 = math.tanh %124 : vector<4x32xf32>
    %126 = arith.mulf %121, %125 : vector<4x32xf32>
    %cst_42 = arith.constant dense<0.000000e+00> : vector<4x128xf32>
    %127 = tpu.matmul %126, %12, %cst_42 {dimension_numbers = #tpu.dot_dimension_numbers<[1], [0], [0], [1], [0, 0, 1, 1], [], []>} : vector<4x32xf32>, vector<32x128xf32>, vector<4x128xf32> -> vector<4x128xf32>
    %128 = vector.broadcast %13 : vector<1x128xf32> to vector<4x128xf32>
    %129 = arith.addf %127, %128 : vector<4x128xf32>
    %130 = arith.index_cast %c3_i32 : i32 to index
    %c0_43 = arith.constant 0 : index
    %c0_44 = arith.constant 0 : index
    %131 = vector.load %arg12[%130, %c0_43, %c0_44] : memref<8x4x128xf32, #tpu.memory_space<vmem>>, vector<1x4x128xf32>
    %132 = vector.shape_cast %131 : vector<1x4x128xf32> to vector<4x128xf32>
    %133 = vector.shape_cast %129 : vector<4x128xf32> to vector<1x4x128xf32>
    tpu.vector_store %arg12[%130, %c0_43, %c0_44], %133 {strides = array<i32>} : memref<8x4x128xf32, #tpu.memory_space<vmem>>, vector<1x4x128xf32>,
    %c4_i32 = arith.constant 4 : i32
    %134 = arith.index_cast %c4_i32 : i32 to index
    %c0_45 = arith.constant 0 : index
    %c0_46 = arith.constant 0 : index
    %135 = vector.load %arg0[%134, %c0_45, %c0_46] : memref<8x4x128xf32, #tpu.memory_space<vmem>>, vector<1x4x128xf32>
    %136 = vector.shape_cast %135 : vector<1x4x128xf32> to vector<4x128xf32>
    %cst_47 = arith.constant dense<0.000000e+00> : vector<4x128xf32>
    %137 = tpu.matmul %126, %9, %cst_47 {dimension_numbers = #tpu.dot_dimension_numbers<[1], [0], [0], [1], [0, 0, 1, 1], [], []>} : vector<4x32xf32>, vector<32x128xf32>, vector<4x128xf32> -> vector<4x128xf32>
    %138 = arith.addf %136, %137 : vector<4x128xf32>
    %cst_48 = arith.constant 5.000000e-01 : f32
    %139 = vector.broadcast %cst_48 : f32 to vector<4x128xf32>
    %140 = arith.mulf %139, %138 : vector<4x128xf32>
    %141 = arith.select %5, %138, %140 : vector<4x128xi1>, vector<4x128xf32>
    %142 = math.tanh %141 : vector<4x128xf32>
    %cst_49 = arith.constant 5.000000e-01 : f32
    %143 = vector.broadcast %cst_49 : f32 to vector<4x128xf32>
    %144 = arith.mulf %143, %142 : vector<4x128xf32>
    %cst_50 = arith.constant 5.000000e-01 : f32
    %145 = vector.broadcast %cst_50 : f32 to vector<4x128xf32>
    %146 = arith.addf %144, %145 : vector<4x128xf32>
    %147 = arith.select %5, %142, %146 : vector<4x128xi1>, vector<4x128xf32>
    %148 = vector.extract_strided_slice %147 {offsets = [0, 0], sizes = [4, 32], strides = [1, 1]} : vector<4x128xf32> to vector<4x32xf32>
    %149 = vector.extract_strided_slice %147 {offsets = [0, 32], sizes = [4, 32], strides = [1, 1]} : vector<4x128xf32> to vector<4x32xf32>
    %150 = vector.extract_strided_slice %147 {offsets = [0, 64], sizes = [4, 32], strides = [1, 1]} : vector<4x128xf32> to vector<4x32xf32>
    %151 = vector.extract_strided_slice %147 {offsets = [0, 96], sizes = [4, 32], strides = [1, 1]} : vector<4x128xf32> to vector<4x32xf32>
    %152 = arith.mulf %149, %124 : vector<4x32xf32>
    %153 = arith.mulf %148, %150 : vector<4x32xf32>
    %154 = arith.addf %152, %153 : vector<4x32xf32>
    %155 = math.tanh %154 : vector<4x32xf32>
    %156 = arith.mulf %151, %155 : vector<4x32xf32>
    %cst_51 = arith.constant dense<0.000000e+00> : vector<4x128xf32>
    %157 = tpu.matmul %156, %12, %cst_51 {dimension_numbers = #tpu.dot_dimension_numbers<[1], [0], [0], [1], [0, 0, 1, 1], [], []>} : vector<4x32xf32>, vector<32x128xf32>, vector<4x128xf32> -> vector<4x128xf32>
    %158 = vector.broadcast %13 : vector<1x128xf32> to vector<4x128xf32>
    %159 = arith.addf %157, %158 : vector<4x128xf32>
    %160 = arith.index_cast %c4_i32 : i32 to index
    %c0_52 = arith.constant 0 : index
    %c0_53 = arith.constant 0 : index
    %161 = vector.load %arg12[%160, %c0_52, %c0_53] : memref<8x4x128xf32, #tpu.memory_space<vmem>>, vector<1x4x128xf32>
    %162 = vector.shape_cast %161 : vector<1x4x128xf32> to vector<4x128xf32>
    %163 = vector.shape_cast %159 : vector<4x128xf32> to vector<1x4x128xf32>
    tpu.vector_store %arg12[%160, %c0_52, %c0_53], %163 {strides = array<i32>} : memref<8x4x128xf32, #tpu.memory_space<vmem>>, vector<1x4x128xf32>,
    %c5_i32 = arith.constant 5 : i32
    %164 = arith.index_cast %c5_i32 : i32 to index
    %c0_54 = arith.constant 0 : index
    %c0_55 = arith.constant 0 : index
    %165 = vector.load %arg0[%164, %c0_54, %c0_55] : memref<8x4x128xf32, #tpu.memory_space<vmem>>, vector<1x4x128xf32>
    %166 = vector.shape_cast %165 : vector<1x4x128xf32> to vector<4x128xf32>
    %cst_56 = arith.constant dense<0.000000e+00> : vector<4x128xf32>
    %167 = tpu.matmul %156, %9, %cst_56 {dimension_numbers = #tpu.dot_dimension_numbers<[1], [0], [0], [1], [0, 0, 1, 1], [], []>} : vector<4x32xf32>, vector<32x128xf32>, vector<4x128xf32> -> vector<4x128xf32>
    %168 = arith.addf %166, %167 : vector<4x128xf32>
    %cst_57 = arith.constant 5.000000e-01 : f32
    %169 = vector.broadcast %cst_57 : f32 to vector<4x128xf32>
    %170 = arith.mulf %169, %168 : vector<4x128xf32>
    %171 = arith.select %5, %168, %170 : vector<4x128xi1>, vector<4x128xf32>
    %172 = math.tanh %171 : vector<4x128xf32>
    %cst_58 = arith.constant 5.000000e-01 : f32
    %173 = vector.broadcast %cst_58 : f32 to vector<4x128xf32>
    %174 = arith.mulf %173, %172 : vector<4x128xf32>
    %cst_59 = arith.constant 5.000000e-01 : f32
    %175 = vector.broadcast %cst_59 : f32 to vector<4x128xf32>
    %176 = arith.addf %174, %175 : vector<4x128xf32>
    %177 = arith.select %5, %172, %176 : vector<4x128xi1>, vector<4x128xf32>
    %178 = vector.extract_strided_slice %177 {offsets = [0, 0], sizes = [4, 32], strides = [1, 1]} : vector<4x128xf32> to vector<4x32xf32>
    %179 = vector.extract_strided_slice %177 {offsets = [0, 32], sizes = [4, 32], strides = [1, 1]} : vector<4x128xf32> to vector<4x32xf32>
    %180 = vector.extract_strided_slice %177 {offsets = [0, 64], sizes = [4, 32], strides = [1, 1]} : vector<4x128xf32> to vector<4x32xf32>
    %181 = vector.extract_strided_slice %177 {offsets = [0, 96], sizes = [4, 32], strides = [1, 1]} : vector<4x128xf32> to vector<4x32xf32>
    %182 = arith.mulf %179, %154 : vector<4x32xf32>
    %183 = arith.mulf %178, %180 : vector<4x32xf32>
    %184 = arith.addf %182, %183 : vector<4x32xf32>
    %185 = math.tanh %184 : vector<4x32xf32>
    %186 = arith.mulf %181, %185 : vector<4x32xf32>
    %cst_60 = arith.constant dense<0.000000e+00> : vector<4x128xf32>
    %187 = tpu.matmul %186, %12, %cst_60 {dimension_numbers = #tpu.dot_dimension_numbers<[1], [0], [0], [1], [0, 0, 1, 1], [], []>} : vector<4x32xf32>, vector<32x128xf32>, vector<4x128xf32> -> vector<4x128xf32>
    %188 = vector.broadcast %13 : vector<1x128xf32> to vector<4x128xf32>
    %189 = arith.addf %187, %188 : vector<4x128xf32>
    %190 = arith.index_cast %c5_i32 : i32 to index
    %c0_61 = arith.constant 0 : index
    %c0_62 = arith.constant 0 : index
    %191 = vector.load %arg12[%190, %c0_61, %c0_62] : memref<8x4x128xf32, #tpu.memory_space<vmem>>, vector<1x4x128xf32>
    %192 = vector.shape_cast %191 : vector<1x4x128xf32> to vector<4x128xf32>
    %193 = vector.shape_cast %189 : vector<4x128xf32> to vector<1x4x128xf32>
    tpu.vector_store %arg12[%190, %c0_61, %c0_62], %193 {strides = array<i32>} : memref<8x4x128xf32, #tpu.memory_space<vmem>>, vector<1x4x128xf32>,
    %c6_i32 = arith.constant 6 : i32
    %194 = arith.index_cast %c6_i32 : i32 to index
    %c0_63 = arith.constant 0 : index
    %c0_64 = arith.constant 0 : index
    %195 = vector.load %arg0[%194, %c0_63, %c0_64] : memref<8x4x128xf32, #tpu.memory_space<vmem>>, vector<1x4x128xf32>
    %196 = vector.shape_cast %195 : vector<1x4x128xf32> to vector<4x128xf32>
    %cst_65 = arith.constant dense<0.000000e+00> : vector<4x128xf32>
    %197 = tpu.matmul %186, %9, %cst_65 {dimension_numbers = #tpu.dot_dimension_numbers<[1], [0], [0], [1], [0, 0, 1, 1], [], []>} : vector<4x32xf32>, vector<32x128xf32>, vector<4x128xf32> -> vector<4x128xf32>
    %198 = arith.addf %196, %197 : vector<4x128xf32>
    %cst_66 = arith.constant 5.000000e-01 : f32
    %199 = vector.broadcast %cst_66 : f32 to vector<4x128xf32>
    %200 = arith.mulf %199, %198 : vector<4x128xf32>
    %201 = arith.select %5, %198, %200 : vector<4x128xi1>, vector<4x128xf32>
    %202 = math.tanh %201 : vector<4x128xf32>
    %cst_67 = arith.constant 5.000000e-01 : f32
    %203 = vector.broadcast %cst_67 : f32 to vector<4x128xf32>
    %204 = arith.mulf %203, %202 : vector<4x128xf32>
    %cst_68 = arith.constant 5.000000e-01 : f32
    %205 = vector.broadcast %cst_68 : f32 to vector<4x128xf32>
    %206 = arith.addf %204, %205 : vector<4x128xf32>
    %207 = arith.select %5, %202, %206 : vector<4x128xi1>, vector<4x128xf32>
    %208 = vector.extract_strided_slice %207 {offsets = [0, 0], sizes = [4, 32], strides = [1, 1]} : vector<4x128xf32> to vector<4x32xf32>
    %209 = vector.extract_strided_slice %207 {offsets = [0, 32], sizes = [4, 32], strides = [1, 1]} : vector<4x128xf32> to vector<4x32xf32>
    %210 = vector.extract_strided_slice %207 {offsets = [0, 64], sizes = [4, 32], strides = [1, 1]} : vector<4x128xf32> to vector<4x32xf32>
    %211 = vector.extract_strided_slice %207 {offsets = [0, 96], sizes = [4, 32], strides = [1, 1]} : vector<4x128xf32> to vector<4x32xf32>
    %212 = arith.mulf %209, %184 : vector<4x32xf32>
    %213 = arith.mulf %208, %210 : vector<4x32xf32>
    %214 = arith.addf %212, %213 : vector<4x32xf32>
    %215 = math.tanh %214 : vector<4x32xf32>
    %216 = arith.mulf %211, %215 : vector<4x32xf32>
    %cst_69 = arith.constant dense<0.000000e+00> : vector<4x128xf32>
    %217 = tpu.matmul %216, %12, %cst_69 {dimension_numbers = #tpu.dot_dimension_numbers<[1], [0], [0], [1], [0, 0, 1, 1], [], []>} : vector<4x32xf32>, vector<32x128xf32>, vector<4x128xf32> -> vector<4x128xf32>
    %218 = vector.broadcast %13 : vector<1x128xf32> to vector<4x128xf32>
    %219 = arith.addf %217, %218 : vector<4x128xf32>
    %220 = arith.index_cast %c6_i32 : i32 to index
    %c0_70 = arith.constant 0 : index
    %c0_71 = arith.constant 0 : index
    %221 = vector.load %arg12[%220, %c0_70, %c0_71] : memref<8x4x128xf32, #tpu.memory_space<vmem>>, vector<1x4x128xf32>
    %222 = vector.shape_cast %221 : vector<1x4x128xf32> to vector<4x128xf32>
    %223 = vector.shape_cast %219 : vector<4x128xf32> to vector<1x4x128xf32>
    tpu.vector_store %arg12[%220, %c0_70, %c0_71], %223 {strides = array<i32>} : memref<8x4x128xf32, #tpu.memory_space<vmem>>, vector<1x4x128xf32>,
    %c7_i32 = arith.constant 7 : i32
    %224 = arith.index_cast %c7_i32 : i32 to index
    %c0_72 = arith.constant 0 : index
    %c0_73 = arith.constant 0 : index
    %225 = vector.load %arg0[%224, %c0_72, %c0_73] : memref<8x4x128xf32, #tpu.memory_space<vmem>>, vector<1x4x128xf32>
    %226 = vector.shape_cast %225 : vector<1x4x128xf32> to vector<4x128xf32>
    %cst_74 = arith.constant dense<0.000000e+00> : vector<4x128xf32>
    %227 = tpu.matmul %216, %9, %cst_74 {dimension_numbers = #tpu.dot_dimension_numbers<[1], [0], [0], [1], [0, 0, 1, 1], [], []>} : vector<4x32xf32>, vector<32x128xf32>, vector<4x128xf32> -> vector<4x128xf32>
    %228 = arith.addf %226, %227 : vector<4x128xf32>
    %cst_75 = arith.constant 5.000000e-01 : f32
    %229 = vector.broadcast %cst_75 : f32 to vector<4x128xf32>
    %230 = arith.mulf %229, %228 : vector<4x128xf32>
    %231 = arith.select %5, %228, %230 : vector<4x128xi1>, vector<4x128xf32>
    %232 = math.tanh %231 : vector<4x128xf32>
    %cst_76 = arith.constant 5.000000e-01 : f32
    %233 = vector.broadcast %cst_76 : f32 to vector<4x128xf32>
    %234 = arith.mulf %233, %232 : vector<4x128xf32>
    %cst_77 = arith.constant 5.000000e-01 : f32
    %235 = vector.broadcast %cst_77 : f32 to vector<4x128xf32>
    %236 = arith.addf %234, %235 : vector<4x128xf32>
    %237 = arith.select %5, %232, %236 : vector<4x128xi1>, vector<4x128xf32>
    %238 = vector.extract_strided_slice %237 {offsets = [0, 0], sizes = [4, 32], strides = [1, 1]} : vector<4x128xf32> to vector<4x32xf32>
    %239 = vector.extract_strided_slice %237 {offsets = [0, 32], sizes = [4, 32], strides = [1, 1]} : vector<4x128xf32> to vector<4x32xf32>
    %240 = vector.extract_strided_slice %237 {offsets = [0, 64], sizes = [4, 32], strides = [1, 1]} : vector<4x128xf32> to vector<4x32xf32>
    %241 = vector.extract_strided_slice %237 {offsets = [0, 96], sizes = [4, 32], strides = [1, 1]} : vector<4x128xf32> to vector<4x32xf32>
    %242 = arith.mulf %239, %214 : vector<4x32xf32>
    %243 = arith.mulf %238, %240 : vector<4x32xf32>
    %244 = arith.addf %242, %243 : vector<4x32xf32>
    %245 = math.tanh %244 : vector<4x32xf32>
    %246 = arith.mulf %241, %245 : vector<4x32xf32>
    %cst_78 = arith.constant dense<0.000000e+00> : vector<4x128xf32>
    %247 = tpu.matmul %246, %12, %cst_78 {dimension_numbers = #tpu.dot_dimension_numbers<[1], [0], [0], [1], [0, 0, 1, 1], [], []>} : vector<4x32xf32>, vector<32x128xf32>, vector<4x128xf32> -> vector<4x128xf32>
    %248 = vector.broadcast %13 : vector<1x128xf32> to vector<4x128xf32>
    %249 = arith.addf %247, %248 : vector<4x128xf32>
    %250 = arith.index_cast %c7_i32 : i32 to index
    %c0_79 = arith.constant 0 : index
    %c0_80 = arith.constant 0 : index
    %251 = vector.load %arg12[%250, %c0_79, %c0_80] : memref<8x4x128xf32, #tpu.memory_space<vmem>>, vector<1x4x128xf32>
    %252 = vector.shape_cast %251 : vector<1x4x128xf32> to vector<4x128xf32>
    %253 = vector.shape_cast %249 : vector<4x128xf32> to vector<1x4x128xf32>
    tpu.vector_store %arg12[%250, %c0_79, %c0_80], %253 {strides = array<i32>} : memref<8x4x128xf32, #tpu.memory_space<vmem>>, vector<1x4x128xf32>,
    %c8_i32 = arith.constant 8 : i32
    %c0_81 = arith.constant 0 : index
    %c0_82 = arith.constant 0 : index
    %254 = vector.load %arg5[%c0_81, %c0_82] : memref<32x128xf32, #tpu.memory_space<vmem>>, vector<32x128xf32>
    %cst_83 = arith.constant 0.000000e+00 : f32
    %255 = vector.broadcast %cst_83 : f32 to vector<4x32xf32>
    %cst_84 = arith.constant 0.000000e+00 : f32
    %256 = vector.broadcast %cst_84 : f32 to vector<4x32xf32>
    %cst_85 = arith.constant 0.000000e+00 : f32
    %257 = vector.broadcast %cst_85 : f32 to vector<4x32xf32>
    %c0_i32_86 = arith.constant 0 : i32
    %258 = arith.index_cast %c0_i32_86 : i32 to index
    %c0_87 = arith.constant 0 : index
    %c0_88 = arith.constant 0 : index
    %259 = vector.load %arg12[%258, %c0_87, %c0_88] : memref<8x4x128xf32, #tpu.memory_space<vmem>>, vector<1x4x128xf32>
    %260 = vector.shape_cast %259 : vector<1x4x128xf32> to vector<4x128xf32>
    %cst_89 = arith.constant dense<0.000000e+00> : vector<4x128xf32>
    %261 = tpu.matmul %255, %254, %cst_89 {dimension_numbers = #tpu.dot_dimension_numbers<[1], [0], [0], [1], [0, 0, 1, 1], [], []>} : vector<4x32xf32>, vector<32x128xf32>, vector<4x128xf32> -> vector<4x128xf32>
    %262 = arith.addf %260, %261 : vector<4x128xf32>
    %cst_90 = arith.constant 5.000000e-01 : f32
    %263 = vector.broadcast %cst_90 : f32 to vector<4x128xf32>
    %264 = arith.mulf %263, %262 : vector<4x128xf32>
    %265 = arith.select %5, %262, %264 : vector<4x128xi1>, vector<4x128xf32>
    %266 = math.tanh %265 : vector<4x128xf32>
    %cst_91 = arith.constant 5.000000e-01 : f32
    %267 = vector.broadcast %cst_91 : f32 to vector<4x128xf32>
    %268 = arith.mulf %267, %266 : vector<4x128xf32>
    %cst_92 = arith.constant 5.000000e-01 : f32
    %269 = vector.broadcast %cst_92 : f32 to vector<4x128xf32>
    %270 = arith.addf %268, %269 : vector<4x128xf32>
    %271 = arith.select %5, %266, %270 : vector<4x128xi1>, vector<4x128xf32>
    %272 = vector.extract_strided_slice %271 {offsets = [0, 0], sizes = [4, 32], strides = [1, 1]} : vector<4x128xf32> to vector<4x32xf32>
    %273 = vector.extract_strided_slice %271 {offsets = [0, 32], sizes = [4, 32], strides = [1, 1]} : vector<4x128xf32> to vector<4x32xf32>
    %274 = vector.extract_strided_slice %271 {offsets = [0, 64], sizes = [4, 32], strides = [1, 1]} : vector<4x128xf32> to vector<4x32xf32>
    %275 = vector.extract_strided_slice %271 {offsets = [0, 96], sizes = [4, 32], strides = [1, 1]} : vector<4x128xf32> to vector<4x32xf32>
    %276 = arith.mulf %273, %256 : vector<4x32xf32>
    %277 = arith.mulf %272, %274 : vector<4x32xf32>
    %278 = arith.addf %276, %277 : vector<4x32xf32>
    %279 = math.tanh %278 : vector<4x32xf32>
    %280 = arith.mulf %275, %279 : vector<4x32xf32>
    %281 = vector.broadcast %c0_i32_86 : i32 to vector<4x1xi32>
    %282 = arith.cmpi eq, %281, %8 : vector<4x1xi32>
    %283 = vector.shape_cast %282 : vector<4x1xi1> to vector<4x1xi1>
    %284 = vector.broadcast %283 : vector<4x1xi1> to vector<4x32xi1>
    %285 = arith.select %284, %280, %257 : vector<4x32xi1>, vector<4x32xf32>
    %c1_i32_93 = arith.constant 1 : i32
    %286 = arith.index_cast %c1_i32_93 : i32 to index
    %c0_94 = arith.constant 0 : index
    %c0_95 = arith.constant 0 : index
    %287 = vector.load %arg12[%286, %c0_94, %c0_95] : memref<8x4x128xf32, #tpu.memory_space<vmem>>, vector<1x4x128xf32>
    %288 = vector.shape_cast %287 : vector<1x4x128xf32> to vector<4x128xf32>
    %cst_96 = arith.constant dense<0.000000e+00> : vector<4x128xf32>
    %289 = tpu.matmul %280, %254, %cst_96 {dimension_numbers = #tpu.dot_dimension_numbers<[1], [0], [0], [1], [0, 0, 1, 1], [], []>} : vector<4x32xf32>, vector<32x128xf32>, vector<4x128xf32> -> vector<4x128xf32>
    %290 = arith.addf %288, %289 : vector<4x128xf32>
    %cst_97 = arith.constant 5.000000e-01 : f32
    %291 = vector.broadcast %cst_97 : f32 to vector<4x128xf32>
    %292 = arith.mulf %291, %290 : vector<4x128xf32>
    %293 = arith.select %5, %290, %292 : vector<4x128xi1>, vector<4x128xf32>
    %294 = math.tanh %293 : vector<4x128xf32>
    %cst_98 = arith.constant 5.000000e-01 : f32
    %295 = vector.broadcast %cst_98 : f32 to vector<4x128xf32>
    %296 = arith.mulf %295, %294 : vector<4x128xf32>
    %cst_99 = arith.constant 5.000000e-01 : f32
    %297 = vector.broadcast %cst_99 : f32 to vector<4x128xf32>
    %298 = arith.addf %296, %297 : vector<4x128xf32>
    %299 = arith.select %5, %294, %298 : vector<4x128xi1>, vector<4x128xf32>
    %300 = vector.extract_strided_slice %299 {offsets = [0, 0], sizes = [4, 32], strides = [1, 1]} : vector<4x128xf32> to vector<4x32xf32>
    %301 = vector.extract_strided_slice %299 {offsets = [0, 32], sizes = [4, 32], strides = [1, 1]} : vector<4x128xf32> to vector<4x32xf32>
    %302 = vector.extract_strided_slice %299 {offsets = [0, 64], sizes = [4, 32], strides = [1, 1]} : vector<4x128xf32> to vector<4x32xf32>
    %303 = vector.extract_strided_slice %299 {offsets = [0, 96], sizes = [4, 32], strides = [1, 1]} : vector<4x128xf32> to vector<4x32xf32>
    %304 = arith.mulf %301, %278 : vector<4x32xf32>
    %305 = arith.mulf %300, %302 : vector<4x32xf32>
    %306 = arith.addf %304, %305 : vector<4x32xf32>
    %307 = math.tanh %306 : vector<4x32xf32>
    %308 = arith.mulf %303, %307 : vector<4x32xf32>
    %309 = vector.broadcast %c1_i32_93 : i32 to vector<4x1xi32>
    %310 = arith.cmpi eq, %309, %8 : vector<4x1xi32>
    %311 = vector.shape_cast %310 : vector<4x1xi1> to vector<4x1xi1>
    %312 = vector.broadcast %311 : vector<4x1xi1> to vector<4x32xi1>
    %313 = arith.select %312, %308, %285 : vector<4x32xi1>, vector<4x32xf32>
    %c2_i32_100 = arith.constant 2 : i32
    %314 = arith.index_cast %c2_i32_100 : i32 to index
    %c0_101 = arith.constant 0 : index
    %c0_102 = arith.constant 0 : index
    %315 = vector.load %arg12[%314, %c0_101, %c0_102] : memref<8x4x128xf32, #tpu.memory_space<vmem>>, vector<1x4x128xf32>
    %316 = vector.shape_cast %315 : vector<1x4x128xf32> to vector<4x128xf32>
    %cst_103 = arith.constant dense<0.000000e+00> : vector<4x128xf32>
    %317 = tpu.matmul %308, %254, %cst_103 {dimension_numbers = #tpu.dot_dimension_numbers<[1], [0], [0], [1], [0, 0, 1, 1], [], []>} : vector<4x32xf32>, vector<32x128xf32>, vector<4x128xf32> -> vector<4x128xf32>
    %318 = arith.addf %316, %317 : vector<4x128xf32>
    %cst_104 = arith.constant 5.000000e-01 : f32
    %319 = vector.broadcast %cst_104 : f32 to vector<4x128xf32>
    %320 = arith.mulf %319, %318 : vector<4x128xf32>
    %321 = arith.select %5, %318, %320 : vector<4x128xi1>, vector<4x128xf32>
    %322 = math.tanh %321 : vector<4x128xf32>
    %cst_105 = arith.constant 5.000000e-01 : f32
    %323 = vector.broadcast %cst_105 : f32 to vector<4x128xf32>
    %324 = arith.mulf %323, %322 : vector<4x128xf32>
    %cst_106 = arith.constant 5.000000e-01 : f32
    %325 = vector.broadcast %cst_106 : f32 to vector<4x128xf32>
    %326 = arith.addf %324, %325 : vector<4x128xf32>
    %327 = arith.select %5, %322, %326 : vector<4x128xi1>, vector<4x128xf32>
    %328 = vector.extract_strided_slice %327 {offsets = [0, 0], sizes = [4, 32], strides = [1, 1]} : vector<4x128xf32> to vector<4x32xf32>
    %329 = vector.extract_strided_slice %327 {offsets = [0, 32], sizes = [4, 32], strides = [1, 1]} : vector<4x128xf32> to vector<4x32xf32>
    %330 = vector.extract_strided_slice %327 {offsets = [0, 64], sizes = [4, 32], strides = [1, 1]} : vector<4x128xf32> to vector<4x32xf32>
    %331 = vector.extract_strided_slice %327 {offsets = [0, 96], sizes = [4, 32], strides = [1, 1]} : vector<4x128xf32> to vector<4x32xf32>
    %332 = arith.mulf %329, %306 : vector<4x32xf32>
    %333 = arith.mulf %328, %330 : vector<4x32xf32>
    %334 = arith.addf %332, %333 : vector<4x32xf32>
    %335 = math.tanh %334 : vector<4x32xf32>
    %336 = arith.mulf %331, %335 : vector<4x32xf32>
    %337 = vector.broadcast %c2_i32_100 : i32 to vector<4x1xi32>
    %338 = arith.cmpi eq, %337, %8 : vector<4x1xi32>
    %339 = vector.shape_cast %338 : vector<4x1xi1> to vector<4x1xi1>
    %340 = vector.broadcast %339 : vector<4x1xi1> to vector<4x32xi1>
    %341 = arith.select %340, %336, %313 : vector<4x32xi1>, vector<4x32xf32>
    %c3_i32_107 = arith.constant 3 : i32
    %342 = arith.index_cast %c3_i32_107 : i32 to index
    %c0_108 = arith.constant 0 : index
    %c0_109 = arith.constant 0 : index
    %343 = vector.load %arg12[%342, %c0_108, %c0_109] : memref<8x4x128xf32, #tpu.memory_space<vmem>>, vector<1x4x128xf32>
    %344 = vector.shape_cast %343 : vector<1x4x128xf32> to vector<4x128xf32>
    %cst_110 = arith.constant dense<0.000000e+00> : vector<4x128xf32>
    %345 = tpu.matmul %336, %254, %cst_110 {dimension_numbers = #tpu.dot_dimension_numbers<[1], [0], [0], [1], [0, 0, 1, 1], [], []>} : vector<4x32xf32>, vector<32x128xf32>, vector<4x128xf32> -> vector<4x128xf32>
    %346 = arith.addf %344, %345 : vector<4x128xf32>
    %cst_111 = arith.constant 5.000000e-01 : f32
    %347 = vector.broadcast %cst_111 : f32 to vector<4x128xf32>
    %348 = arith.mulf %347, %346 : vector<4x128xf32>
    %349 = arith.select %5, %346, %348 : vector<4x128xi1>, vector<4x128xf32>
    %350 = math.tanh %349 : vector<4x128xf32>
    %cst_112 = arith.constant 5.000000e-01 : f32
    %351 = vector.broadcast %cst_112 : f32 to vector<4x128xf32>
    %352 = arith.mulf %351, %350 : vector<4x128xf32>
    %cst_113 = arith.constant 5.000000e-01 : f32
    %353 = vector.broadcast %cst_113 : f32 to vector<4x128xf32>
    %354 = arith.addf %352, %353 : vector<4x128xf32>
    %355 = arith.select %5, %350, %354 : vector<4x128xi1>, vector<4x128xf32>
    %356 = vector.extract_strided_slice %355 {offsets = [0, 0], sizes = [4, 32], strides = [1, 1]} : vector<4x128xf32> to vector<4x32xf32>
    %357 = vector.extract_strided_slice %355 {offsets = [0, 32], sizes = [4, 32], strides = [1, 1]} : vector<4x128xf32> to vector<4x32xf32>
    %358 = vector.extract_strided_slice %355 {offsets = [0, 64], sizes = [4, 32], strides = [1, 1]} : vector<4x128xf32> to vector<4x32xf32>
    %359 = vector.extract_strided_slice %355 {offsets = [0, 96], sizes = [4, 32], strides = [1, 1]} : vector<4x128xf32> to vector<4x32xf32>
    %360 = arith.mulf %357, %334 : vector<4x32xf32>
    %361 = arith.mulf %356, %358 : vector<4x32xf32>
    %362 = arith.addf %360, %361 : vector<4x32xf32>
    %363 = math.tanh %362 : vector<4x32xf32>
    %364 = arith.mulf %359, %363 : vector<4x32xf32>
    %365 = vector.broadcast %c3_i32_107 : i32 to vector<4x1xi32>
    %366 = arith.cmpi eq, %365, %8 : vector<4x1xi32>
    %367 = vector.shape_cast %366 : vector<4x1xi1> to vector<4x1xi1>
    %368 = vector.broadcast %367 : vector<4x1xi1> to vector<4x32xi1>
    %369 = arith.select %368, %364, %341 : vector<4x32xi1>, vector<4x32xf32>
    %c4_i32_114 = arith.constant 4 : i32
    %370 = arith.index_cast %c4_i32_114 : i32 to index
    %c0_115 = arith.constant 0 : index
    %c0_116 = arith.constant 0 : index
    %371 = vector.load %arg12[%370, %c0_115, %c0_116] : memref<8x4x128xf32, #tpu.memory_space<vmem>>, vector<1x4x128xf32>
    %372 = vector.shape_cast %371 : vector<1x4x128xf32> to vector<4x128xf32>
    %cst_117 = arith.constant dense<0.000000e+00> : vector<4x128xf32>
    %373 = tpu.matmul %364, %254, %cst_117 {dimension_numbers = #tpu.dot_dimension_numbers<[1], [0], [0], [1], [0, 0, 1, 1], [], []>} : vector<4x32xf32>, vector<32x128xf32>, vector<4x128xf32> -> vector<4x128xf32>
    %374 = arith.addf %372, %373 : vector<4x128xf32>
    %cst_118 = arith.constant 5.000000e-01 : f32
    %375 = vector.broadcast %cst_118 : f32 to vector<4x128xf32>
    %376 = arith.mulf %375, %374 : vector<4x128xf32>
    %377 = arith.select %5, %374, %376 : vector<4x128xi1>, vector<4x128xf32>
    %378 = math.tanh %377 : vector<4x128xf32>
    %cst_119 = arith.constant 5.000000e-01 : f32
    %379 = vector.broadcast %cst_119 : f32 to vector<4x128xf32>
    %380 = arith.mulf %379, %378 : vector<4x128xf32>
    %cst_120 = arith.constant 5.000000e-01 : f32
    %381 = vector.broadcast %cst_120 : f32 to vector<4x128xf32>
    %382 = arith.addf %380, %381 : vector<4x128xf32>
    %383 = arith.select %5, %378, %382 : vector<4x128xi1>, vector<4x128xf32>
    %384 = vector.extract_strided_slice %383 {offsets = [0, 0], sizes = [4, 32], strides = [1, 1]} : vector<4x128xf32> to vector<4x32xf32>
    %385 = vector.extract_strided_slice %383 {offsets = [0, 32], sizes = [4, 32], strides = [1, 1]} : vector<4x128xf32> to vector<4x32xf32>
    %386 = vector.extract_strided_slice %383 {offsets = [0, 64], sizes = [4, 32], strides = [1, 1]} : vector<4x128xf32> to vector<4x32xf32>
    %387 = vector.extract_strided_slice %383 {offsets = [0, 96], sizes = [4, 32], strides = [1, 1]} : vector<4x128xf32> to vector<4x32xf32>
    %388 = arith.mulf %385, %362 : vector<4x32xf32>
    %389 = arith.mulf %384, %386 : vector<4x32xf32>
    %390 = arith.addf %388, %389 : vector<4x32xf32>
    %391 = math.tanh %390 : vector<4x32xf32>
    %392 = arith.mulf %387, %391 : vector<4x32xf32>
    %393 = vector.broadcast %c4_i32_114 : i32 to vector<4x1xi32>
    %394 = arith.cmpi eq, %393, %8 : vector<4x1xi32>
    %395 = vector.shape_cast %394 : vector<4x1xi1> to vector<4x1xi1>
    %396 = vector.broadcast %395 : vector<4x1xi1> to vector<4x32xi1>
    %397 = arith.select %396, %392, %369 : vector<4x32xi1>, vector<4x32xf32>
    %c5_i32_121 = arith.constant 5 : i32
    %398 = arith.index_cast %c5_i32_121 : i32 to index
    %c0_122 = arith.constant 0 : index
    %c0_123 = arith.constant 0 : index
    %399 = vector.load %arg12[%398, %c0_122, %c0_123] : memref<8x4x128xf32, #tpu.memory_space<vmem>>, vector<1x4x128xf32>
    %400 = vector.shape_cast %399 : vector<1x4x128xf32> to vector<4x128xf32>
    %cst_124 = arith.constant dense<0.000000e+00> : vector<4x128xf32>
    %401 = tpu.matmul %392, %254, %cst_124 {dimension_numbers = #tpu.dot_dimension_numbers<[1], [0], [0], [1], [0, 0, 1, 1], [], []>} : vector<4x32xf32>, vector<32x128xf32>, vector<4x128xf32> -> vector<4x128xf32>
    %402 = arith.addf %400, %401 : vector<4x128xf32>
    %cst_125 = arith.constant 5.000000e-01 : f32
    %403 = vector.broadcast %cst_125 : f32 to vector<4x128xf32>
    %404 = arith.mulf %403, %402 : vector<4x128xf32>
    %405 = arith.select %5, %402, %404 : vector<4x128xi1>, vector<4x128xf32>
    %406 = math.tanh %405 : vector<4x128xf32>
    %cst_126 = arith.constant 5.000000e-01 : f32
    %407 = vector.broadcast %cst_126 : f32 to vector<4x128xf32>
    %408 = arith.mulf %407, %406 : vector<4x128xf32>
    %cst_127 = arith.constant 5.000000e-01 : f32
    %409 = vector.broadcast %cst_127 : f32 to vector<4x128xf32>
    %410 = arith.addf %408, %409 : vector<4x128xf32>
    %411 = arith.select %5, %406, %410 : vector<4x128xi1>, vector<4x128xf32>
    %412 = vector.extract_strided_slice %411 {offsets = [0, 0], sizes = [4, 32], strides = [1, 1]} : vector<4x128xf32> to vector<4x32xf32>
    %413 = vector.extract_strided_slice %411 {offsets = [0, 32], sizes = [4, 32], strides = [1, 1]} : vector<4x128xf32> to vector<4x32xf32>
    %414 = vector.extract_strided_slice %411 {offsets = [0, 64], sizes = [4, 32], strides = [1, 1]} : vector<4x128xf32> to vector<4x32xf32>
    %415 = vector.extract_strided_slice %411 {offsets = [0, 96], sizes = [4, 32], strides = [1, 1]} : vector<4x128xf32> to vector<4x32xf32>
    %416 = arith.mulf %413, %390 : vector<4x32xf32>
    %417 = arith.mulf %412, %414 : vector<4x32xf32>
    %418 = arith.addf %416, %417 : vector<4x32xf32>
    %419 = math.tanh %418 : vector<4x32xf32>
    %420 = arith.mulf %415, %419 : vector<4x32xf32>
    %421 = vector.broadcast %c5_i32_121 : i32 to vector<4x1xi32>
    %422 = arith.cmpi eq, %421, %8 : vector<4x1xi32>
    %423 = vector.shape_cast %422 : vector<4x1xi1> to vector<4x1xi1>
    %424 = vector.broadcast %423 : vector<4x1xi1> to vector<4x32xi1>
    %425 = arith.select %424, %420, %397 : vector<4x32xi1>, vector<4x32xf32>
    %c6_i32_128 = arith.constant 6 : i32
    %426 = arith.index_cast %c6_i32_128 : i32 to index
    %c0_129 = arith.constant 0 : index
    %c0_130 = arith.constant 0 : index
    %427 = vector.load %arg12[%426, %c0_129, %c0_130] : memref<8x4x128xf32, #tpu.memory_space<vmem>>, vector<1x4x128xf32>
    %428 = vector.shape_cast %427 : vector<1x4x128xf32> to vector<4x128xf32>
    %cst_131 = arith.constant dense<0.000000e+00> : vector<4x128xf32>
    %429 = tpu.matmul %420, %254, %cst_131 {dimension_numbers = #tpu.dot_dimension_numbers<[1], [0], [0], [1], [0, 0, 1, 1], [], []>} : vector<4x32xf32>, vector<32x128xf32>, vector<4x128xf32> -> vector<4x128xf32>
    %430 = arith.addf %428, %429 : vector<4x128xf32>
    %cst_132 = arith.constant 5.000000e-01 : f32
    %431 = vector.broadcast %cst_132 : f32 to vector<4x128xf32>
    %432 = arith.mulf %431, %430 : vector<4x128xf32>
    %433 = arith.select %5, %430, %432 : vector<4x128xi1>, vector<4x128xf32>
    %434 = math.tanh %433 : vector<4x128xf32>
    %cst_133 = arith.constant 5.000000e-01 : f32
    %435 = vector.broadcast %cst_133 : f32 to vector<4x128xf32>
    %436 = arith.mulf %435, %434 : vector<4x128xf32>
    %cst_134 = arith.constant 5.000000e-01 : f32
    %437 = vector.broadcast %cst_134 : f32 to vector<4x128xf32>
    %438 = arith.addf %436, %437 : vector<4x128xf32>
    %439 = arith.select %5, %434, %438 : vector<4x128xi1>, vector<4x128xf32>
    %440 = vector.extract_strided_slice %439 {offsets = [0, 0], sizes = [4, 32], strides = [1, 1]} : vector<4x128xf32> to vector<4x32xf32>
    %441 = vector.extract_strided_slice %439 {offsets = [0, 32], sizes = [4, 32], strides = [1, 1]} : vector<4x128xf32> to vector<4x32xf32>
    %442 = vector.extract_strided_slice %439 {offsets = [0, 64], sizes = [4, 32], strides = [1, 1]} : vector<4x128xf32> to vector<4x32xf32>
    %443 = vector.extract_strided_slice %439 {offsets = [0, 96], sizes = [4, 32], strides = [1, 1]} : vector<4x128xf32> to vector<4x32xf32>
    %444 = arith.mulf %441, %418 : vector<4x32xf32>
    %445 = arith.mulf %440, %442 : vector<4x32xf32>
    %446 = arith.addf %444, %445 : vector<4x32xf32>
    %447 = math.tanh %446 : vector<4x32xf32>
    %448 = arith.mulf %443, %447 : vector<4x32xf32>
    %449 = vector.broadcast %c6_i32_128 : i32 to vector<4x1xi32>
    %450 = arith.cmpi eq, %449, %8 : vector<4x1xi32>
    %451 = vector.shape_cast %450 : vector<4x1xi1> to vector<4x1xi1>
    %452 = vector.broadcast %451 : vector<4x1xi1> to vector<4x32xi1>
    %453 = arith.select %452, %448, %425 : vector<4x32xi1>, vector<4x32xf32>
    %c7_i32_135 = arith.constant 7 : i32
    %454 = arith.index_cast %c7_i32_135 : i32 to index
    %c0_136 = arith.constant 0 : index
    %c0_137 = arith.constant 0 : index
    %455 = vector.load %arg12[%454, %c0_136, %c0_137] : memref<8x4x128xf32, #tpu.memory_space<vmem>>, vector<1x4x128xf32>
    %456 = vector.shape_cast %455 : vector<1x4x128xf32> to vector<4x128xf32>
    %cst_138 = arith.constant dense<0.000000e+00> : vector<4x128xf32>
    %457 = tpu.matmul %448, %254, %cst_138 {dimension_numbers = #tpu.dot_dimension_numbers<[1], [0], [0], [1], [0, 0, 1, 1], [], []>} : vector<4x32xf32>, vector<32x128xf32>, vector<4x128xf32> -> vector<4x128xf32>
    %458 = arith.addf %456, %457 : vector<4x128xf32>
    %cst_139 = arith.constant 5.000000e-01 : f32
    %459 = vector.broadcast %cst_139 : f32 to vector<4x128xf32>
    %460 = arith.mulf %459, %458 : vector<4x128xf32>
    %461 = arith.select %5, %458, %460 : vector<4x128xi1>, vector<4x128xf32>
    %462 = math.tanh %461 : vector<4x128xf32>
    %cst_140 = arith.constant 5.000000e-01 : f32
    %463 = vector.broadcast %cst_140 : f32 to vector<4x128xf32>
    %464 = arith.mulf %463, %462 : vector<4x128xf32>
    %cst_141 = arith.constant 5.000000e-01 : f32
    %465 = vector.broadcast %cst_141 : f32 to vector<4x128xf32>
    %466 = arith.addf %464, %465 : vector<4x128xf32>
    %467 = arith.select %5, %462, %466 : vector<4x128xi1>, vector<4x128xf32>
    %468 = vector.extract_strided_slice %467 {offsets = [0, 0], sizes = [4, 32], strides = [1, 1]} : vector<4x128xf32> to vector<4x32xf32>
    %469 = vector.extract_strided_slice %467 {offsets = [0, 32], sizes = [4, 32], strides = [1, 1]} : vector<4x128xf32> to vector<4x32xf32>
    %470 = vector.extract_strided_slice %467 {offsets = [0, 64], sizes = [4, 32], strides = [1, 1]} : vector<4x128xf32> to vector<4x32xf32>
    %471 = vector.extract_strided_slice %467 {offsets = [0, 96], sizes = [4, 32], strides = [1, 1]} : vector<4x128xf32> to vector<4x32xf32>
    %472 = arith.mulf %469, %446 : vector<4x32xf32>
    %473 = arith.mulf %468, %470 : vector<4x32xf32>
    %474 = arith.addf %472, %473 : vector<4x32xf32>
    %475 = math.tanh %474 : vector<4x32xf32>
    %476 = arith.mulf %471, %475 : vector<4x32xf32>
    %477 = vector.broadcast %c7_i32_135 : i32 to vector<4x1xi32>
    %478 = arith.cmpi eq, %477, %8 : vector<4x1xi32>
    %479 = vector.shape_cast %478 : vector<4x1xi1> to vector<4x1xi1>
    %480 = vector.broadcast %479 : vector<4x1xi1> to vector<4x32xi1>
    %481 = arith.select %480, %476, %453 : vector<4x32xi1>, vector<4x32xf32>
    %c8_i32_142 = arith.constant 8 : i32
    %c0_143 = arith.constant 0 : index
    %c0_144 = arith.constant 0 : index
    %482 = vector.load %arg10[%c0_143, %c0_144] : memref<4x32xf32, #tpu.memory_space<vmem>>, vector<4x32xf32>
    tpu.vector_store %arg10[%c0_143, %c0_144], %481 {strides = array<i32>} : memref<4x32xf32, #tpu.memory_space<vmem>>, vector<4x32xf32>,
    %c0_145 = arith.constant 0 : index
    %c0_146 = arith.constant 0 : index
    %483 = vector.load %arg7[%c0_145, %c0_146] : memref<32x2xf32, #tpu.memory_space<vmem>>, vector<32x2xf32>
    %cst_147 = arith.constant dense<0.000000e+00> : vector<4x2xf32>
    %484 = tpu.matmul %481, %483, %cst_147 {dimension_numbers = #tpu.dot_dimension_numbers<[1], [0], [0], [1], [0, 0, 1, 1], [], []>} : vector<4x32xf32>, vector<32x2xf32>, vector<4x2xf32> -> vector<4x2xf32>
    %c0_148 = arith.constant 0 : index
    %c0_149 = arith.constant 0 : index
    %485 = vector.load %arg2[%c0_148, %c0_149] : memref<4x26xf32, #tpu.memory_space<vmem>>, vector<4x26xf32>
    %c0_150 = arith.constant 0 : index
    %c0_151 = arith.constant 0 : index
    %486 = vector.load %arg8[%c0_150, %c0_151] : memref<26x2xf32, #tpu.memory_space<vmem>>, vector<26x2xf32>
    %cst_152 = arith.constant dense<0.000000e+00> : vector<4x2xf32>
    %487 = tpu.matmul %485, %486, %cst_152 {dimension_numbers = #tpu.dot_dimension_numbers<[1], [0], [0], [1], [0, 0, 1, 1], [], []>} : vector<4x26xf32>, vector<26x2xf32>, vector<4x2xf32> -> vector<4x2xf32>
    %488 = arith.addf %484, %487 : vector<4x2xf32>
    %c0_153 = arith.constant 0 : index
    %c0_154 = arith.constant 0 : index
    %489 = vector.load %arg9[%c0_153, %c0_154] : memref<1x2xf32, #tpu.memory_space<vmem>>, vector<1x2xf32>
    %490 = vector.broadcast %489 : vector<1x2xf32> to vector<4x2xf32>
    %491 = arith.addf %488, %490 : vector<4x2xf32>
    %c0_155 = arith.constant 0 : index
    %c0_156 = arith.constant 0 : index
    %492 = vector.load %arg11[%c0_155, %c0_156] : memref<4x2xf32, #tpu.memory_space<vmem>>, vector<4x2xf32>
    tpu.vector_store %arg11[%c0_155, %c0_156], %491 {strides = array<i32>} : memref<4x2xf32, #tpu.memory_space<vmem>>, vector<4x2xf32>,
    return
  }
}

</mosaic_0001>

<llo_original>
// kernel: shortcut_lstm_forward.1
$region0: #{shortcut_lstm_forward.1}
  #allocation0 [shape = 'u32[]', space=smem, size = 0x4, offset = 0x4, fixed_abs, tag = 'smem constant byte address 0x4 - core index']
  #allocation1 [shape = 'u32[144,128]{1,0:T(1,128)}', space=vmem, size = 0x12000, scoped, tag = 'internal scratch']
  #allocation2 [shape = 'f32[8,4,128]{2,1,0:T(4,128)}', space=vmem, size = 0x4000, scoped, tag = 'scratch operand']
  %s0 = inlined_call_operand.vmem [shape: f32[8,4,128], index: 0, kind: input, shape index: {}]
  %s1 = inlined_call_operand.vmem [shape: s32[4,1], index: 1, kind: input, shape index: {}]
  %s2 = inlined_call_operand.vmem [shape: f32[4,26], index: 2, kind: input, shape index: {}]
  %s3 = inlined_call_operand.vmem [shape: f32[32,128], index: 3, kind: input, shape index: {}]
  %s4 = inlined_call_operand.vmem [shape: f32[32,128], index: 4, kind: input, shape index: {}]
  %s5 = inlined_call_operand.vmem [shape: f32[32,128], index: 5, kind: input, shape index: {}]
  %s6 = inlined_call_operand.vmem [shape: f32[1,128], index: 6, kind: input, shape index: {}]
  %s7 = inlined_call_operand.vmem [shape: f32[32,2], index: 7, kind: input, shape index: {}]
  %s8 = inlined_call_operand.vmem [shape: f32[26,2], index: 8, kind: input, shape index: {}]
  %s9 = inlined_call_operand.vmem [shape: f32[1,2], index: 9, kind: input, shape index: {}]
  %s10 = inlined_call_operand.hbm [shape: f32[4,32], index: 10, kind: output, shape index: {0}]
  %s11 = inlined_call_operand.vmem [shape: f32[4,2], index: 11, kind: output, shape index: {1}]
  %12 = xla_tuple %s10, %s11
  %s13 = sld [smem:[#allocation0]]
  $region58: #{shortcut_lstm_forward.1} parent=0
    _
  %s15 = ssub.s32 1, %s13
  %s16 = scalar_select 0, %s15, %s13
  $region1: #{shortcut_lstm_forward.1} parent=0
    #allocation3 [shape = 'u8[2048]{0}', space=vmem, size = 0x800, scoped, tag = 'output window, operand 0, single buffered']
    #allocation4 [shape = 's32[1]{0}', space=sflag, size = 0x4, scoped, tag = 'scoped memory for shortcut_lstm_forward.1']
    %17 = vsyncpa [#allocation4], 0
    // Predicated region
    $region2: #{shortcut_lstm_forward.1} parent=1 // pred_check
      _
    $region3: #{shortcut_lstm_forward.1} parent=1 // pred_check_branch
      %19 = sbr.rel (0) target = $region5
    $region4: #{shortcut_lstm_forward.1} parent=1 // pred_region
      _
    $region5: #{shortcut_lstm_forward.1} parent=1 // pred_fallthru
      _
    // Predicated region
    $region6: #{shortcut_lstm_forward.1} parent=1 // pred_check
      _
    $region7: #{shortcut_lstm_forward.1} parent=1 // pred_check_branch
      %21 = sbr.rel (0) target = $region9
    $region8: #{shortcut_lstm_forward.1} parent=1 // pred_region
      _
    $region9: #{shortcut_lstm_forward.1} parent=1 // pred_fallthru
      _
    // Predicated region
    $region10: #{shortcut_lstm_forward.1} parent=1 // pred_check
      _
    $region11: #{shortcut_lstm_forward.1} parent=1 // pred_check_branch
      %23 = sbr.rel (0) target = $region13
    $region12: #{shortcut_lstm_forward.1} parent=1 // pred_region
      _
    $region13: #{shortcut_lstm_forward.1} parent=1 // pred_fallthru
      _
    // Predicated region
    $region14: #{shortcut_lstm_forward.1} parent=1 // pred_check
      _
    $region15: #{shortcut_lstm_forward.1} parent=1 // pred_check_branch
      %25 = sbr.rel (0) target = $region17
    $region16: #{shortcut_lstm_forward.1} parent=1 // pred_region
      _
    $region17: #{shortcut_lstm_forward.1} parent=1 // pred_fallthru
      _
    // Predicated region
    $region18: #{shortcut_lstm_forward.1} parent=1 // pred_check
      _
    $region19: #{shortcut_lstm_forward.1} parent=1 // pred_check_branch
      %27 = sbr.rel (0) target = $region21
    $region20: #{shortcut_lstm_forward.1} parent=1 // pred_region
      _
    $region21: #{shortcut_lstm_forward.1} parent=1 // pred_fallthru
      _
    // Predicated region
    $region22: #{shortcut_lstm_forward.1} parent=1 // pred_check
      _
    $region23: #{shortcut_lstm_forward.1} parent=1 // pred_check_branch
      %29 = sbr.rel (0) target = $region25
    $region24: #{shortcut_lstm_forward.1} parent=1 // pred_region
      _
    $region25: #{shortcut_lstm_forward.1} parent=1 // pred_fallthru
      _
    // Predicated region
    $region26: #{shortcut_lstm_forward.1} parent=1 // pred_check
      _
    $region27: #{shortcut_lstm_forward.1} parent=1 // pred_check_branch
      %31 = sbr.rel (0) target = $region29
    $region28: #{shortcut_lstm_forward.1} parent=1 // pred_region
      _
    $region29: #{shortcut_lstm_forward.1} parent=1 // pred_fallthru
      _
    // Predicated region
    $region30: #{shortcut_lstm_forward.1} parent=1 // pred_check
      _
    $region31: #{shortcut_lstm_forward.1} parent=1 // pred_check_branch
      %33 = sbr.rel (0) target = $region33
    $region32: #{shortcut_lstm_forward.1} parent=1 // pred_region
      _
    $region33: #{shortcut_lstm_forward.1} parent=1 // pred_fallthru
      _
    // Predicated region
    $region34: #{shortcut_lstm_forward.1} parent=1 // pred_check
      _
    $region35: #{shortcut_lstm_forward.1} parent=1 // pred_check_branch
      %35 = sbr.rel (0) target = $region37
    $region36: #{shortcut_lstm_forward.1} parent=1 // pred_region
      _
    $region37: #{shortcut_lstm_forward.1} parent=1 // pred_fallthru
      _
    // Predicated region
    $region38: #{shortcut_lstm_forward.1} parent=1 // pred_check
      _
    $region39: #{shortcut_lstm_forward.1} parent=1 // pred_check_branch
      %37 = sbr.rel (0) target = $region41
    $region40: #{shortcut_lstm_forward.1} parent=1 // pred_region
      _
    $region41: #{shortcut_lstm_forward.1} parent=1 // pred_fallthru
      _
    %v38 = vlaneseq
    %v39 = vand.u32 %v38, 127
    %vm40 = vcmp.ge.s32.totalorder %v39, 64
    %vm41 = vcmp.lt.s32.totalorder %v39, 96
    %vm42 = vmand %vm40, %vm41
    %v43 = vld [vmem:[%s1] sm:$0xf]
    %v44 = vsub.s32 %v43, 1
    %v45 = vld [vmem:[%s3] sm:$0xff]
    %v46 = vld [vmem:[%s3 + $0x8] sm:$0xff]
    %v47 = vld [vmem:[%s3 + $0x10] sm:$0xff]
    %v48 = vld [vmem:[%s3 + $0x18] sm:$0xff]
    %v49 = vld [vmem:[%s4] sm:$0xff]
    %v50 = vld [vmem:[%s4 + $0x8] sm:$0xff]
    %v51 = vld [vmem:[%s4 + $0x10] sm:$0xff]
    %v52 = vld [vmem:[%s4 + $0x18] sm:$0xff]
    %v53 = vld [vmem:[%s6] sm:$0x1]
    %v54 = vld [vmem:[%s0] sm:$0xf]
    %vm55 = vcmask 261120
    %v57 = vsel %vm55, 0.0, 0
    %59 = vmatprep.subr.mxu0 0.0
    %60 = vmatpush1.msra.mxu0 %v45
    %61 = vmatprep.subr.mxu0 0.0
    %62 = vmatpush1.msra.mxu0 %v46
    %63 = vmatprep.subr.mxu0 0.0
    %64 = vmatpush1.msra.mxu0 %v47
    %65 = vmatprep.subr.mxu0 0.0
    %66 = vmatpush1.msra.mxu0 %v48
    %67 = vmatprep.subr.mxu0 0.0
    %68 = vmatpush1.msra.mxu0 0.0
    %69 = vmatprep.subr.mxu0 0.0
    %70 = vmatpush1.msra.mxu0 0.0
    %71 = vmatprep.subr.mxu0 0.0
    %72 = vmatpush1.msra.mxu0 0.0
    %73 = vmatprep.subr.mxu0 0.0
    %74 = vmatpush1.msra.mxu0 0.0
    %75 = vmatprep.subr.mxu0 0.0
    %76 = vmatpush1.msra.mxu0 0.0
    %77 = vmatprep.subr.mxu0 0.0
    %78 = vmatpush1.msra.mxu0 0.0
    %79 = vmatprep.subr.mxu0 0.0
    %80 = vmatpush1.msra.mxu0 0.0
    %81 = vmatprep.subr.mxu0 0.0
    %82 = vmatpush1.msra.mxu0 0.0
    %83 = vmatprep.subr.mxu0 0.0
    %84 = vmatpush1.msra.mxu0 0.0
    %85 = vmatprep.subr.mxu0 0.0
    %86 = vmatpush1.msra.mxu0 0.0
    %87 = vmatprep.subr.mxu0 0.0
    %88 = vmatpush1.msra.mxu0 0.0
    %89 = vmatprep.subr.mxu0 0.0
    %90 = vmatpush1.msra.mxu0 0.0
    %91 = vmatprep.subr.mxu0 0.0
    %92 = vmatpush1.msra.mxu0 0.0
    %93 = vmatprep.subr.mxu0 0.0
    %94 = vmatpush1.msra.mxu0 0.0
    %95 = vmatprep.subr.mxu0 0.0
    %96 = vmatpush1.msra.mxu0 0.0
    %97 = vmatprep.subr.mxu0 0.0
    %98 = vmatpush1.msra.mxu0 0.0
    %99 = vmatprep.subr.mxu0 0.0
    %100 = vmatpush1.msra.mxu0 0.0
    %101 = vmatprep.subr.mxu0 0.0
    %102 = vmatpush1.msra.mxu0 0.0
    %103 = vmatprep.subr.mxu0 0.0
    %104 = vmatpush1.msra.mxu0 0.0
    %105 = vmatprep.subr.mxu0 0.0
    %106 = vmatpush1.msra.mxu0 0.0
    %107 = vmatprep.subr.mxu0 0.0
    %108 = vmatpush1.msra.mxu0 0.0
    %109 = vmatprep.subr.mxu0 0.0
    %110 = vmatpush1.msra.mxu0 0.0
    %111 = vmatprep.subr.mxu0 0.0
    %112 = vmatpush1.msra.mxu0 0.0
    %113 = vmatprep.subr.mxu0 0.0
    %114 = vmatpush1.msra.mxu0 0.0
    %115 = vmatprep.subr.mxu0 0.0
    %116 = vmatpush1.msra.mxu0 0.0
    %117 = vmatprep.subr.mxu0 0.0
    %118 = vmatpush1.msra.mxu0 0.0
    %119 = vmatprep.subr.mxu0 0.0
    %120 = vmatpush1.msra.mxu0 0.0
    %121 = vmatprep.subr.mxu0 0.0
    %122 = vmatpush1.msra.mxu0 0.0
    %123 = vmatprep.mubr.f32.mxu0 0.0
    %124 = vmatmul.mubr.f32.gmra.mrb[0].mxu0 %v57
    %v125 = vpop.f32.mrb[0].mxu0
    %v126 = vadd.f32 0.0, %v125
    %v127 = vpop.f32.mrb[0].mxu0
    %128 = vdwg.mxu0
    %v129 = vadd.f32 %v54, %v126
    %v130 = vmul.f32 %v129, 0.5
    %v131 = vsel %vm42, %v129, %v130
    %v132 = vtanh.pop %v131
    %v133 = vmul.f32 %v132, 0.5
    %v134 = vadd.f32 %v133, 0.5
    %v135 = vsel %vm42, %v132, %v134
    %v136 = vmul.f32 %v135, 0.0
    %138 = vrot.lane.b32.xlu0 %v135, 64
    %v139 = vpop.permute.xlu0 %138
    %v141 = vmul.f32 %v135, %v139
    %143 = vrot.lane.b32.xlu0 %v141, 32
    %v144 = vpop.permute.xlu0 %143
    %v146 = vadd.f32 %v136, %v144
    %v147 = vtanh.pop %v146
    %149 = vrot.lane.b32.xlu0 %v147, 64
    %v150 = vpop.permute.xlu0 %149
    %v152 = vmul.f32 %v135, %v150
    %v154 = vlaneseq
    %v155 = vshrl.u32 %v154, 7
    %v156 = vsub.s32 0, %v155
    %v157 = vrot.slane %v53, %v156
    %160 = vrot.lane.b32.xlu0 %v152, 32
    %v161 = vpop.permute.xlu0 %160
    %v162 = vsel %vm55, %v161, 0
    %164 = vmatprep.subr.mxu0 0.0
    %165 = vmatpush1.msra.mxu0 %v49
    %166 = vmatprep.subr.mxu0 0.0
    %167 = vmatpush1.msra.mxu0 %v50
    %168 = vmatprep.subr.mxu0 0.0
    %169 = vmatpush1.msra.mxu0 %v51
    %170 = vmatprep.subr.mxu0 0.0
    %171 = vmatpush1.msra.mxu0 %v52
    %172 = vmatprep.subr.mxu0 0.0
    %173 = vmatpush1.msra.mxu0 0.0
    %174 = vmatprep.subr.mxu0 0.0
    %175 = vmatpush1.msra.mxu0 0.0
    %176 = vmatprep.subr.mxu0 0.0
    %177 = vmatpush1.msra.mxu0 0.0
    %178 = vmatprep.subr.mxu0 0.0
    %179 = vmatpush1.msra.mxu0 0.0
    %180 = vmatprep.subr.mxu0 0.0
    %181 = vmatpush1.msra.mxu0 0.0
    %182 = vmatprep.subr.mxu0 0.0
    %183 = vmatpush1.msra.mxu0 0.0
    %184 = vmatprep.subr.mxu0 0.0
    %185 = vmatpush1.msra.mxu0 0.0
    %186 = vmatprep.subr.mxu0 0.0
    %187 = vmatpush1.msra.mxu0 0.0
    %188 = vmatprep.subr.mxu0 0.0
    %189 = vmatpush1.msra.mxu0 0.0
    %190 = vmatprep.subr.mxu0 0.0
    %191 = vmatpush1.msra.mxu0 0.0
    %192 = vmatprep.subr.mxu0 0.0
    %193 = vmatpush1.msra.mxu0 0.0
    %194 = vmatprep.subr.mxu0 0.0
    %195 = vmatpush1.msra.mxu0 0.0
    %196 = vmatprep.subr.mxu0 0.0
    %197 = vmatpush1.msra.mxu0 0.0
    %198 = vmatprep.subr.mxu0 0.0
    %199 = vmatpush1.msra.mxu0 0.0
    %200 = vmatprep.subr.mxu0 0.0
    %201 = vmatpush1.msra.mxu0 0.0
    %202 = vmatprep.subr.mxu0 0.0
    %203 = vmatpush1.msra.mxu0 0.0
    %204 = vmatprep.subr.mxu0 0.0
    %205 = vmatpush1.msra.mxu0 0.0
    %206 = vmatprep.subr.mxu0 0.0
    %207 = vmatpush1.msra.mxu0 0.0
    %208 = vmatprep.subr.mxu0 0.0
    %209 = vmatpush1.msra.mxu0 0.0
    %210 = vmatprep.subr.mxu0 0.0
    %211 = vmatpush1.msra.mxu0 0.0
    %212 = vmatprep.subr.mxu0 0.0
    %213 = vmatpush1.msra.mxu0 0.0
    %214 = vmatprep.subr.mxu0 0.0
    %215 = vmatpush1.msra.mxu0 0.0
    %216 = vmatprep.subr.mxu0 0.0
    %217 = vmatpush1.msra.mxu0 0.0
    %218 = vmatprep.subr.mxu0 0.0
    %219 = vmatpush1.msra.mxu0 0.0
    %220 = vmatprep.subr.mxu0 0.0
    %221 = vmatpush1.msra.mxu0 0.0
    %222 = vmatprep.subr.mxu0 0.0
    %223 = vmatpush1.msra.mxu0 0.0
    %224 = vmatprep.subr.mxu0 0.0
    %225 = vmatpush1.msra.mxu0 0.0
    %226 = vmatprep.subr.mxu0 0.0
    %227 = vmatpush1.msra.mxu0 0.0
    %228 = vmatprep.mubr.f32.mxu0 0.0
    %229 = vmatmul.mubr.f32.gmra.mrb[0].mxu0 %v162
    %v230 = vpop.f32.mrb[0].mxu0
    %v231 = vadd.f32 %v157, %v230
    %v232 = vpop.f32.mrb[0].mxu0
    %233 = vdwg.mxu0
    %234 = vst [vmem:[#allocation2] sm:$0xf] %v231
    %s235 = scalar_lea.vmem %s0, 4
    %v236 = vld [vmem:[%s235] sm:$0xf]
    %237 = vmatprep.subr.mxu0 0.0
    %238 = vmatpush1.msra.mxu0 %v45
    %239 = vmatprep.subr.mxu0 0.0
    %240 = vmatpush1.msra.mxu0 %v46
    %241 = vmatprep.subr.mxu0 0.0
    %242 = vmatpush1.msra.mxu0 %v47
    %243 = vmatprep.subr.mxu0 0.0
    %244 = vmatpush1.msra.mxu0 %v48
    %245 = vmatprep.subr.mxu0 0.0
    %246 = vmatpush1.msra.mxu0 0.0
    %247 = vmatprep.subr.mxu0 0.0
    %248 = vmatpush1.msra.mxu0 0.0
    %249 = vmatprep.subr.mxu0 0.0
    %250 = vmatpush1.msra.mxu0 0.0
    %251 = vmatprep.subr.mxu0 0.0
    %252 = vmatpush1.msra.mxu0 0.0
    %253 = vmatprep.subr.mxu0 0.0
    %254 = vmatpush1.msra.mxu0 0.0
    %255 = vmatprep.subr.mxu0 0.0
    %256 = vmatpush1.msra.mxu0 0.0
    %257 = vmatprep.subr.mxu0 0.0
    %258 = vmatpush1.msra.mxu0 0.0
    %259 = vmatprep.subr.mxu0 0.0
    %260 = vmatpush1.msra.mxu0 0.0
    %261 = vmatprep.subr.mxu0 0.0
    %262 = vmatpush1.msra.mxu0 0.0
    %263 = vmatprep.subr.mxu0 0.0
    %264 = vmatpush1.msra.mxu0 0.0
    %265 = vmatprep.subr.mxu0 0.0
    %266 = vmatpush1.msra.mxu0 0.0
    %267 = vmatprep.subr.mxu0 0.0
    %268 = vmatpush1.msra.mxu0 0.0
    %269 = vmatprep.subr.mxu0 0.0
    %270 = vmatpush1.msra.mxu0 0.0
    %271 = vmatprep.subr.mxu0 0.0
    %272 = vmatpush1.msra.mxu0 0.0
    %273 = vmatprep.subr.mxu0 0.0
    %274 = vmatpush1.msra.mxu0 0.0
    %275 = vmatprep.subr.mxu0 0.0
    %276 = vmatpush1.msra.mxu0 0.0
    %277 = vmatprep.subr.mxu0 0.0
    %278 = vmatpush1.msra.mxu0 0.0
    %279 = vmatprep.subr.mxu0 0.0
    %280 = vmatpush1.msra.mxu0 0.0
    %281 = vmatprep.subr.mxu0 0.0
    %282 = vmatpush1.msra.mxu0 0.0
    %283 = vmatprep.subr.mxu0 0.0
    %284 = vmatpush1.msra.mxu0 0.0
    %285 = vmatprep.subr.mxu0 0.0
    %286 = vmatpush1.msra.mxu0 0.0
    %287 = vmatprep.subr.mxu0 0.0
    %288 = vmatpush1.msra.mxu0 0.0
    %289 = vmatprep.subr.mxu0 0.0
    %290 = vmatpush1.msra.mxu0 0.0
    %291 = vmatprep.subr.mxu0 0.0
    %292 = vmatpush1.msra.mxu0 0.0
    %293 = vmatprep.subr.mxu0 0.0
    %294 = vmatpush1.msra.mxu0 0.0
    %295 = vmatprep.subr.mxu0 0.0
    %296 = vmatpush1.msra.mxu0 0.0
    %297 = vmatprep.subr.mxu0 0.0
    %298 = vmatpush1.msra.mxu0 0.0
    %299 = vmatprep.subr.mxu0 0.0
    %300 = vmatpush1.msra.mxu0 0.0
    %301 = vmatprep.mubr.f32.mxu0 0.0
    %302 = vmatmul.mubr.f32.gmra.mrb[0].mxu0 %v162
    %v303 = vpop.f32.mrb[0].mxu0
    %v304 = vadd.f32 0.0, %v303
    %v305 = vpop.f32.mrb[0].mxu0
    %306 = vdwg.mxu0
    %v307 = vadd.f32 %v236, %v304
    %v308 = vmul.f32 %v307, 0.5
    %v309 = vsel %vm42, %v307, %v308
    %v310 = vtanh.pop %v309
    %v311 = vmul.f32 %v310, 0.5
    %v312 = vadd.f32 %v311, 0.5
    %v313 = vsel %vm42, %v310, %v312
    %v314 = vmul.f32 %v313, %v146
    %316 = vrot.lane.b32.xlu0 %v313, 64
    %v317 = vpop.permute.xlu0 %316
    %v319 = vmul.f32 %v313, %v317
    %321 = vrot.lane.b32.xlu0 %v319, 32
    %v322 = vpop.permute.xlu0 %321
    %v324 = vadd.f32 %v314, %v322
    %v325 = vtanh.pop %v324
    %327 = vrot.lane.b32.xlu0 %v325, 64
    %v328 = vpop.permute.xlu0 %327
    %v330 = vmul.f32 %v313, %v328
    %332 = vrot.lane.b32.xlu0 %v330, 32
    %v333 = vpop.permute.xlu0 %332
    %v334 = vsel %vm55, %v333, 0
    %336 = vmatprep.subr.mxu0 0.0
    %337 = vmatpush1.msra.mxu0 %v49
    %338 = vmatprep.subr.mxu0 0.0
    %339 = vmatpush1.msra.mxu0 %v50
    %340 = vmatprep.subr.mxu0 0.0
    %341 = vmatpush1.msra.mxu0 %v51
    %342 = vmatprep.subr.mxu0 0.0
    %343 = vmatpush1.msra.mxu0 %v52
    %344 = vmatprep.subr.mxu0 0.0
    %345 = vmatpush1.msra.mxu0 0.0
    %346 = vmatprep.subr.mxu0 0.0
    %347 = vmatpush1.msra.mxu0 0.0
    %348 = vmatprep.subr.mxu0 0.0
    %349 = vmatpush1.msra.mxu0 0.0
    %350 = vmatprep.subr.mxu0 0.0
    %351 = vmatpush1.msra.mxu0 0.0
    %352 = vmatprep.subr.mxu0 0.0
    %353 = vmatpush1.msra.mxu0 0.0
    %354 = vmatprep.subr.mxu0 0.0
    %355 = vmatpush1.msra.mxu0 0.0
    %356 = vmatprep.subr.mxu0 0.0
    %357 = vmatpush1.msra.mxu0 0.0
    %358 = vmatprep.subr.mxu0 0.0
    %359 = vmatpush1.msra.mxu0 0.0
    %360 = vmatprep.subr.mxu0 0.0
    %361 = vmatpush1.msra.mxu0 0.0
    %362 = vmatprep.subr.mxu0 0.0
    %363 = vmatpush1.msra.mxu0 0.0
    %364 = vmatprep.subr.mxu0 0.0
    %365 = vmatpush1.msra.mxu0 0.0
    %366 = vmatprep.subr.mxu0 0.0
    %367 = vmatpush1.msra.mxu0 0.0
    %368 = vmatprep.subr.mxu0 0.0
    %369 = vmatpush1.msra.mxu0 0.0
    %370 = vmatprep.subr.mxu0 0.0
    %371 = vmatpush1.msra.mxu0 0.0
    %372 = vmatprep.subr.mxu0 0.0
    %373 = vmatpush1.msra.mxu0 0.0
    %374 = vmatprep.subr.mxu0 0.0
    %375 = vmatpush1.msra.mxu0 0.0
    %376 = vmatprep.subr.mxu0 0.0
    %377 = vmatpush1.msra.mxu0 0.0
    %378 = vmatprep.subr.mxu0 0.0
    %379 = vmatpush1.msra.mxu0 0.0
    %380 = vmatprep.subr.mxu0 0.0
    %381 = vmatpush1.msra.mxu0 0.0
    %382 = vmatprep.subr.mxu0 0.0
    %383 = vmatpush1.msra.mxu0 0.0
    %384 = vmatprep.subr.mxu0 0.0
    %385 = vmatpush1.msra.mxu0 0.0
    %386 = vmatprep.subr.mxu0 0.0
    %387 = vmatpush1.msra.mxu0 0.0
    %388 = vmatprep.subr.mxu0 0.0
    %389 = vmatpush1.msra.mxu0 0.0
    %390 = vmatprep.subr.mxu0 0.0
    %391 = vmatpush1.msra.mxu0 0.0
    %392 = vmatprep.subr.mxu0 0.0
    %393 = vmatpush1.msra.mxu0 0.0
    %394 = vmatprep.subr.mxu0 0.0
    %395 = vmatpush1.msra.mxu0 0.0
    %396 = vmatprep.subr.mxu0 0.0
    %397 = vmatpush1.msra.mxu0 0.0
    %398 = vmatprep.subr.mxu0 0.0
    %399 = vmatpush1.msra.mxu0 0.0
    %400 = vmatprep.mubr.f32.mxu0 0.0
    %401 = vmatmul.mubr.f32.gmra.mrb[0].mxu0 %v334
    %v402 = vpop.f32.mrb[0].mxu0
    %v403 = vadd.f32 %v157, %v402
    %v404 = vpop.f32.mrb[0].mxu0
    %405 = vdwg.mxu0
    %s406 = scalar_lea.vmem [#allocation2], 4
    %407 = vst [vmem:[%s406] sm:$0xf] %v403
    %s408 = scalar_lea.vmem %s0, 8
    %v409 = vld [vmem:[%s408] sm:$0xf]
    %410 = vmatprep.subr.mxu0 0.0
    %411 = vmatpush1.msra.mxu0 %v45
    %412 = vmatprep.subr.mxu0 0.0
    %413 = vmatpush1.msra.mxu0 %v46
    %414 = vmatprep.subr.mxu0 0.0
    %415 = vmatpush1.msra.mxu0 %v47
    %416 = vmatprep.subr.mxu0 0.0
    %417 = vmatpush1.msra.mxu0 %v48
    %418 = vmatprep.subr.mxu0 0.0
    %419 = vmatpush1.msra.mxu0 0.0
    %420 = vmatprep.subr.mxu0 0.0
    %421 = vmatpush1.msra.mxu0 0.0
    %422 = vmatprep.subr.mxu0 0.0
    %423 = vmatpush1.msra.mxu0 0.0
    %424 = vmatprep.subr.mxu0 0.0
    %425 = vmatpush1.msra.mxu0 0.0
    %426 = vmatprep.subr.mxu0 0.0
    %427 = vmatpush1.msra.mxu0 0.0
    %428 = vmatprep.subr.mxu0 0.0
    %429 = vmatpush1.msra.mxu0 0.0
    %430 = vmatprep.subr.mxu0 0.0
    %431 = vmatpush1.msra.mxu0 0.0
    %432 = vmatprep.subr.mxu0 0.0
    %433 = vmatpush1.msra.mxu0 0.0
    %434 = vmatprep.subr.mxu0 0.0
    %435 = vmatpush1.msra.mxu0 0.0
    %436 = vmatprep.subr.mxu0 0.0
    %437 = vmatpush1.msra.mxu0 0.0
    %438 = vmatprep.subr.mxu0 0.0
    %439 = vmatpush1.msra.mxu0 0.0
    %440 = vmatprep.subr.mxu0 0.0
    %441 = vmatpush1.msra.mxu0 0.0
    %442 = vmatprep.subr.mxu0 0.0
    %443 = vmatpush1.msra.mxu0 0.0
    %444 = vmatprep.subr.mxu0 0.0
    %445 = vmatpush1.msra.mxu0 0.0
    %446 = vmatprep.subr.mxu0 0.0
    %447 = vmatpush1.msra.mxu0 0.0
    %448 = vmatprep.subr.mxu0 0.0
    %449 = vmatpush1.msra.mxu0 0.0
    %450 = vmatprep.subr.mxu0 0.0
    %451 = vmatpush1.msra.mxu0 0.0
    %452 = vmatprep.subr.mxu0 0.0
    %453 = vmatpush1.msra.mxu0 0.0
    %454 = vmatprep.subr.mxu0 0.0
    %455 = vmatpush1.msra.mxu0 0.0
    %456 = vmatprep.subr.mxu0 0.0
    %457 = vmatpush1.msra.mxu0 0.0
    %458 = vmatprep.subr.mxu0 0.0
    %459 = vmatpush1.msra.mxu0 0.0
    %460 = vmatprep.subr.mxu0 0.0
    %461 = vmatpush1.msra.mxu0 0.0
    %462 = vmatprep.subr.mxu0 0.0
    %463 = vmatpush1.msra.mxu0 0.0
    %464 = vmatprep.subr.mxu0 0.0
    %465 = vmatpush1.msra.mxu0 0.0
    %466 = vmatprep.subr.mxu0 0.0
    %467 = vmatpush1.msra.mxu0 0.0
    %468 = vmatprep.subr.mxu0 0.0
    %469 = vmatpush1.msra.mxu0 0.0
    %470 = vmatprep.subr.mxu0 0.0
    %471 = vmatpush1.msra.mxu0 0.0
    %472 = vmatprep.subr.mxu0 0.0
    %473 = vmatpush1.msra.mxu0 0.0
    %474 = vmatprep.mubr.f32.mxu0 0.0
    %475 = vmatmul.mubr.f32.gmra.mrb[0].mxu0 %v334
    %v476 = vpop.f32.mrb[0].mxu0
    %v477 = vadd.f32 0.0, %v476
    %v478 = vpop.f32.mrb[0].mxu0
    %479 = vdwg.mxu0
    %v480 = vadd.f32 %v409, %v477
    %v481 = vmul.f32 %v480, 0.5
    %v482 = vsel %vm42, %v480, %v481
    %v483 = vtanh.pop %v482
    %v484 = vmul.f32 %v483, 0.5
    %v485 = vadd.f32 %v484, 0.5
    %v486 = vsel %vm42, %v483, %v485
    %v487 = vmul.f32 %v486, %v324
    %489 = vrot.lane.b32.xlu0 %v486, 64
    %v490 = vpop.permute.xlu0 %489
    %v492 = vmul.f32 %v486, %v490
    %494 = vrot.lane.b32.xlu0 %v492, 32
    %v495 = vpop.permute.xlu0 %494
    %v497 = vadd.f32 %v487, %v495
    %v498 = vtanh.pop %v497
    %500 = vrot.lane.b32.xlu0 %v498, 64
    %v501 = vpop.permute.xlu0 %500
    %v503 = vmul.f32 %v486, %v501
    %505 = vrot.lane.b32.xlu0 %v503, 32
    %v506 = vpop.permute.xlu0 %505
    %v507 = vsel %vm55, %v506, 0
    %509 = vmatprep.subr.mxu0 0.0
    %510 = vmatpush1.msra.mxu0 %v49
    %511 = vmatprep.subr.mxu0 0.0
    %512 = vmatpush1.msra.mxu0 %v50
    %513 = vmatprep.subr.mxu0 0.0
    %514 = vmatpush1.msra.mxu0 %v51
    %515 = vmatprep.subr.mxu0 0.0
    %516 = vmatpush1.msra.mxu0 %v52
    %517 = vmatprep.subr.mxu0 0.0
    %518 = vmatpush1.msra.mxu0 0.0
    %519 = vmatprep.subr.mxu0 0.0
    %520 = vmatpush1.msra.mxu0 0.0
    %521 = vmatprep.subr.mxu0 0.0
    %522 = vmatpush1.msra.mxu0 0.0
    %523 = vmatprep.subr.mxu0 0.0
    %524 = vmatpush1.msra.mxu0 0.0
    %525 = vmatprep.subr.mxu0 0.0
    %526 = vmatpush1.msra.mxu0 0.0
    %527 = vmatprep.subr.mxu0 0.0
    %528 = vmatpush1.msra.mxu0 0.0
    %529 = vmatprep.subr.mxu0 0.0
    %530 = vmatpush1.msra.mxu0 0.0
    %531 = vmatprep.subr.mxu0 0.0
    %532 = vmatpush1.msra.mxu0 0.0
    %533 = vmatprep.subr.mxu0 0.0
    %534 = vmatpush1.msra.mxu0 0.0
    %535 = vmatprep.subr.mxu0 0.0
    %536 = vmatpush1.msra.mxu0 0.0
    %537 = vmatprep.subr.mxu0 0.0
    %538 = vmatpush1.msra.mxu0 0.0
    %539 = vmatprep.subr.mxu0 0.0
    %540 = vmatpush1.msra.mxu0 0.0
    %541 = vmatprep.subr.mxu0 0.0
    %542 = vmatpush1.msra.mxu0 0.0
    %543 = vmatprep.subr.mxu0 0.0
    %544 = vmatpush1.msra.mxu0 0.0
    %545 = vmatprep.subr.mxu0 0.0
    %546 = vmatpush1.msra.mxu0 0.0
    %547 = vmatprep.subr.mxu0 0.0
    %548 = vmatpush1.msra.mxu0 0.0
    %549 = vmatprep.subr.mxu0 0.0
    %550 = vmatpush1.msra.mxu0 0.0
    %551 = vmatprep.subr.mxu0 0.0
    %552 = vmatpush1.msra.mxu0 0.0
    %553 = vmatprep.subr.mxu0 0.0
    %554 = vmatpush1.msra.mxu0 0.0
    %555 = vmatprep.subr.mxu0 0.0
    %556 = vmatpush1.msra.mxu0 0.0
    %557 = vmatprep.subr.mxu0 0.0
    %558 = vmatpush1.msra.mxu0 0.0
    %559 = vmatprep.subr.mxu0 0.0
    %560 = vmatpush1.msra.mxu0 0.0
    %561 = vmatprep.subr.mxu0 0.0
    %562 = vmatpush1.msra.mxu0 0.0
    %563 = vmatprep.subr.mxu0 0.0
    %564 = vmatpush1.msra.mxu0 0.0
    %565 = vmatprep.subr.mxu0 0.0
    %566 = vmatpush1.msra.mxu0 0.0
    %567 = vmatprep.subr.mxu0 0.0
    %568 = vmatpush1.msra.mxu0 0.0
    %569 = vmatprep.subr.mxu0 0.0
    %570 = vmatpush1.msra.mxu0 0.0
    %571 = vmatprep.subr.mxu0 0.0
    %572 = vmatpush1.msra.mxu0 0.0
    %573 = vmatprep.mubr.f32.mxu0 0.0
    %574 = vmatmul.mubr.f32.gmra.mrb[0].mxu0 %v507
    %v575 = vpop.f32.mrb[0].mxu0
    %v576 = vadd.f32 %v157, %v575
    %v577 = vpop.f32.mrb[0].mxu0
    %578 = vdwg.mxu0
    %s579 = scalar_lea.vmem [#allocation2], 8
    %580 = vst [vmem:[%s579] sm:$0xf] %v576
    %s581 = scalar_lea.vmem %s0, 12
    %v582 = vld [vmem:[%s581] sm:$0xf]
    %583 = vmatprep.subr.mxu0 0.0
    %584 = vmatpush1.msra.mxu0 %v45
    %585 = vmatprep.subr.mxu0 0.0
    %586 = vmatpush1.msra.mxu0 %v46
    %587 = vmatprep.subr.mxu0 0.0
    %588 = vmatpush1.msra.mxu0 %v47
    %589 = vmatprep.subr.mxu0 0.0
    %590 = vmatpush1.msra.mxu0 %v48
    %591 = vmatprep.subr.mxu0 0.0
    %592 = vmatpush1.msra.mxu0 0.0
    %593 = vmatprep.subr.mxu0 0.0
    %594 = vmatpush1.msra.mxu0 0.0
    %595 = vmatprep.subr.mxu0 0.0
    %596 = vmatpush1.msra.mxu0 0.0
    %597 = vmatprep.subr.mxu0 0.0
    %598 = vmatpush1.msra.mxu0 0.0
    %599 = vmatprep.subr.mxu0 0.0
    %600 = vmatpush1.msra.mxu0 0.0
    %601 = vmatprep.subr.mxu0 0.0
    %602 = vmatpush1.msra.mxu0 0.0
    %603 = vmatprep.subr.mxu0 0.0
    %604 = vmatpush1.msra.mxu0 0.0
    %605 = vmatprep.subr.mxu0 0.0
    %606 = vmatpush1.msra.mxu0 0.0
    %607 = vmatprep.subr.mxu0 0.0
    %608 = vmatpush1.msra.mxu0 0.0
    %609 = vmatprep.subr.mxu0 0.0
    %610 = vmatpush1.msra.mxu0 0.0
    %611 = vmatprep.subr.mxu0 0.0
    %612 = vmatpush1.msra.mxu0 0.0
    %613 = vmatprep.subr.mxu0 0.0
    %614 = vmatpush1.msra.mxu0 0.0
    %615 = vmatprep.subr.mxu0 0.0
    %616 = vmatpush1.msra.mxu0 0.0
    %617 = vmatprep.subr.mxu0 0.0
    %618 = vmatpush1.msra.mxu0 0.0
    %619 = vmatprep.subr.mxu0 0.0
    %620 = vmatpush1.msra.mxu0 0.0
    %621 = vmatprep.subr.mxu0 0.0
    %622 = vmatpush1.msra.mxu0 0.0
    %623 = vmatprep.subr.mxu0 0.0
    %624 = vmatpush1.msra.mxu0 0.0
    %625 = vmatprep.subr.mxu0 0.0
    %626 = vmatpush1.msra.mxu0 0.0
    %627 = vmatprep.subr.mxu0 0.0
    %628 = vmatpush1.msra.mxu0 0.0
    %629 = vmatprep.subr.mxu0 0.0
    %630 = vmatpush1.msra.mxu0 0.0
    %631 = vmatprep.subr.mxu0 0.0
    %632 = vmatpush1.msra.mxu0 0.0
    %633 = vmatprep.subr.mxu0 0.0
    %634 = vmatpush1.msra.mxu0 0.0
    %635 = vmatprep.subr.mxu0 0.0
    %636 = vmatpush1.msra.mxu0 0.0
    %637 = vmatprep.subr.mxu0 0.0
    %638 = vmatpush1.msra.mxu0 0.0
    %639 = vmatprep.subr.mxu0 0.0
    %640 = vmatpush1.msra.mxu0 0.0
    %641 = vmatprep.subr.mxu0 0.0
    %642 = vmatpush1.msra.mxu0 0.0
    %643 = vmatprep.subr.mxu0 0.0
    %644 = vmatpush1.msra.mxu0 0.0
    %645 = vmatprep.subr.mxu0 0.0
    %646 = vmatpush1.msra.mxu0 0.0
    %647 = vmatprep.mubr.f32.mxu0 0.0
    %648 = vmatmul.mubr.f32.gmra.mrb[0].mxu0 %v507
    %v649 = vpop.f32.mrb[0].mxu0
    %v650 = vadd.f32 0.0, %v649
    %v651 = vpop.f32.mrb[0].mxu0
    %652 = vdwg.mxu0
    %v653 = vadd.f32 %v582, %v650
    %v654 = vmul.f32 %v653, 0.5
    %v655 = vsel %vm42, %v653, %v654
    %v656 = vtanh.pop %v655
    %v657 = vmul.f32 %v656, 0.5
    %v658 = vadd.f32 %v657, 0.5
    %v659 = vsel %vm42, %v656, %v658
    %v660 = vmul.f32 %v659, %v497
    %662 = vrot.lane.b32.xlu0 %v659, 64
    %v663 = vpop.permute.xlu0 %662
    %v665 = vmul.f32 %v659, %v663
    %667 = vrot.lane.b32.xlu0 %v665, 32
    %v668 = vpop.permute.xlu0 %667
    %v670 = vadd.f32 %v660, %v668
    %v671 = vtanh.pop %v670
    %673 = vrot.lane.b32.xlu0 %v671, 64
    %v674 = vpop.permute.xlu0 %673
    %v676 = vmul.f32 %v659, %v674
    %678 = vrot.lane.b32.xlu0 %v676, 32
    %v679 = vpop.permute.xlu0 %678
    %v680 = vsel %vm55, %v679, 0
    %682 = vmatprep.subr.mxu0 0.0
    %683 = vmatpush1.msra.mxu0 %v49
    %684 = vmatprep.subr.mxu0 0.0
    %685 = vmatpush1.msra.mxu0 %v50
    %686 = vmatprep.subr.mxu0 0.0
    %687 = vmatpush1.msra.mxu0 %v51
    %688 = vmatprep.subr.mxu0 0.0
    %689 = vmatpush1.msra.mxu0 %v52
    %690 = vmatprep.subr.mxu0 0.0
    %691 = vmatpush1.msra.mxu0 0.0
    %692 = vmatprep.subr.mxu0 0.0
    %693 = vmatpush1.msra.mxu0 0.0
    %694 = vmatprep.subr.mxu0 0.0
    %695 = vmatpush1.msra.mxu0 0.0
    %696 = vmatprep.subr.mxu0 0.0
    %697 = vmatpush1.msra.mxu0 0.0
    %698 = vmatprep.subr.mxu0 0.0
    %699 = vmatpush1.msra.mxu0 0.0
    %700 = vmatprep.subr.mxu0 0.0
    %701 = vmatpush1.msra.mxu0 0.0
    %702 = vmatprep.subr.mxu0 0.0
    %703 = vmatpush1.msra.mxu0 0.0
    %704 = vmatprep.subr.mxu0 0.0
    %705 = vmatpush1.msra.mxu0 0.0
    %706 = vmatprep.subr.mxu0 0.0
    %707 = vmatpush1.msra.mxu0 0.0
    %708 = vmatprep.subr.mxu0 0.0
    %709 = vmatpush1.msra.mxu0 0.0
    %710 = vmatprep.subr.mxu0 0.0
    %711 = vmatpush1.msra.mxu0 0.0
    %712 = vmatprep.subr.mxu0 0.0
    %713 = vmatpush1.msra.mxu0 0.0
    %714 = vmatprep.subr.mxu0 0.0
    %715 = vmatpush1.msra.mxu0 0.0
    %716 = vmatprep.subr.mxu0 0.0
    %717 = vmatpush1.msra.mxu0 0.0
    %718 = vmatprep.subr.mxu0 0.0
    %719 = vmatpush1.msra.mxu0 0.0
    %720 = vmatprep.subr.mxu0 0.0
    %721 = vmatpush1.msra.mxu0 0.0
    %722 = vmatprep.subr.mxu0 0.0
    %723 = vmatpush1.msra.mxu0 0.0
    %724 = vmatprep.subr.mxu0 0.0
    %725 = vmatpush1.msra.mxu0 0.0
    %726 = vmatprep.subr.mxu0 0.0
    %727 = vmatpush1.msra.mxu0 0.0
    %728 = vmatprep.subr.mxu0 0.0
    %729 = vmatpush1.msra.mxu0 0.0
    %730 = vmatprep.subr.mxu0 0.0
    %731 = vmatpush1.msra.mxu0 0.0
    %732 = vmatprep.subr.mxu0 0.0
    %733 = vmatpush1.msra.mxu0 0.0
    %734 = vmatprep.subr.mxu0 0.0
    %735 = vmatpush1.msra.mxu0 0.0
    %736 = vmatprep.subr.mxu0 0.0
    %737 = vmatpush1.msra.mxu0 0.0
    %738 = vmatprep.subr.mxu0 0.0
    %739 = vmatpush1.msra.mxu0 0.0
    %740 = vmatprep.subr.mxu0 0.0
    %741 = vmatpush1.msra.mxu0 0.0
    %742 = vmatprep.subr.mxu0 0.0
    %743 = vmatpush1.msra.mxu0 0.0
    %744 = vmatprep.subr.mxu0 0.0
    %745 = vmatpush1.msra.mxu0 0.0
    %746 = vmatprep.mubr.f32.mxu0 0.0
    %747 = vmatmul.mubr.f32.gmra.mrb[0].mxu0 %v680
    %v748 = vpop.f32.mrb[0].mxu0
    %v749 = vadd.f32 %v157, %v748
    %v750 = vpop.f32.mrb[0].mxu0
    %751 = vdwg.mxu0
    %s752 = scalar_lea.vmem [#allocation2], 12
    %753 = vst [vmem:[%s752] sm:$0xf] %v749
    %s754 = scalar_lea.vmem %s0, 16
    %v755 = vld [vmem:[%s754] sm:$0xf]
    %756 = vmatprep.subr.mxu0 0.0
    %757 = vmatpush1.msra.mxu0 %v45
    %758 = vmatprep.subr.mxu0 0.0
    %759 = vmatpush1.msra.mxu0 %v46
    %760 = vmatprep.subr.mxu0 0.0
    %761 = vmatpush1.msra.mxu0 %v47
    %762 = vmatprep.subr.mxu0 0.0
    %763 = vmatpush1.msra.mxu0 %v48
    %764 = vmatprep.subr.mxu0 0.0
    %765 = vmatpush1.msra.mxu0 0.0
    %766 = vmatprep.subr.mxu0 0.0
    %767 = vmatpush1.msra.mxu0 0.0
    %768 = vmatprep.subr.mxu0 0.0
    %769 = vmatpush1.msra.mxu0 0.0
    %770 = vmatprep.subr.mxu0 0.0
    %771 = vmatpush1.msra.mxu0 0.0
    %772 = vmatprep.subr.mxu0 0.0
    %773 = vmatpush1.msra.mxu0 0.0
    %774 = vmatprep.subr.mxu0 0.0
    %775 = vmatpush1.msra.mxu0 0.0
    %776 = vmatprep.subr.mxu0 0.0
    %777 = vmatpush1.msra.mxu0 0.0
    %778 = vmatprep.subr.mxu0 0.0
    %779 = vmatpush1.msra.mxu0 0.0
    %780 = vmatprep.subr.mxu0 0.0
    %781 = vmatpush1.msra.mxu0 0.0
    %782 = vmatprep.subr.mxu0 0.0
    %783 = vmatpush1.msra.mxu0 0.0
    %784 = vmatprep.subr.mxu0 0.0
    %785 = vmatpush1.msra.mxu0 0.0
    %786 = vmatprep.subr.mxu0 0.0
    %787 = vmatpush1.msra.mxu0 0.0
    %788 = vmatprep.subr.mxu0 0.0
    %789 = vmatpush1.msra.mxu0 0.0
    %790 = vmatprep.subr.mxu0 0.0
    %791 = vmatpush1.msra.mxu0 0.0
    %792 = vmatprep.subr.mxu0 0.0
    %793 = vmatpush1.msra.mxu0 0.0
    %794 = vmatprep.subr.mxu0 0.0
    %795 = vmatpush1.msra.mxu0 0.0
    %796 = vmatprep.subr.mxu0 0.0
    %797 = vmatpush1.msra.mxu0 0.0
    %798 = vmatprep.subr.mxu0 0.0
    %799 = vmatpush1.msra.mxu0 0.0
    %800 = vmatprep.subr.mxu0 0.0
    %801 = vmatpush1.msra.mxu0 0.0
    %802 = vmatprep.subr.mxu0 0.0
    %803 = vmatpush1.msra.mxu0 0.0
    %804 = vmatprep.subr.mxu0 0.0
    %805 = vmatpush1.msra.mxu0 0.0
    %806 = vmatprep.subr.mxu0 0.0
    %807 = vmatpush1.msra.mxu0 0.0
    %808 = vmatprep.subr.mxu0 0.0
    %809 = vmatpush1.msra.mxu0 0.0
    %810 = vmatprep.subr.mxu0 0.0
    %811 = vmatpush1.msra.mxu0 0.0
    %812 = vmatprep.subr.mxu0 0.0
    %813 = vmatpush1.msra.mxu0 0.0
    %814 = vmatprep.subr.mxu0 0.0
    %815 = vmatpush1.msra.mxu0 0.0
    %816 = vmatprep.subr.mxu0 0.0
    %817 = vmatpush1.msra.mxu0 0.0
    %818 = vmatprep.subr.mxu0 0.0
    %819 = vmatpush1.msra.mxu0 0.0
    %820 = vmatprep.mubr.f32.mxu0 0.0
    %821 = vmatmul.mubr.f32.gmra.mrb[0].mxu0 %v680
    %v822 = vpop.f32.mrb[0].mxu0
    %v823 = vadd.f32 0.0, %v822
    %v824 = vpop.f32.mrb[0].mxu0
    %825 = vdwg.mxu0
    %v826 = vadd.f32 %v755, %v823
    %v827 = vmul.f32 %v826, 0.5
    %v828 = vsel %vm42, %v826, %v827
    %v829 = vtanh.pop %v828
    %v830 = vmul.f32 %v829, 0.5
    %v831 = vadd.f32 %v830, 0.5
    %v832 = vsel %vm42, %v829, %v831
    %v833 = vmul.f32 %v832, %v670
    %835 = vrot.lane.b32.xlu0 %v832, 64
    %v836 = vpop.permute.xlu0 %835
    %v838 = vmul.f32 %v832, %v836
    %840 = vrot.lane.b32.xlu0 %v838, 32
    %v841 = vpop.permute.xlu0 %840
    %v843 = vadd.f32 %v833, %v841
    %v844 = vtanh.pop %v843
    %846 = vrot.lane.b32.xlu0 %v844, 64
    %v847 = vpop.permute.xlu0 %846
    %v849 = vmul.f32 %v832, %v847
    %851 = vrot.lane.b32.xlu0 %v849, 32
    %v852 = vpop.permute.xlu0 %851
    %v853 = vsel %vm55, %v852, 0
    %855 = vmatprep.subr.mxu0 0.0
    %856 = vmatpush1.msra.mxu0 %v49
    %857 = vmatprep.subr.mxu0 0.0
    %858 = vmatpush1.msra.mxu0 %v50
    %859 = vmatprep.subr.mxu0 0.0
    %860 = vmatpush1.msra.mxu0 %v51
    %861 = vmatprep.subr.mxu0 0.0
    %862 = vmatpush1.msra.mxu0 %v52
    %863 = vmatprep.subr.mxu0 0.0
    %864 = vmatpush1.msra.mxu0 0.0
    %865 = vmatprep.subr.mxu0 0.0
    %866 = vmatpush1.msra.mxu0 0.0
    %867 = vmatprep.subr.mxu0 0.0
    %868 = vmatpush1.msra.mxu0 0.0
    %869 = vmatprep.subr.mxu0 0.0
    %870 = vmatpush1.msra.mxu0 0.0
    %871 = vmatprep.subr.mxu0 0.0
    %872 = vmatpush1.msra.mxu0 0.0
    %873 = vmatprep.subr.mxu0 0.0
    %874 = vmatpush1.msra.mxu0 0.0
    %875 = vmatprep.subr.mxu0 0.0
    %876 = vmatpush1.msra.mxu0 0.0
    %877 = vmatprep.subr.mxu0 0.0
    %878 = vmatpush1.msra.mxu0 0.0
    %879 = vmatprep.subr.mxu0 0.0
    %880 = vmatpush1.msra.mxu0 0.0
    %881 = vmatprep.subr.mxu0 0.0
    %882 = vmatpush1.msra.mxu0 0.0
    %883 = vmatprep.subr.mxu0 0.0
    %884 = vmatpush1.msra.mxu0 0.0
    %885 = vmatprep.subr.mxu0 0.0
    %886 = vmatpush1.msra.mxu0 0.0
    %887 = vmatprep.subr.mxu0 0.0
    %888 = vmatpush1.msra.mxu0 0.0
    %889 = vmatprep.subr.mxu0 0.0
    %890 = vmatpush1.msra.mxu0 0.0
    %891 = vmatprep.subr.mxu0 0.0
    %892 = vmatpush1.msra.mxu0 0.0
    %893 = vmatprep.subr.mxu0 0.0
    %894 = vmatpush1.msra.mxu0 0.0
    %895 = vmatprep.subr.mxu0 0.0
    %896 = vmatpush1.msra.mxu0 0.0
    %897 = vmatprep.subr.mxu0 0.0
    %898 = vmatpush1.msra.mxu0 0.0
    %899 = vmatprep.subr.mxu0 0.0
    %900 = vmatpush1.msra.mxu0 0.0
    %901 = vmatprep.subr.mxu0 0.0
    %902 = vmatpush1.msra.mxu0 0.0
    %903 = vmatprep.subr.mxu0 0.0
    %904 = vmatpush1.msra.mxu0 0.0
    %905 = vmatprep.subr.mxu0 0.0
    %906 = vmatpush1.msra.mxu0 0.0
    %907 = vmatprep.subr.mxu0 0.0
    %908 = vmatpush1.msra.mxu0 0.0
    %909 = vmatprep.subr.mxu0 0.0
    %910 = vmatpush1.msra.mxu0 0.0
    %911 = vmatprep.subr.mxu0 0.0
    %912 = vmatpush1.msra.mxu0 0.0
    %913 = vmatprep.subr.mxu0 0.0
    %914 = vmatpush1.msra.mxu0 0.0
    %915 = vmatprep.subr.mxu0 0.0
    %916 = vmatpush1.msra.mxu0 0.0
    %917 = vmatprep.subr.mxu0 0.0
    %918 = vmatpush1.msra.mxu0 0.0
    %919 = vmatprep.mubr.f32.mxu0 0.0
    %920 = vmatmul.mubr.f32.gmra.mrb[0].mxu0 %v853
    %v921 = vpop.f32.mrb[0].mxu0
    %v922 = vadd.f32 %v157, %v921
    %v923 = vpop.f32.mrb[0].mxu0
    %924 = vdwg.mxu0
    %s925 = scalar_lea.vmem [#allocation2], 16
    %926 = vst [vmem:[%s925] sm:$0xf] %v922
    %s927 = scalar_lea.vmem %s0, 20
    %v928 = vld [vmem:[%s927] sm:$0xf]
    %929 = vmatprep.subr.mxu0 0.0
    %930 = vmatpush1.msra.mxu0 %v45
    %931 = vmatprep.subr.mxu0 0.0
    %932 = vmatpush1.msra.mxu0 %v46
    %933 = vmatprep.subr.mxu0 0.0
    %934 = vmatpush1.msra.mxu0 %v47
    %935 = vmatprep.subr.mxu0 0.0
    %936 = vmatpush1.msra.mxu0 %v48
    %937 = vmatprep.subr.mxu0 0.0
    %938 = vmatpush1.msra.mxu0 0.0
    %939 = vmatprep.subr.mxu0 0.0
    %940 = vmatpush1.msra.mxu0 0.0
    %941 = vmatprep.subr.mxu0 0.0
    %942 = vmatpush1.msra.mxu0 0.0
    %943 = vmatprep.subr.mxu0 0.0
    %944 = vmatpush1.msra.mxu0 0.0
    %945 = vmatprep.subr.mxu0 0.0
    %946 = vmatpush1.msra.mxu0 0.0
    %947 = vmatprep.subr.mxu0 0.0
    %948 = vmatpush1.msra.mxu0 0.0
    %949 = vmatprep.subr.mxu0 0.0
    %950 = vmatpush1.msra.mxu0 0.0
    %951 = vmatprep.subr.mxu0 0.0
    %952 = vmatpush1.msra.mxu0 0.0
    %953 = vmatprep.subr.mxu0 0.0
    %954 = vmatpush1.msra.mxu0 0.0
    %955 = vmatprep.subr.mxu0 0.0
    %956 = vmatpush1.msra.mxu0 0.0
    %957 = vmatprep.subr.mxu0 0.0
    %958 = vmatpush1.msra.mxu0 0.0
    %959 = vmatprep.subr.mxu0 0.0
    %960 = vmatpush1.msra.mxu0 0.0
    %961 = vmatprep.subr.mxu0 0.0
    %962 = vmatpush1.msra.mxu0 0.0
    %963 = vmatprep.subr.mxu0 0.0
    %964 = vmatpush1.msra.mxu0 0.0
    %965 = vmatprep.subr.mxu0 0.0
    %966 = vmatpush1.msra.mxu0 0.0
    %967 = vmatprep.subr.mxu0 0.0
    %968 = vmatpush1.msra.mxu0 0.0
    %969 = vmatprep.subr.mxu0 0.0
    %970 = vmatpush1.msra.mxu0 0.0
    %971 = vmatprep.subr.mxu0 0.0
    %972 = vmatpush1.msra.mxu0 0.0
    %973 = vmatprep.subr.mxu0 0.0
    %974 = vmatpush1.msra.mxu0 0.0
    %975 = vmatprep.subr.mxu0 0.0
    %976 = vmatpush1.msra.mxu0 0.0
    %977 = vmatprep.subr.mxu0 0.0
    %978 = vmatpush1.msra.mxu0 0.0
    %979 = vmatprep.subr.mxu0 0.0
    %980 = vmatpush1.msra.mxu0 0.0
    %981 = vmatprep.subr.mxu0 0.0
    %982 = vmatpush1.msra.mxu0 0.0
    %983 = vmatprep.subr.mxu0 0.0
    %984 = vmatpush1.msra.mxu0 0.0
    %985 = vmatprep.subr.mxu0 0.0
    %986 = vmatpush1.msra.mxu0 0.0
    %987 = vmatprep.subr.mxu0 0.0
    %988 = vmatpush1.msra.mxu0 0.0
    %989 = vmatprep.subr.mxu0 0.0
    %990 = vmatpush1.msra.mxu0 0.0
    %991 = vmatprep.subr.mxu0 0.0
    %992 = vmatpush1.msra.mxu0 0.0
    %993 = vmatprep.mubr.f32.mxu0 0.0
    %994 = vmatmul.mubr.f32.gmra.mrb[0].mxu0 %v853
    %v995 = vpop.f32.mrb[0].mxu0
    %v996 = vadd.f32 0.0, %v995
    %v997 = vpop.f32.mrb[0].mxu0
    %998 = vdwg.mxu0
    %v999 = vadd.f32 %v928, %v996
    %v1000 = vmul.f32 %v999, 0.5
    %v1001 = vsel %vm42, %v999, %v1000
    %v1002 = vtanh.pop %v1001
    %v1003 = vmul.f32 %v1002, 0.5
    %v1004 = vadd.f32 %v1003, 0.5
    %v1005 = vsel %vm42, %v1002, %v1004
    %v1006 = vmul.f32 %v1005, %v843
    %1008 = vrot.lane.b32.xlu0 %v1005, 64
    %v1009 = vpop.permute.xlu0 %1008
    %v1011 = vmul.f32 %v1005, %v1009
    %1013 = vrot.lane.b32.xlu0 %v1011, 32
    %v1014 = vpop.permute.xlu0 %1013
    %v1016 = vadd.f32 %v1006, %v1014
    %v1017 = vtanh.pop %v1016
    %1019 = vrot.lane.b32.xlu0 %v1017, 64
    %v1020 = vpop.permute.xlu0 %1019
    %v1022 = vmul.f32 %v1005, %v1020
    %1024 = vrot.lane.b32.xlu0 %v1022, 32
    %v1025 = vpop.permute.xlu0 %1024
    %v1026 = vsel %vm55, %v1025, 0
    %1028 = vmatprep.subr.mxu0 0.0
    %1029 = vmatpush1.msra.mxu0 %v49
    %1030 = vmatprep.subr.mxu0 0.0
    %1031 = vmatpush1.msra.mxu0 %v50
    %1032 = vmatprep.subr.mxu0 0.0
    %1033 = vmatpush1.msra.mxu0 %v51
    %1034 = vmatprep.subr.mxu0 0.0
    %1035 = vmatpush1.msra.mxu0 %v52
    %1036 = vmatprep.subr.mxu0 0.0
    %1037 = vmatpush1.msra.mxu0 0.0
    %1038 = vmatprep.subr.mxu0 0.0
    %1039 = vmatpush1.msra.mxu0 0.0
    %1040 = vmatprep.subr.mxu0 0.0
    %1041 = vmatpush1.msra.mxu0 0.0
    %1042 = vmatprep.subr.mxu0 0.0
    %1043 = vmatpush1.msra.mxu0 0.0
    %1044 = vmatprep.subr.mxu0 0.0
    %1045 = vmatpush1.msra.mxu0 0.0
    %1046 = vmatprep.subr.mxu0 0.0
    %1047 = vmatpush1.msra.mxu0 0.0
    %1048 = vmatprep.subr.mxu0 0.0
    %1049 = vmatpush1.msra.mxu0 0.0
    %1050 = vmatprep.subr.mxu0 0.0
    %1051 = vmatpush1.msra.mxu0 0.0
    %1052 = vmatprep.subr.mxu0 0.0
    %1053 = vmatpush1.msra.mxu0 0.0
    %1054 = vmatprep.subr.mxu0 0.0
    %1055 = vmatpush1.msra.mxu0 0.0
    %1056 = vmatprep.subr.mxu0 0.0
    %1057 = vmatpush1.msra.mxu0 0.0
    %1058 = vmatprep.subr.mxu0 0.0
    %1059 = vmatpush1.msra.mxu0 0.0
    %1060 = vmatprep.subr.mxu0 0.0
    %1061 = vmatpush1.msra.mxu0 0.0
    %1062 = vmatprep.subr.mxu0 0.0
    %1063 = vmatpush1.msra.mxu0 0.0
    %1064 = vmatprep.subr.mxu0 0.0
    %1065 = vmatpush1.msra.mxu0 0.0
    %1066 = vmatprep.subr.mxu0 0.0
    %1067 = vmatpush1.msra.mxu0 0.0
    %1068 = vmatprep.subr.mxu0 0.0
    %1069 = vmatpush1.msra.mxu0 0.0
    %1070 = vmatprep.subr.mxu0 0.0
    %1071 = vmatpush1.msra.mxu0 0.0
    %1072 = vmatprep.subr.mxu0 0.0
    %1073 = vmatpush1.msra.mxu0 0.0
    %1074 = vmatprep.subr.mxu0 0.0
    %1075 = vmatpush1.msra.mxu0 0.0
    %1076 = vmatprep.subr.mxu0 0.0
    %1077 = vmatpush1.msra.mxu0 0.0
    %1078 = vmatprep.subr.mxu0 0.0
    %1079 = vmatpush1.msra.mxu0 0.0
    %1080 = vmatprep.subr.mxu0 0.0
    %1081 = vmatpush1.msra.mxu0 0.0
    %1082 = vmatprep.subr.mxu0 0.0
    %1083 = vmatpush1.msra.mxu0 0.0
    %1084 = vmatprep.subr.mxu0 0.0
    %1085 = vmatpush1.msra.mxu0 0.0
    %1086 = vmatprep.subr.mxu0 0.0
    %1087 = vmatpush1.msra.mxu0 0.0
    %1088 = vmatprep.subr.mxu0 0.0
    %1089 = vmatpush1.msra.mxu0 0.0
    %1090 = vmatprep.subr.mxu0 0.0
    %1091 = vmatpush1.msra.mxu0 0.0
    %1092 = vmatprep.mubr.f32.mxu0 0.0
    %1093 = vmatmul.mubr.f32.gmra.mrb[0].mxu0 %v1026
    %v1094 = vpop.f32.mrb[0].mxu0
    %v1095 = vadd.f32 %v157, %v1094
    %v1096 = vpop.f32.mrb[0].mxu0
    %1097 = vdwg.mxu0
    %s1098 = scalar_lea.vmem [#allocation2], 20
    %1099 = vst [vmem:[%s1098] sm:$0xf] %v1095
    %s1100 = scalar_lea.vmem %s0, 24
    %v1101 = vld [vmem:[%s1100] sm:$0xf]
    %1102 = vmatprep.subr.mxu0 0.0
    %1103 = vmatpush1.msra.mxu0 %v45
    %1104 = vmatprep.subr.mxu0 0.0
    %1105 = vmatpush1.msra.mxu0 %v46
    %1106 = vmatprep.subr.mxu0 0.0
    %1107 = vmatpush1.msra.mxu0 %v47
    %1108 = vmatprep.subr.mxu0 0.0
    %1109 = vmatpush1.msra.mxu0 %v48
    %1110 = vmatprep.subr.mxu0 0.0
    %1111 = vmatpush1.msra.mxu0 0.0
    %1112 = vmatprep.subr.mxu0 0.0
    %1113 = vmatpush1.msra.mxu0 0.0
    %1114 = vmatprep.subr.mxu0 0.0
    %1115 = vmatpush1.msra.mxu0 0.0
    %1116 = vmatprep.subr.mxu0 0.0
    %1117 = vmatpush1.msra.mxu0 0.0
    %1118 = vmatprep.subr.mxu0 0.0
    %1119 = vmatpush1.msra.mxu0 0.0
    %1120 = vmatprep.subr.mxu0 0.0
    %1121 = vmatpush1.msra.mxu0 0.0
    %1122 = vmatprep.subr.mxu0 0.0
    %1123 = vmatpush1.msra.mxu0 0.0
    %1124 = vmatprep.subr.mxu0 0.0
    %1125 = vmatpush1.msra.mxu0 0.0
    %1126 = vmatprep.subr.mxu0 0.0
    %1127 = vmatpush1.msra.mxu0 0.0
    %1128 = vmatprep.subr.mxu0 0.0
    %1129 = vmatpush1.msra.mxu0 0.0
    %1130 = vmatprep.subr.mxu0 0.0
    %1131 = vmatpush1.msra.mxu0 0.0
    %1132 = vmatprep.subr.mxu0 0.0
    %1133 = vmatpush1.msra.mxu0 0.0
    %1134 = vmatprep.subr.mxu0 0.0
    %1135 = vmatpush1.msra.mxu0 0.0
    %1136 = vmatprep.subr.mxu0 0.0
    %1137 = vmatpush1.msra.mxu0 0.0
    %1138 = vmatprep.subr.mxu0 0.0
    %1139 = vmatpush1.msra.mxu0 0.0
    %1140 = vmatprep.subr.mxu0 0.0
    %1141 = vmatpush1.msra.mxu0 0.0
    %1142 = vmatprep.subr.mxu0 0.0
    %1143 = vmatpush1.msra.mxu0 0.0
    %1144 = vmatprep.subr.mxu0 0.0
    %1145 = vmatpush1.msra.mxu0 0.0
    %1146 = vmatprep.subr.mxu0 0.0
    %1147 = vmatpush1.msra.mxu0 0.0
    %1148 = vmatprep.subr.mxu0 0.0
    %1149 = vmatpush1.msra.mxu0 0.0
    %1150 = vmatprep.subr.mxu0 0.0
    %1151 = vmatpush1.msra.mxu0 0.0
    %1152 = vmatprep.subr.mxu0 0.0
    %1153 = vmatpush1.msra.mxu0 0.0
    %1154 = vmatprep.subr.mxu0 0.0
    %1155 = vmatpush1.msra.mxu0 0.0
    %1156 = vmatprep.subr.mxu0 0.0
    %1157 = vmatpush1.msra.mxu0 0.0
    %1158 = vmatprep.subr.mxu0 0.0
    %1159 = vmatpush1.msra.mxu0 0.0
    %1160 = vmatprep.subr.mxu0 0.0
    %1161 = vmatpush1.msra.mxu0 0.0
    %1162 = vmatprep.subr.mxu0 0.0
    %1163 = vmatpush1.msra.mxu0 0.0
    %1164 = vmatprep.subr.mxu0 0.0
    %1165 = vmatpush1.msra.mxu0 0.0
    %1166 = vmatprep.mubr.f32.mxu0 0.0
    %1167 = vmatmul.mubr.f32.gmra.mrb[0].mxu0 %v1026
    %v1168 = vpop.f32.mrb[0].mxu0
    %v1169 = vadd.f32 0.0, %v1168
    %v1170 = vpop.f32.mrb[0].mxu0
    %1171 = vdwg.mxu0
    %v1172 = vadd.f32 %v1101, %v1169
    %v1173 = vmul.f32 %v1172, 0.5
    %v1174 = vsel %vm42, %v1172, %v1173
    %v1175 = vtanh.pop %v1174
    %v1176 = vmul.f32 %v1175, 0.5
    %v1177 = vadd.f32 %v1176, 0.5
    %v1178 = vsel %vm42, %v1175, %v1177
    %v1179 = vmul.f32 %v1178, %v1016
    %1181 = vrot.lane.b32.xlu0 %v1178, 64
    %v1182 = vpop.permute.xlu0 %1181
    %v1184 = vmul.f32 %v1178, %v1182
    %1186 = vrot.lane.b32.xlu0 %v1184, 32
    %v1187 = vpop.permute.xlu0 %1186
    %v1189 = vadd.f32 %v1179, %v1187
    %v1190 = vtanh.pop %v1189
    %1192 = vrot.lane.b32.xlu0 %v1190, 64
    %v1193 = vpop.permute.xlu0 %1192
    %v1195 = vmul.f32 %v1178, %v1193
    %1197 = vrot.lane.b32.xlu0 %v1195, 32
    %v1198 = vpop.permute.xlu0 %1197
    %v1199 = vsel %vm55, %v1198, 0
    %1201 = vmatprep.subr.mxu0 0.0
    %1202 = vmatpush1.msra.mxu0 %v49
    %1203 = vmatprep.subr.mxu0 0.0
    %1204 = vmatpush1.msra.mxu0 %v50
    %1205 = vmatprep.subr.mxu0 0.0
    %1206 = vmatpush1.msra.mxu0 %v51
    %1207 = vmatprep.subr.mxu0 0.0
    %1208 = vmatpush1.msra.mxu0 %v52
    %1209 = vmatprep.subr.mxu0 0.0
    %1210 = vmatpush1.msra.mxu0 0.0
    %1211 = vmatprep.subr.mxu0 0.0
    %1212 = vmatpush1.msra.mxu0 0.0
    %1213 = vmatprep.subr.mxu0 0.0
    %1214 = vmatpush1.msra.mxu0 0.0
    %1215 = vmatprep.subr.mxu0 0.0
    %1216 = vmatpush1.msra.mxu0 0.0
    %1217 = vmatprep.subr.mxu0 0.0
    %1218 = vmatpush1.msra.mxu0 0.0
    %1219 = vmatprep.subr.mxu0 0.0
    %1220 = vmatpush1.msra.mxu0 0.0
    %1221 = vmatprep.subr.mxu0 0.0
    %1222 = vmatpush1.msra.mxu0 0.0
    %1223 = vmatprep.subr.mxu0 0.0
    %1224 = vmatpush1.msra.mxu0 0.0
    %1225 = vmatprep.subr.mxu0 0.0
    %1226 = vmatpush1.msra.mxu0 0.0
    %1227 = vmatprep.subr.mxu0 0.0
    %1228 = vmatpush1.msra.mxu0 0.0
    %1229 = vmatprep.subr.mxu0 0.0
    %1230 = vmatpush1.msra.mxu0 0.0
    %1231 = vmatprep.subr.mxu0 0.0
    %1232 = vmatpush1.msra.mxu0 0.0
    %1233 = vmatprep.subr.mxu0 0.0
    %1234 = vmatpush1.msra.mxu0 0.0
    %1235 = vmatprep.subr.mxu0 0.0
    %1236 = vmatpush1.msra.mxu0 0.0
    %1237 = vmatprep.subr.mxu0 0.0
    %1238 = vmatpush1.msra.mxu0 0.0
    %1239 = vmatprep.subr.mxu0 0.0
    %1240 = vmatpush1.msra.mxu0 0.0
    %1241 = vmatprep.subr.mxu0 0.0
    %1242 = vmatpush1.msra.mxu0 0.0
    %1243 = vmatprep.subr.mxu0 0.0
    %1244 = vmatpush1.msra.mxu0 0.0
    %1245 = vmatprep.subr.mxu0 0.0
    %1246 = vmatpush1.msra.mxu0 0.0
    %1247 = vmatprep.subr.mxu0 0.0
    %1248 = vmatpush1.msra.mxu0 0.0
    %1249 = vmatprep.subr.mxu0 0.0
    %1250 = vmatpush1.msra.mxu0 0.0
    %1251 = vmatprep.subr.mxu0 0.0
    %1252 = vmatpush1.msra.mxu0 0.0
    %1253 = vmatprep.subr.mxu0 0.0
    %1254 = vmatpush1.msra.mxu0 0.0
    %1255 = vmatprep.subr.mxu0 0.0
    %1256 = vmatpush1.msra.mxu0 0.0
    %1257 = vmatprep.subr.mxu0 0.0
    %1258 = vmatpush1.msra.mxu0 0.0
    %1259 = vmatprep.subr.mxu0 0.0
    %1260 = vmatpush1.msra.mxu0 0.0
    %1261 = vmatprep.subr.mxu0 0.0
    %1262 = vmatpush1.msra.mxu0 0.0
    %1263 = vmatprep.subr.mxu0 0.0
    %1264 = vmatpush1.msra.mxu0 0.0
    %1265 = vmatprep.mubr.f32.mxu0 0.0
    %1266 = vmatmul.mubr.f32.gmra.mrb[0].mxu0 %v1199
    %v1267 = vpop.f32.mrb[0].mxu0
    %v1268 = vadd.f32 %v157, %v1267
    %v1269 = vpop.f32.mrb[0].mxu0
    %1270 = vdwg.mxu0
    %s1271 = scalar_lea.vmem [#allocation2], 24
    %1272 = vst [vmem:[%s1271] sm:$0xf] %v1268
    %s1273 = scalar_lea.vmem %s0, 28
    %v1274 = vld [vmem:[%s1273] sm:$0xf]
    %1275 = vmatprep.subr.mxu0 0.0
    %1276 = vmatpush1.msra.mxu0 %v45
    %1277 = vmatprep.subr.mxu0 0.0
    %1278 = vmatpush1.msra.mxu0 %v46
    %1279 = vmatprep.subr.mxu0 0.0
    %1280 = vmatpush1.msra.mxu0 %v47
    %1281 = vmatprep.subr.mxu0 0.0
    %1282 = vmatpush1.msra.mxu0 %v48
    %1283 = vmatprep.subr.mxu0 0.0
    %1284 = vmatpush1.msra.mxu0 0.0
    %1285 = vmatprep.subr.mxu0 0.0
    %1286 = vmatpush1.msra.mxu0 0.0
    %1287 = vmatprep.subr.mxu0 0.0
    %1288 = vmatpush1.msra.mxu0 0.0
    %1289 = vmatprep.subr.mxu0 0.0
    %1290 = vmatpush1.msra.mxu0 0.0
    %1291 = vmatprep.subr.mxu0 0.0
    %1292 = vmatpush1.msra.mxu0 0.0
    %1293 = vmatprep.subr.mxu0 0.0
    %1294 = vmatpush1.msra.mxu0 0.0
    %1295 = vmatprep.subr.mxu0 0.0
    %1296 = vmatpush1.msra.mxu0 0.0
    %1297 = vmatprep.subr.mxu0 0.0
    %1298 = vmatpush1.msra.mxu0 0.0
    %1299 = vmatprep.subr.mxu0 0.0
    %1300 = vmatpush1.msra.mxu0 0.0
    %1301 = vmatprep.subr.mxu0 0.0
    %1302 = vmatpush1.msra.mxu0 0.0
    %1303 = vmatprep.subr.mxu0 0.0
    %1304 = vmatpush1.msra.mxu0 0.0
    %1305 = vmatprep.subr.mxu0 0.0
    %1306 = vmatpush1.msra.mxu0 0.0
    %1307 = vmatprep.subr.mxu0 0.0
    %1308 = vmatpush1.msra.mxu0 0.0
    %1309 = vmatprep.subr.mxu0 0.0
    %1310 = vmatpush1.msra.mxu0 0.0
    %1311 = vmatprep.subr.mxu0 0.0
    %1312 = vmatpush1.msra.mxu0 0.0
    %1313 = vmatprep.subr.mxu0 0.0
    %1314 = vmatpush1.msra.mxu0 0.0
    %1315 = vmatprep.subr.mxu0 0.0
    %1316 = vmatpush1.msra.mxu0 0.0
    %1317 = vmatprep.subr.mxu0 0.0
    %1318 = vmatpush1.msra.mxu0 0.0
    %1319 = vmatprep.subr.mxu0 0.0
    %1320 = vmatpush1.msra.mxu0 0.0
    %1321 = vmatprep.subr.mxu0 0.0
    %1322 = vmatpush1.msra.mxu0 0.0
    %1323 = vmatprep.subr.mxu0 0.0
    %1324 = vmatpush1.msra.mxu0 0.0
    %1325 = vmatprep.subr.mxu0 0.0
    %1326 = vmatpush1.msra.mxu0 0.0
    %1327 = vmatprep.subr.mxu0 0.0
    %1328 = vmatpush1.msra.mxu0 0.0
    %1329 = vmatprep.subr.mxu0 0.0
    %1330 = vmatpush1.msra.mxu0 0.0
    %1331 = vmatprep.subr.mxu0 0.0
    %1332 = vmatpush1.msra.mxu0 0.0
    %1333 = vmatprep.subr.mxu0 0.0
    %1334 = vmatpush1.msra.mxu0 0.0
    %1335 = vmatprep.subr.mxu0 0.0
    %1336 = vmatpush1.msra.mxu0 0.0
    %1337 = vmatprep.subr.mxu0 0.0
    %1338 = vmatpush1.msra.mxu0 0.0
    %1339 = vmatprep.mubr.f32.mxu0 0.0
    %1340 = vmatmul.mubr.f32.gmra.mrb[0].mxu0 %v1199
    %v1341 = vpop.f32.mrb[0].mxu0
    %v1342 = vadd.f32 0.0, %v1341
    %v1343 = vpop.f32.mrb[0].mxu0
    %1344 = vdwg.mxu0
    %v1345 = vadd.f32 %v1274, %v1342
    %v1346 = vmul.f32 %v1345, 0.5
    %v1347 = vsel %vm42, %v1345, %v1346
    %v1348 = vtanh.pop %v1347
    %v1349 = vmul.f32 %v1348, 0.5
    %v1350 = vadd.f32 %v1349, 0.5
    %v1351 = vsel %vm42, %v1348, %v1350
    %v1352 = vmul.f32 %v1351, %v1189
    %1354 = vrot.lane.b32.xlu0 %v1351, 64
    %v1355 = vpop.permute.xlu0 %1354
    %v1357 = vmul.f32 %v1351, %v1355
    %1359 = vrot.lane.b32.xlu0 %v1357, 32
    %v1360 = vpop.permute.xlu0 %1359
    %v1362 = vadd.f32 %v1352, %v1360
    %v1363 = vtanh.pop %v1362
    %1365 = vrot.lane.b32.xlu0 %v1363, 64
    %v1366 = vpop.permute.xlu0 %1365
    %v1368 = vmul.f32 %v1351, %v1366
    %1370 = vrot.lane.b32.xlu0 %v1368, 32
    %v1371 = vpop.permute.xlu0 %1370
    %v1372 = vsel %vm55, %v1371, 0
    %1374 = vmatprep.subr.mxu0 0.0
    %1375 = vmatpush1.msra.mxu0 %v49
    %1376 = vmatprep.subr.mxu0 0.0
    %1377 = vmatpush1.msra.mxu0 %v50
    %1378 = vmatprep.subr.mxu0 0.0
    %1379 = vmatpush1.msra.mxu0 %v51
    %1380 = vmatprep.subr.mxu0 0.0
    %1381 = vmatpush1.msra.mxu0 %v52
    %1382 = vmatprep.subr.mxu0 0.0
    %1383 = vmatpush1.msra.mxu0 0.0
    %1384 = vmatprep.subr.mxu0 0.0
    %1385 = vmatpush1.msra.mxu0 0.0
    %1386 = vmatprep.subr.mxu0 0.0
    %1387 = vmatpush1.msra.mxu0 0.0
    %1388 = vmatprep.subr.mxu0 0.0
    %1389 = vmatpush1.msra.mxu0 0.0
    %1390 = vmatprep.subr.mxu0 0.0
    %1391 = vmatpush1.msra.mxu0 0.0
    %1392 = vmatprep.subr.mxu0 0.0
    %1393 = vmatpush1.msra.mxu0 0.0
    %1394 = vmatprep.subr.mxu0 0.0
    %1395 = vmatpush1.msra.mxu0 0.0
    %1396 = vmatprep.subr.mxu0 0.0
    %1397 = vmatpush1.msra.mxu0 0.0
    %1398 = vmatprep.subr.mxu0 0.0
    %1399 = vmatpush1.msra.mxu0 0.0
    %1400 = vmatprep.subr.mxu0 0.0
    %1401 = vmatpush1.msra.mxu0 0.0
    %1402 = vmatprep.subr.mxu0 0.0
    %1403 = vmatpush1.msra.mxu0 0.0
    %1404 = vmatprep.subr.mxu0 0.0
    %1405 = vmatpush1.msra.mxu0 0.0
    %1406 = vmatprep.subr.mxu0 0.0
    %1407 = vmatpush1.msra.mxu0 0.0
    %1408 = vmatprep.subr.mxu0 0.0
    %1409 = vmatpush1.msra.mxu0 0.0
    %1410 = vmatprep.subr.mxu0 0.0
    %1411 = vmatpush1.msra.mxu0 0.0
    %1412 = vmatprep.subr.mxu0 0.0
    %1413 = vmatpush1.msra.mxu0 0.0
    %1414 = vmatprep.subr.mxu0 0.0
    %1415 = vmatpush1.msra.mxu0 0.0
    %1416 = vmatprep.subr.mxu0 0.0
    %1417 = vmatpush1.msra.mxu0 0.0
    %1418 = vmatprep.subr.mxu0 0.0
    %1419 = vmatpush1.msra.mxu0 0.0
    %1420 = vmatprep.subr.mxu0 0.0
    %1421 = vmatpush1.msra.mxu0 0.0
    %1422 = vmatprep.subr.mxu0 0.0
    %1423 = vmatpush1.msra.mxu0 0.0
    %1424 = vmatprep.subr.mxu0 0.0
    %1425 = vmatpush1.msra.mxu0 0.0
    %1426 = vmatprep.subr.mxu0 0.0
    %1427 = vmatpush1.msra.mxu0 0.0
    %1428 = vmatprep.subr.mxu0 0.0
    %1429 = vmatpush1.msra.mxu0 0.0
    %1430 = vmatprep.subr.mxu0 0.0
    %1431 = vmatpush1.msra.mxu0 0.0
    %1432 = vmatprep.subr.mxu0 0.0
    %1433 = vmatpush1.msra.mxu0 0.0
    %1434 = vmatprep.subr.mxu0 0.0
    %1435 = vmatpush1.msra.mxu0 0.0
    %1436 = vmatprep.subr.mxu0 0.0
    %1437 = vmatpush1.msra.mxu0 0.0
    %1438 = vmatprep.mubr.f32.mxu0 0.0
    %1439 = vmatmul.mubr.f32.gmra.mrb[0].mxu0 %v1372
    %v1440 = vpop.f32.mrb[0].mxu0
    %v1441 = vadd.f32 %v157, %v1440
    %v1442 = vpop.f32.mrb[0].mxu0
    %1443 = vdwg.mxu0
    %s1444 = scalar_lea.vmem [#allocation2], 28
    %1445 = vst [vmem:[%s1444] sm:$0xf] %v1441
    %v1446 = vld [vmem:[%s5] sm:$0xff]
    %v1447 = vld [vmem:[%s5 + $0x8] sm:$0xff]
    %v1448 = vld [vmem:[%s5 + $0x10] sm:$0xff]
    %v1449 = vld [vmem:[%s5 + $0x18] sm:$0xff]
    %v1450 = vld [vmem:[#allocation2] sm:$0xf]
    %1451 = vmatprep.subr.mxu0 0.0
    %1452 = vmatpush1.msra.mxu0 %v1446
    %1453 = vmatprep.subr.mxu0 0.0
    %1454 = vmatpush1.msra.mxu0 %v1447
    %1455 = vmatprep.subr.mxu0 0.0
    %1456 = vmatpush1.msra.mxu0 %v1448
    %1457 = vmatprep.subr.mxu0 0.0
    %1458 = vmatpush1.msra.mxu0 %v1449
    %1459 = vmatprep.subr.mxu0 0.0
    %1460 = vmatpush1.msra.mxu0 0.0
    %1461 = vmatprep.subr.mxu0 0.0
    %1462 = vmatpush1.msra.mxu0 0.0
    %1463 = vmatprep.subr.mxu0 0.0
    %1464 = vmatpush1.msra.mxu0 0.0
    %1465 = vmatprep.subr.mxu0 0.0
    %1466 = vmatpush1.msra.mxu0 0.0
    %1467 = vmatprep.subr.mxu0 0.0
    %1468 = vmatpush1.msra.mxu0 0.0
    %1469 = vmatprep.subr.mxu0 0.0
    %1470 = vmatpush1.msra.mxu0 0.0
    %1471 = vmatprep.subr.mxu0 0.0
    %1472 = vmatpush1.msra.mxu0 0.0
    %1473 = vmatprep.subr.mxu0 0.0
    %1474 = vmatpush1.msra.mxu0 0.0
    %1475 = vmatprep.subr.mxu0 0.0
    %1476 = vmatpush1.msra.mxu0 0.0
    %1477 = vmatprep.subr.mxu0 0.0
    %1478 = vmatpush1.msra.mxu0 0.0
    %1479 = vmatprep.subr.mxu0 0.0
    %1480 = vmatpush1.msra.mxu0 0.0
    %1481 = vmatprep.subr.mxu0 0.0
    %1482 = vmatpush1.msra.mxu0 0.0
    %1483 = vmatprep.subr.mxu0 0.0
    %1484 = vmatpush1.msra.mxu0 0.0
    %1485 = vmatprep.subr.mxu0 0.0
    %1486 = vmatpush1.msra.mxu0 0.0
    %1487 = vmatprep.subr.mxu0 0.0
    %1488 = vmatpush1.msra.mxu0 0.0
    %1489 = vmatprep.subr.mxu0 0.0
    %1490 = vmatpush1.msra.mxu0 0.0
    %1491 = vmatprep.subr.mxu0 0.0
    %1492 = vmatpush1.msra.mxu0 0.0
    %1493 = vmatprep.subr.mxu0 0.0
    %1494 = vmatpush1.msra.mxu0 0.0
    %1495 = vmatprep.subr.mxu0 0.0
    %1496 = vmatpush1.msra.mxu0 0.0
    %1497 = vmatprep.subr.mxu0 0.0
    %1498 = vmatpush1.msra.mxu0 0.0
    %1499 = vmatprep.subr.mxu0 0.0
    %1500 = vmatpush1.msra.mxu0 0.0
    %1501 = vmatprep.subr.mxu0 0.0
    %1502 = vmatpush1.msra.mxu0 0.0
    %1503 = vmatprep.subr.mxu0 0.0
    %1504 = vmatpush1.msra.mxu0 0.0
    %1505 = vmatprep.subr.mxu0 0.0
    %1506 = vmatpush1.msra.mxu0 0.0
    %1507 = vmatprep.subr.mxu0 0.0
    %1508 = vmatpush1.msra.mxu0 0.0
    %1509 = vmatprep.subr.mxu0 0.0
    %1510 = vmatpush1.msra.mxu0 0.0
    %1511 = vmatprep.subr.mxu0 0.0
    %1512 = vmatpush1.msra.mxu0 0.0
    %1513 = vmatprep.subr.mxu0 0.0
    %1514 = vmatpush1.msra.mxu0 0.0
    %1515 = vmatprep.mubr.f32.mxu0 0.0
    %1516 = vmatmul.mubr.f32.gmra.mrb[0].mxu0 %v57
    %v1517 = vpop.f32.mrb[0].mxu0
    %v1518 = vadd.f32 0.0, %v1517
    %v1519 = vpop.f32.mrb[0].mxu0
    %1520 = vdwg.mxu0
    %v1521 = vadd.f32 %v1450, %v1518
    %v1522 = vmul.f32 %v1521, 0.5
    %v1523 = vsel %vm42, %v1521, %v1522
    %v1524 = vtanh.pop %v1523
    %v1525 = vmul.f32 %v1524, 0.5
    %v1526 = vadd.f32 %v1525, 0.5
    %v1527 = vsel %vm42, %v1524, %v1526
    %v1528 = vmul.f32 %v1527, 0.0
    %1530 = vrot.lane.b32.xlu0 %v1527, 64
    %v1531 = vpop.permute.xlu0 %1530
    %v1533 = vmul.f32 %v1527, %v1531
    %1535 = vrot.lane.b32.xlu0 %v1533, 32
    %v1536 = vpop.permute.xlu0 %1535
    %v1538 = vadd.f32 %v1528, %v1536
    %v1539 = vtanh.pop %v1538
    %1541 = vrot.lane.b32.xlu0 %v1539, 64
    %v1542 = vpop.permute.xlu0 %1541
    %v1544 = vmul.f32 %v1527, %v1542
    %vm1545 = vcmp.eq.s32.totalorder %v44, 0
    %v1546 = vsel %vm1545, 1, 0
    %1547 = vset.pattern.permute.xlu0 0
    %1548 = vperm.xlu0 %1547, %v1546
    %v1549 = vpop.permute.xlu0 %1548
    %vm1550 = vcmp.eq.s32.totalorder %v1549, 1
    %v1551 = vsel %vm1550, %v1544, 0.0
    %v1552 = vld [vmem:[%s406] sm:$0xf]
    %1554 = vrot.lane.b32.xlu0 %v1544, 32
    %v1555 = vpop.permute.xlu0 %1554
    %v1556 = vsel %vm55, %v1555, 0
    %1558 = vmatprep.subr.mxu0 0.0
    %1559 = vmatpush1.msra.mxu0 %v1446
    %1560 = vmatprep.subr.mxu0 0.0
    %1561 = vmatpush1.msra.mxu0 %v1447
    %1562 = vmatprep.subr.mxu0 0.0
    %1563 = vmatpush1.msra.mxu0 %v1448
    %1564 = vmatprep.subr.mxu0 0.0
    %1565 = vmatpush1.msra.mxu0 %v1449
    %1566 = vmatprep.subr.mxu0 0.0
    %1567 = vmatpush1.msra.mxu0 0.0
    %1568 = vmatprep.subr.mxu0 0.0
    %1569 = vmatpush1.msra.mxu0 0.0
    %1570 = vmatprep.subr.mxu0 0.0
    %1571 = vmatpush1.msra.mxu0 0.0
    %1572 = vmatprep.subr.mxu0 0.0
    %1573 = vmatpush1.msra.mxu0 0.0
    %1574 = vmatprep.subr.mxu0 0.0
    %1575 = vmatpush1.msra.mxu0 0.0
    %1576 = vmatprep.subr.mxu0 0.0
    %1577 = vmatpush1.msra.mxu0 0.0
    %1578 = vmatprep.subr.mxu0 0.0
    %1579 = vmatpush1.msra.mxu0 0.0
    %1580 = vmatprep.subr.mxu0 0.0
    %1581 = vmatpush1.msra.mxu0 0.0
    %1582 = vmatprep.subr.mxu0 0.0
    %1583 = vmatpush1.msra.mxu0 0.0
    %1584 = vmatprep.subr.mxu0 0.0
    %1585 = vmatpush1.msra.mxu0 0.0
    %1586 = vmatprep.subr.mxu0 0.0
    %1587 = vmatpush1.msra.mxu0 0.0
    %1588 = vmatprep.subr.mxu0 0.0
    %1589 = vmatpush1.msra.mxu0 0.0
    %1590 = vmatprep.subr.mxu0 0.0
    %1591 = vmatpush1.msra.mxu0 0.0
    %1592 = vmatprep.subr.mxu0 0.0
    %1593 = vmatpush1.msra.mxu0 0.0
    %1594 = vmatprep.subr.mxu0 0.0
    %1595 = vmatpush1.msra.mxu0 0.0
    %1596 = vmatprep.subr.mxu0 0.0
    %1597 = vmatpush1.msra.mxu0 0.0
    %1598 = vmatprep.subr.mxu0 0.0
    %1599 = vmatpush1.msra.mxu0 0.0
    %1600 = vmatprep.subr.mxu0 0.0
    %1601 = vmatpush1.msra.mxu0 0.0
    %1602 = vmatprep.subr.mxu0 0.0
    %1603 = vmatpush1.msra.mxu0 0.0
    %1604 = vmatprep.subr.mxu0 0.0
    %1605 = vmatpush1.msra.mxu0 0.0
    %1606 = vmatprep.subr.mxu0 0.0
    %1607 = vmatpush1.msra.mxu0 0.0
    %1608 = vmatprep.subr.mxu0 0.0
    %1609 = vmatpush1.msra.mxu0 0.0
    %1610 = vmatprep.subr.mxu0 0.0
    %1611 = vmatpush1.msra.mxu0 0.0
    %1612 = vmatprep.subr.mxu0 0.0
    %1613 = vmatpush1.msra.mxu0 0.0
    %1614 = vmatprep.subr.mxu0 0.0
    %1615 = vmatpush1.msra.mxu0 0.0
    %1616 = vmatprep.subr.mxu0 0.0
    %1617 = vmatpush1.msra.mxu0 0.0
    %1618 = vmatprep.subr.mxu0 0.0
    %1619 = vmatpush1.msra.mxu0 0.0
    %1620 = vmatprep.subr.mxu0 0.0
    %1621 = vmatpush1.msra.mxu0 0.0
    %1622 = vmatprep.mubr.f32.mxu0 0.0
    %1623 = vmatmul.mubr.f32.gmra.mrb[0].mxu0 %v1556
    %v1624 = vpop.f32.mrb[0].mxu0
    %v1625 = vadd.f32 0.0, %v1624
    %v1626 = vpop.f32.mrb[0].mxu0
    %1627 = vdwg.mxu0
    %v1628 = vadd.f32 %v1552, %v1625
    %v1629 = vmul.f32 %v1628, 0.5
    %v1630 = vsel %vm42, %v1628, %v1629
    %v1631 = vtanh.pop %v1630
    %v1632 = vmul.f32 %v1631, 0.5
    %v1633 = vadd.f32 %v1632, 0.5
    %v1634 = vsel %vm42, %v1631, %v1633
    %v1635 = vmul.f32 %v1634, %v1538
    %1637 = vrot.lane.b32.xlu0 %v1634, 64
    %v1638 = vpop.permute.xlu0 %1637
    %v1640 = vmul.f32 %v1634, %v1638
    %1642 = vrot.lane.b32.xlu0 %v1640, 32
    %v1643 = vpop.permute.xlu0 %1642
    %v1645 = vadd.f32 %v1635, %v1643
    %v1646 = vtanh.pop %v1645
    %1648 = vrot.lane.b32.xlu0 %v1646, 64
    %v1649 = vpop.permute.xlu0 %1648
    %v1651 = vmul.f32 %v1634, %v1649
    %vm1652 = vcmp.eq.s32.totalorder %v44, 1
    %v1653 = vsel %vm1652, 1, 0
    %1654 = vset.pattern.permute.xlu0 0
    %1655 = vperm.xlu0 %1654, %v1653
    %v1656 = vpop.permute.xlu0 %1655
    %vm1657 = vcmp.eq.s32.totalorder %v1656, 1
    %v1658 = vsel %vm1657, %v1651, %v1551
    %v1659 = vld [vmem:[%s579] sm:$0xf]
    %1661 = vrot.lane.b32.xlu0 %v1651, 32
    %v1662 = vpop.permute.xlu0 %1661
    %v1663 = vsel %vm55, %v1662, 0
    %1665 = vmatprep.subr.mxu0 0.0
    %1666 = vmatpush1.msra.mxu0 %v1446
    %1667 = vmatprep.subr.mxu0 0.0
    %1668 = vmatpush1.msra.mxu0 %v1447
    %1669 = vmatprep.subr.mxu0 0.0
    %1670 = vmatpush1.msra.mxu0 %v1448
    %1671 = vmatprep.subr.mxu0 0.0
    %1672 = vmatpush1.msra.mxu0 %v1449
    %1673 = vmatprep.subr.mxu0 0.0
    %1674 = vmatpush1.msra.mxu0 0.0
    %1675 = vmatprep.subr.mxu0 0.0
    %1676 = vmatpush1.msra.mxu0 0.0
    %1677 = vmatprep.subr.mxu0 0.0
    %1678 = vmatpush1.msra.mxu0 0.0
    %1679 = vmatprep.subr.mxu0 0.0
    %1680 = vmatpush1.msra.mxu0 0.0
    %1681 = vmatprep.subr.mxu0 0.0
    %1682 = vmatpush1.msra.mxu0 0.0
    %1683 = vmatprep.subr.mxu0 0.0
    %1684 = vmatpush1.msra.mxu0 0.0
    %1685 = vmatprep.subr.mxu0 0.0
    %1686 = vmatpush1.msra.mxu0 0.0
    %1687 = vmatprep.subr.mxu0 0.0
    %1688 = vmatpush1.msra.mxu0 0.0
    %1689 = vmatprep.subr.mxu0 0.0
    %1690 = vmatpush1.msra.mxu0 0.0
    %1691 = vmatprep.subr.mxu0 0.0
    %1692 = vmatpush1.msra.mxu0 0.0
    %1693 = vmatprep.subr.mxu0 0.0
    %1694 = vmatpush1.msra.mxu0 0.0
    %1695 = vmatprep.subr.mxu0 0.0
    %1696 = vmatpush1.msra.mxu0 0.0
    %1697 = vmatprep.subr.mxu0 0.0
    %1698 = vmatpush1.msra.mxu0 0.0
    %1699 = vmatprep.subr.mxu0 0.0
    %1700 = vmatpush1.msra.mxu0 0.0
    %1701 = vmatprep.subr.mxu0 0.0
    %1702 = vmatpush1.msra.mxu0 0.0
    %1703 = vmatprep.subr.mxu0 0.0
    %1704 = vmatpush1.msra.mxu0 0.0
    %1705 = vmatprep.subr.mxu0 0.0
    %1706 = vmatpush1.msra.mxu0 0.0
    %1707 = vmatprep.subr.mxu0 0.0
    %1708 = vmatpush1.msra.mxu0 0.0
    %1709 = vmatprep.subr.mxu0 0.0
    %1710 = vmatpush1.msra.mxu0 0.0
    %1711 = vmatprep.subr.mxu0 0.0
    %1712 = vmatpush1.msra.mxu0 0.0
    %1713 = vmatprep.subr.mxu0 0.0
    %1714 = vmatpush1.msra.mxu0 0.0
    %1715 = vmatprep.subr.mxu0 0.0
    %1716 = vmatpush1.msra.mxu0 0.0
    %1717 = vmatprep.subr.mxu0 0.0
    %1718 = vmatpush1.msra.mxu0 0.0
    %1719 = vmatprep.subr.mxu0 0.0
    %1720 = vmatpush1.msra.mxu0 0.0
    %1721 = vmatprep.subr.mxu0 0.0
    %1722 = vmatpush1.msra.mxu0 0.0
    %1723 = vmatprep.subr.mxu0 0.0
    %1724 = vmatpush1.msra.mxu0 0.0
    %1725 = vmatprep.subr.mxu0 0.0
    %1726 = vmatpush1.msra.mxu0 0.0
    %1727 = vmatprep.subr.mxu0 0.0
    %1728 = vmatpush1.msra.mxu0 0.0
    %1729 = vmatprep.mubr.f32.mxu0 0.0
    %1730 = vmatmul.mubr.f32.gmra.mrb[0].mxu0 %v1663
    %v1731 = vpop.f32.mrb[0].mxu0
    %v1732 = vadd.f32 0.0, %v1731
    %v1733 = vpop.f32.mrb[0].mxu0
    %1734 = vdwg.mxu0
    %v1735 = vadd.f32 %v1659, %v1732
    %v1736 = vmul.f32 %v1735, 0.5
    %v1737 = vsel %vm42, %v1735, %v1736
    %v1738 = vtanh.pop %v1737
    %v1739 = vmul.f32 %v1738, 0.5
    %v1740 = vadd.f32 %v1739, 0.5
    %v1741 = vsel %vm42, %v1738, %v1740
    %v1742 = vmul.f32 %v1741, %v1645
    %1744 = vrot.lane.b32.xlu0 %v1741, 64
    %v1745 = vpop.permute.xlu0 %1744
    %v1747 = vmul.f32 %v1741, %v1745
    %1749 = vrot.lane.b32.xlu0 %v1747, 32
    %v1750 = vpop.permute.xlu0 %1749
    %v1752 = vadd.f32 %v1742, %v1750
    %v1753 = vtanh.pop %v1752
    %1755 = vrot.lane.b32.xlu0 %v1753, 64
    %v1756 = vpop.permute.xlu0 %1755
    %v1758 = vmul.f32 %v1741, %v1756
    %vm1759 = vcmp.eq.s32.totalorder %v44, 2
    %v1760 = vsel %vm1759, 1, 0
    %1761 = vset.pattern.permute.xlu0 0
    %1762 = vperm.xlu0 %1761, %v1760
    %v1763 = vpop.permute.xlu0 %1762
    %vm1764 = vcmp.eq.s32.totalorder %v1763, 1
    %v1765 = vsel %vm1764, %v1758, %v1658
    %v1766 = vld [vmem:[%s752] sm:$0xf]
    %1768 = vrot.lane.b32.xlu0 %v1758, 32
    %v1769 = vpop.permute.xlu0 %1768
    %v1770 = vsel %vm55, %v1769, 0
    %1772 = vmatprep.subr.mxu0 0.0
    %1773 = vmatpush1.msra.mxu0 %v1446
    %1774 = vmatprep.subr.mxu0 0.0
    %1775 = vmatpush1.msra.mxu0 %v1447
    %1776 = vmatprep.subr.mxu0 0.0
    %1777 = vmatpush1.msra.mxu0 %v1448
    %1778 = vmatprep.subr.mxu0 0.0
    %1779 = vmatpush1.msra.mxu0 %v1449
    %1780 = vmatprep.subr.mxu0 0.0
    %1781 = vmatpush1.msra.mxu0 0.0
    %1782 = vmatprep.subr.mxu0 0.0
    %1783 = vmatpush1.msra.mxu0 0.0
    %1784 = vmatprep.subr.mxu0 0.0
    %1785 = vmatpush1.msra.mxu0 0.0
    %1786 = vmatprep.subr.mxu0 0.0
    %1787 = vmatpush1.msra.mxu0 0.0
    %1788 = vmatprep.subr.mxu0 0.0
    %1789 = vmatpush1.msra.mxu0 0.0
    %1790 = vmatprep.subr.mxu0 0.0
    %1791 = vmatpush1.msra.mxu0 0.0
    %1792 = vmatprep.subr.mxu0 0.0
    %1793 = vmatpush1.msra.mxu0 0.0
    %1794 = vmatprep.subr.mxu0 0.0
    %1795 = vmatpush1.msra.mxu0 0.0
    %1796 = vmatprep.subr.mxu0 0.0
    %1797 = vmatpush1.msra.mxu0 0.0
    %1798 = vmatprep.subr.mxu0 0.0
    %1799 = vmatpush1.msra.mxu0 0.0
    %1800 = vmatprep.subr.mxu0 0.0
    %1801 = vmatpush1.msra.mxu0 0.0
    %1802 = vmatprep.subr.mxu0 0.0
    %1803 = vmatpush1.msra.mxu0 0.0
    %1804 = vmatprep.subr.mxu0 0.0
    %1805 = vmatpush1.msra.mxu0 0.0
    %1806 = vmatprep.subr.mxu0 0.0
    %1807 = vmatpush1.msra.mxu0 0.0
    %1808 = vmatprep.subr.mxu0 0.0
    %1809 = vmatpush1.msra.mxu0 0.0
    %1810 = vmatprep.subr.mxu0 0.0
    %1811 = vmatpush1.msra.mxu0 0.0
    %1812 = vmatprep.subr.mxu0 0.0
    %1813 = vmatpush1.msra.mxu0 0.0
    %1814 = vmatprep.subr.mxu0 0.0
    %1815 = vmatpush1.msra.mxu0 0.0
    %1816 = vmatprep.subr.mxu0 0.0
    %1817 = vmatpush1.msra.mxu0 0.0
    %1818 = vmatprep.subr.mxu0 0.0
    %1819 = vmatpush1.msra.mxu0 0.0
    %1820 = vmatprep.subr.mxu0 0.0
    %1821 = vmatpush1.msra.mxu0 0.0
    %1822 = vmatprep.subr.mxu0 0.0
    %1823 = vmatpush1.msra.mxu0 0.0
    %1824 = vmatprep.subr.mxu0 0.0
    %1825 = vmatpush1.msra.mxu0 0.0
    %1826 = vmatprep.subr.mxu0 0.0
    %1827 = vmatpush1.msra.mxu0 0.0
    %1828 = vmatprep.subr.mxu0 0.0
    %1829 = vmatpush1.msra.mxu0 0.0
    %1830 = vmatprep.subr.mxu0 0.0
    %1831 = vmatpush1.msra.mxu0 0.0
    %1832 = vmatprep.subr.mxu0 0.0
    %1833 = vmatpush1.msra.mxu0 0.0
    %1834 = vmatprep.subr.mxu0 0.0
    %1835 = vmatpush1.msra.mxu0 0.0
    %1836 = vmatprep.mubr.f32.mxu0 0.0
    %1837 = vmatmul.mubr.f32.gmra.mrb[0].mxu0 %v1770
    %v1838 = vpop.f32.mrb[0].mxu0
    %v1839 = vadd.f32 0.0, %v1838
    %v1840 = vpop.f32.mrb[0].mxu0
    %1841 = vdwg.mxu0
    %v1842 = vadd.f32 %v1766, %v1839
    %v1843 = vmul.f32 %v1842, 0.5
    %v1844 = vsel %vm42, %v1842, %v1843
    %v1845 = vtanh.pop %v1844
    %v1846 = vmul.f32 %v1845, 0.5
    %v1847 = vadd.f32 %v1846, 0.5
    %v1848 = vsel %vm42, %v1845, %v1847
    %v1849 = vmul.f32 %v1848, %v1752
    %1851 = vrot.lane.b32.xlu0 %v1848, 64
    %v1852 = vpop.permute.xlu0 %1851
    %v1854 = vmul.f32 %v1848, %v1852
    %1856 = vrot.lane.b32.xlu0 %v1854, 32
    %v1857 = vpop.permute.xlu0 %1856
    %v1859 = vadd.f32 %v1849, %v1857
    %v1860 = vtanh.pop %v1859
    %1862 = vrot.lane.b32.xlu0 %v1860, 64
    %v1863 = vpop.permute.xlu0 %1862
    %v1865 = vmul.f32 %v1848, %v1863
    %vm1866 = vcmp.eq.s32.totalorder %v44, 3
    %v1867 = vsel %vm1866, 1, 0
    %1868 = vset.pattern.permute.xlu0 0
    %1869 = vperm.xlu0 %1868, %v1867
    %v1870 = vpop.permute.xlu0 %1869
    %vm1871 = vcmp.eq.s32.totalorder %v1870, 1
    %v1872 = vsel %vm1871, %v1865, %v1765
    %v1873 = vld [vmem:[%s925] sm:$0xf]
    %1875 = vrot.lane.b32.xlu0 %v1865, 32
    %v1876 = vpop.permute.xlu0 %1875
    %v1877 = vsel %vm55, %v1876, 0
    %1879 = vmatprep.subr.mxu0 0.0
    %1880 = vmatpush1.msra.mxu0 %v1446
    %1881 = vmatprep.subr.mxu0 0.0
    %1882 = vmatpush1.msra.mxu0 %v1447
    %1883 = vmatprep.subr.mxu0 0.0
    %1884 = vmatpush1.msra.mxu0 %v1448
    %1885 = vmatprep.subr.mxu0 0.0
    %1886 = vmatpush1.msra.mxu0 %v1449
    %1887 = vmatprep.subr.mxu0 0.0
    %1888 = vmatpush1.msra.mxu0 0.0
    %1889 = vmatprep.subr.mxu0 0.0
    %1890 = vmatpush1.msra.mxu0 0.0
    %1891 = vmatprep.subr.mxu0 0.0
    %1892 = vmatpush1.msra.mxu0 0.0
    %1893 = vmatprep.subr.mxu0 0.0
    %1894 = vmatpush1.msra.mxu0 0.0
    %1895 = vmatprep.subr.mxu0 0.0
    %1896 = vmatpush1.msra.mxu0 0.0
    %1897 = vmatprep.subr.mxu0 0.0
    %1898 = vmatpush1.msra.mxu0 0.0
    %1899 = vmatprep.subr.mxu0 0.0
    %1900 = vmatpush1.msra.mxu0 0.0
    %1901 = vmatprep.subr.mxu0 0.0
    %1902 = vmatpush1.msra.mxu0 0.0
    %1903 = vmatprep.subr.mxu0 0.0
    %1904 = vmatpush1.msra.mxu0 0.0
    %1905 = vmatprep.subr.mxu0 0.0
    %1906 = vmatpush1.msra.mxu0 0.0
    %1907 = vmatprep.subr.mxu0 0.0
    %1908 = vmatpush1.msra.mxu0 0.0
    %1909 = vmatprep.subr.mxu0 0.0
    %1910 = vmatpush1.msra.mxu0 0.0
    %1911 = vmatprep.subr.mxu0 0.0
    %1912 = vmatpush1.msra.mxu0 0.0
    %1913 = vmatprep.subr.mxu0 0.0
    %1914 = vmatpush1.msra.mxu0 0.0
    %1915 = vmatprep.subr.mxu0 0.0
    %1916 = vmatpush1.msra.mxu0 0.0
    %1917 = vmatprep.subr.mxu0 0.0
    %1918 = vmatpush1.msra.mxu0 0.0
    %1919 = vmatprep.subr.mxu0 0.0
    %1920 = vmatpush1.msra.mxu0 0.0
    %1921 = vmatprep.subr.mxu0 0.0
    %1922 = vmatpush1.msra.mxu0 0.0
    %1923 = vmatprep.subr.mxu0 0.0
    %1924 = vmatpush1.msra.mxu0 0.0
    %1925 = vmatprep.subr.mxu0 0.0
    %1926 = vmatpush1.msra.mxu0 0.0
    %1927 = vmatprep.subr.mxu0 0.0
    %1928 = vmatpush1.msra.mxu0 0.0
    %1929 = vmatprep.subr.mxu0 0.0
    %1930 = vmatpush1.msra.mxu0 0.0
    %1931 = vmatprep.subr.mxu0 0.0
    %1932 = vmatpush1.msra.mxu0 0.0
    %1933 = vmatprep.subr.mxu0 0.0
    %1934 = vmatpush1.msra.mxu0 0.0
    %1935 = vmatprep.subr.mxu0 0.0
    %1936 = vmatpush1.msra.mxu0 0.0
    %1937 = vmatprep.subr.mxu0 0.0
    %1938 = vmatpush1.msra.mxu0 0.0
    %1939 = vmatprep.subr.mxu0 0.0
    %1940 = vmatpush1.msra.mxu0 0.0
    %1941 = vmatprep.subr.mxu0 0.0
    %1942 = vmatpush1.msra.mxu0 0.0
    %1943 = vmatprep.mubr.f32.mxu0 0.0
    %1944 = vmatmul.mubr.f32.gmra.mrb[0].mxu0 %v1877
    %v1945 = vpop.f32.mrb[0].mxu0
    %v1946 = vadd.f32 0.0, %v1945
    %v1947 = vpop.f32.mrb[0].mxu0
    %1948 = vdwg.mxu0
    %v1949 = vadd.f32 %v1873, %v1946
    %v1950 = vmul.f32 %v1949, 0.5
    %v1951 = vsel %vm42, %v1949, %v1950
    %v1952 = vtanh.pop %v1951
    %v1953 = vmul.f32 %v1952, 0.5
    %v1954 = vadd.f32 %v1953, 0.5
    %v1955 = vsel %vm42, %v1952, %v1954
    %v1956 = vmul.f32 %v1955, %v1859
    %1958 = vrot.lane.b32.xlu0 %v1955, 64
    %v1959 = vpop.permute.xlu0 %1958
    %v1961 = vmul.f32 %v1955, %v1959
    %1963 = vrot.lane.b32.xlu0 %v1961, 32
    %v1964 = vpop.permute.xlu0 %1963
    %v1966 = vadd.f32 %v1956, %v1964
    %v1967 = vtanh.pop %v1966
    %1969 = vrot.lane.b32.xlu0 %v1967, 64
    %v1970 = vpop.permute.xlu0 %1969
    %v1972 = vmul.f32 %v1955, %v1970
    %vm1973 = vcmp.eq.s32.totalorder %v44, 4
    %v1974 = vsel %vm1973, 1, 0
    %1975 = vset.pattern.permute.xlu0 0
    %1976 = vperm.xlu0 %1975, %v1974
    %v1977 = vpop.permute.xlu0 %1976
    %vm1978 = vcmp.eq.s32.totalorder %v1977, 1
    %v1979 = vsel %vm1978, %v1972, %v1872
    %v1980 = vld [vmem:[%s1098] sm:$0xf]
    %1982 = vrot.lane.b32.xlu0 %v1972, 32
    %v1983 = vpop.permute.xlu0 %1982
    %v1984 = vsel %vm55, %v1983, 0
    %1986 = vmatprep.subr.mxu0 0.0
    %1987 = vmatpush1.msra.mxu0 %v1446
    %1988 = vmatprep.subr.mxu0 0.0
    %1989 = vmatpush1.msra.mxu0 %v1447
    %1990 = vmatprep.subr.mxu0 0.0
    %1991 = vmatpush1.msra.mxu0 %v1448
    %1992 = vmatprep.subr.mxu0 0.0
    %1993 = vmatpush1.msra.mxu0 %v1449
    %1994 = vmatprep.subr.mxu0 0.0
    %1995 = vmatpush1.msra.mxu0 0.0
    %1996 = vmatprep.subr.mxu0 0.0
    %1997 = vmatpush1.msra.mxu0 0.0
    %1998 = vmatprep.subr.mxu0 0.0
    %1999 = vmatpush1.msra.mxu0 0.0
    %2000 = vmatprep.subr.mxu0 0.0
    %2001 = vmatpush1.msra.mxu0 0.0
    %2002 = vmatprep.subr.mxu0 0.0
    %2003 = vmatpush1.msra.mxu0 0.0
    %2004 = vmatprep.subr.mxu0 0.0
    %2005 = vmatpush1.msra.mxu0 0.0
    %2006 = vmatprep.subr.mxu0 0.0
    %2007 = vmatpush1.msra.mxu0 0.0
    %2008 = vmatprep.subr.mxu0 0.0
    %2009 = vmatpush1.msra.mxu0 0.0
    %2010 = vmatprep.subr.mxu0 0.0
    %2011 = vmatpush1.msra.mxu0 0.0
    %2012 = vmatprep.subr.mxu0 0.0
    %2013 = vmatpush1.msra.mxu0 0.0
    %2014 = vmatprep.subr.mxu0 0.0
    %2015 = vmatpush1.msra.mxu0 0.0
    %2016 = vmatprep.subr.mxu0 0.0
    %2017 = vmatpush1.msra.mxu0 0.0
    %2018 = vmatprep.subr.mxu0 0.0
    %2019 = vmatpush1.msra.mxu0 0.0
    %2020 = vmatprep.subr.mxu0 0.0
    %2021 = vmatpush1.msra.mxu0 0.0
    %2022 = vmatprep.subr.mxu0 0.0
    %2023 = vmatpush1.msra.mxu0 0.0
    %2024 = vmatprep.subr.mxu0 0.0
    %2025 = vmatpush1.msra.mxu0 0.0
    %2026 = vmatprep.subr.mxu0 0.0
    %2027 = vmatpush1.msra.mxu0 0.0
    %2028 = vmatprep.subr.mxu0 0.0
    %2029 = vmatpush1.msra.mxu0 0.0
    %2030 = vmatprep.subr.mxu0 0.0
    %2031 = vmatpush1.msra.mxu0 0.0
    %2032 = vmatprep.subr.mxu0 0.0
    %2033 = vmatpush1.msra.mxu0 0.0
    %2034 = vmatprep.subr.mxu0 0.0
    %2035 = vmatpush1.msra.mxu0 0.0
    %2036 = vmatprep.subr.mxu0 0.0
    %2037 = vmatpush1.msra.mxu0 0.0
    %2038 = vmatprep.subr.mxu0 0.0
    %2039 = vmatpush1.msra.mxu0 0.0
    %2040 = vmatprep.subr.mxu0 0.0
    %2041 = vmatpush1.msra.mxu0 0.0
    %2042 = vmatprep.subr.mxu0 0.0
    %2043 = vmatpush1.msra.mxu0 0.0
    %2044 = vmatprep.subr.mxu0 0.0
    %2045 = vmatpush1.msra.mxu0 0.0
    %2046 = vmatprep.subr.mxu0 0.0
    %2047 = vmatpush1.msra.mxu0 0.0
    %2048 = vmatprep.subr.mxu0 0.0
    %2049 = vmatpush1.msra.mxu0 0.0
    %2050 = vmatprep.mubr.f32.mxu0 0.0
    %2051 = vmatmul.mubr.f32.gmra.mrb[0].mxu0 %v1984
    %v2052 = vpop.f32.mrb[0].mxu0
    %v2053 = vadd.f32 0.0, %v2052
    %v2054 = vpop.f32.mrb[0].mxu0
    %2055 = vdwg.mxu0
    %v2056 = vadd.f32 %v1980, %v2053
    %v2057 = vmul.f32 %v2056, 0.5
    %v2058 = vsel %vm42, %v2056, %v2057
    %v2059 = vtanh.pop %v2058
    %v2060 = vmul.f32 %v2059, 0.5
    %v2061 = vadd.f32 %v2060, 0.5
    %v2062 = vsel %vm42, %v2059, %v2061
    %v2063 = vmul.f32 %v2062, %v1966
    %2065 = vrot.lane.b32.xlu0 %v2062, 64
    %v2066 = vpop.permute.xlu0 %2065
    %v2068 = vmul.f32 %v2062, %v2066
    %2070 = vrot.lane.b32.xlu0 %v2068, 32
    %v2071 = vpop.permute.xlu0 %2070
    %v2073 = vadd.f32 %v2063, %v2071
    %v2074 = vtanh.pop %v2073
    %2076 = vrot.lane.b32.xlu0 %v2074, 64
    %v2077 = vpop.permute.xlu0 %2076
    %v2079 = vmul.f32 %v2062, %v2077
    %vm2080 = vcmp.eq.s32.totalorder %v44, 5
    %v2081 = vsel %vm2080, 1, 0
    %2082 = vset.pattern.permute.xlu0 0
    %2083 = vperm.xlu0 %2082, %v2081
    %v2084 = vpop.permute.xlu0 %2083
    %vm2085 = vcmp.eq.s32.totalorder %v2084, 1
    %v2086 = vsel %vm2085, %v2079, %v1979
    %v2087 = vld [vmem:[%s1271] sm:$0xf]
    %2089 = vrot.lane.b32.xlu0 %v2079, 32
    %v2090 = vpop.permute.xlu0 %2089
    %v2091 = vsel %vm55, %v2090, 0
    %2093 = vmatprep.subr.mxu0 0.0
    %2094 = vmatpush1.msra.mxu0 %v1446
    %2095 = vmatprep.subr.mxu0 0.0
    %2096 = vmatpush1.msra.mxu0 %v1447
    %2097 = vmatprep.subr.mxu0 0.0
    %2098 = vmatpush1.msra.mxu0 %v1448
    %2099 = vmatprep.subr.mxu0 0.0
    %2100 = vmatpush1.msra.mxu0 %v1449
    %2101 = vmatprep.subr.mxu0 0.0
    %2102 = vmatpush1.msra.mxu0 0.0
    %2103 = vmatprep.subr.mxu0 0.0
    %2104 = vmatpush1.msra.mxu0 0.0
    %2105 = vmatprep.subr.mxu0 0.0
    %2106 = vmatpush1.msra.mxu0 0.0
    %2107 = vmatprep.subr.mxu0 0.0
    %2108 = vmatpush1.msra.mxu0 0.0
    %2109 = vmatprep.subr.mxu0 0.0
    %2110 = vmatpush1.msra.mxu0 0.0
    %2111 = vmatprep.subr.mxu0 0.0
    %2112 = vmatpush1.msra.mxu0 0.0
    %2113 = vmatprep.subr.mxu0 0.0
    %2114 = vmatpush1.msra.mxu0 0.0
    %2115 = vmatprep.subr.mxu0 0.0
    %2116 = vmatpush1.msra.mxu0 0.0
    %2117 = vmatprep.subr.mxu0 0.0
    %2118 = vmatpush1.msra.mxu0 0.0
    %2119 = vmatprep.subr.mxu0 0.0
    %2120 = vmatpush1.msra.mxu0 0.0
    %2121 = vmatprep.subr.mxu0 0.0
    %2122 = vmatpush1.msra.mxu0 0.0
    %2123 = vmatprep.subr.mxu0 0.0
    %2124 = vmatpush1.msra.mxu0 0.0
    %2125 = vmatprep.subr.mxu0 0.0
    %2126 = vmatpush1.msra.mxu0 0.0
    %2127 = vmatprep.subr.mxu0 0.0
    %2128 = vmatpush1.msra.mxu0 0.0
    %2129 = vmatprep.subr.mxu0 0.0
    %2130 = vmatpush1.msra.mxu0 0.0
    %2131 = vmatprep.subr.mxu0 0.0
    %2132 = vmatpush1.msra.mxu0 0.0
    %2133 = vmatprep.subr.mxu0 0.0
    %2134 = vmatpush1.msra.mxu0 0.0
    %2135 = vmatprep.subr.mxu0 0.0
    %2136 = vmatpush1.msra.mxu0 0.0
    %2137 = vmatprep.subr.mxu0 0.0
    %2138 = vmatpush1.msra.mxu0 0.0
    %2139 = vmatprep.subr.mxu0 0.0
    %2140 = vmatpush1.msra.mxu0 0.0
    %2141 = vmatprep.subr.mxu0 0.0
    %2142 = vmatpush1.msra.mxu0 0.0
    %2143 = vmatprep.subr.mxu0 0.0
    %2144 = vmatpush1.msra.mxu0 0.0
    %2145 = vmatprep.subr.mxu0 0.0
    %2146 = vmatpush1.msra.mxu0 0.0
    %2147 = vmatprep.subr.mxu0 0.0
    %2148 = vmatpush1.msra.mxu0 0.0
    %2149 = vmatprep.subr.mxu0 0.0
    %2150 = vmatpush1.msra.mxu0 0.0
    %2151 = vmatprep.subr.mxu0 0.0
    %2152 = vmatpush1.msra.mxu0 0.0
    %2153 = vmatprep.subr.mxu0 0.0
    %2154 = vmatpush1.msra.mxu0 0.0
    %2155 = vmatprep.subr.mxu0 0.0
    %2156 = vmatpush1.msra.mxu0 0.0
    %2157 = vmatprep.mubr.f32.mxu0 0.0
    %2158 = vmatmul.mubr.f32.gmra.mrb[0].mxu0 %v2091
    %v2159 = vpop.f32.mrb[0].mxu0
    %v2160 = vadd.f32 0.0, %v2159
    %v2161 = vpop.f32.mrb[0].mxu0
    %2162 = vdwg.mxu0
    %v2163 = vadd.f32 %v2087, %v2160
    %v2164 = vmul.f32 %v2163, 0.5
    %v2165 = vsel %vm42, %v2163, %v2164
    %v2166 = vtanh.pop %v2165
    %v2167 = vmul.f32 %v2166, 0.5
    %v2168 = vadd.f32 %v2167, 0.5
    %v2169 = vsel %vm42, %v2166, %v2168
    %v2170 = vmul.f32 %v2169, %v2073
    %2172 = vrot.lane.b32.xlu0 %v2169, 64
    %v2173 = vpop.permute.xlu0 %2172
    %v2175 = vmul.f32 %v2169, %v2173
    %2177 = vrot.lane.b32.xlu0 %v2175, 32
    %v2178 = vpop.permute.xlu0 %2177
    %v2180 = vadd.f32 %v2170, %v2178
    %v2181 = vtanh.pop %v2180
    %2183 = vrot.lane.b32.xlu0 %v2181, 64
    %v2184 = vpop.permute.xlu0 %2183
    %v2186 = vmul.f32 %v2169, %v2184
    %vm2187 = vcmp.eq.s32.totalorder %v44, 6
    %v2188 = vsel %vm2187, 1, 0
    %2189 = vset.pattern.permute.xlu0 0
    %2190 = vperm.xlu0 %2189, %v2188
    %v2191 = vpop.permute.xlu0 %2190
    %vm2192 = vcmp.eq.s32.totalorder %v2191, 1
    %v2193 = vsel %vm2192, %v2186, %v2086
    %v2194 = vld [vmem:[%s1444] sm:$0xf]
    %2196 = vrot.lane.b32.xlu0 %v2186, 32
    %v2197 = vpop.permute.xlu0 %2196
    %v2198 = vsel %vm55, %v2197, 0
    %2200 = vmatprep.subr.mxu0 0.0
    %2201 = vmatpush1.msra.mxu0 %v1446
    %2202 = vmatprep.subr.mxu0 0.0
    %2203 = vmatpush1.msra.mxu0 %v1447
    %2204 = vmatprep.subr.mxu0 0.0
    %2205 = vmatpush1.msra.mxu0 %v1448
    %2206 = vmatprep.subr.mxu0 0.0
    %2207 = vmatpush1.msra.mxu0 %v1449
    %2208 = vmatprep.subr.mxu0 0.0
    %2209 = vmatpush1.msra.mxu0 0.0
    %2210 = vmatprep.subr.mxu0 0.0
    %2211 = vmatpush1.msra.mxu0 0.0
    %2212 = vmatprep.subr.mxu0 0.0
    %2213 = vmatpush1.msra.mxu0 0.0
    %2214 = vmatprep.subr.mxu0 0.0
    %2215 = vmatpush1.msra.mxu0 0.0
    %2216 = vmatprep.subr.mxu0 0.0
    %2217 = vmatpush1.msra.mxu0 0.0
    %2218 = vmatprep.subr.mxu0 0.0
    %2219 = vmatpush1.msra.mxu0 0.0
    %2220 = vmatprep.subr.mxu0 0.0
    %2221 = vmatpush1.msra.mxu0 0.0
    %2222 = vmatprep.subr.mxu0 0.0
    %2223 = vmatpush1.msra.mxu0 0.0
    %2224 = vmatprep.subr.mxu0 0.0
    %2225 = vmatpush1.msra.mxu0 0.0
    %2226 = vmatprep.subr.mxu0 0.0
    %2227 = vmatpush1.msra.mxu0 0.0
    %2228 = vmatprep.subr.mxu0 0.0
    %2229 = vmatpush1.msra.mxu0 0.0
    %2230 = vmatprep.subr.mxu0 0.0
    %2231 = vmatpush1.msra.mxu0 0.0
    %2232 = vmatprep.subr.mxu0 0.0
    %2233 = vmatpush1.msra.mxu0 0.0
    %2234 = vmatprep.subr.mxu0 0.0
    %2235 = vmatpush1.msra.mxu0 0.0
    %2236 = vmatprep.subr.mxu0 0.0
    %2237 = vmatpush1.msra.mxu0 0.0
    %2238 = vmatprep.subr.mxu0 0.0
    %2239 = vmatpush1.msra.mxu0 0.0
    %2240 = vmatprep.subr.mxu0 0.0
    %2241 = vmatpush1.msra.mxu0 0.0
    %2242 = vmatprep.subr.mxu0 0.0
    %2243 = vmatpush1.msra.mxu0 0.0
    %2244 = vmatprep.subr.mxu0 0.0
    %2245 = vmatpush1.msra.mxu0 0.0
    %2246 = vmatprep.subr.mxu0 0.0
    %2247 = vmatpush1.msra.mxu0 0.0
    %2248 = vmatprep.subr.mxu0 0.0
    %2249 = vmatpush1.msra.mxu0 0.0
    %2250 = vmatprep.subr.mxu0 0.0
    %2251 = vmatpush1.msra.mxu0 0.0
    %2252 = vmatprep.subr.mxu0 0.0
    %2253 = vmatpush1.msra.mxu0 0.0
    %2254 = vmatprep.subr.mxu0 0.0
    %2255 = vmatpush1.msra.mxu0 0.0
    %2256 = vmatprep.subr.mxu0 0.0
    %2257 = vmatpush1.msra.mxu0 0.0
    %2258 = vmatprep.subr.mxu0 0.0
    %2259 = vmatpush1.msra.mxu0 0.0
    %2260 = vmatprep.subr.mxu0 0.0
    %2261 = vmatpush1.msra.mxu0 0.0
    %2262 = vmatprep.subr.mxu0 0.0
    %2263 = vmatpush1.msra.mxu0 0.0
    %2264 = vmatprep.mubr.f32.mxu0 0.0
    %2265 = vmatmul.mubr.f32.gmra.mrb[0].mxu0 %v2198
    %v2266 = vpop.f32.mrb[0].mxu0
    %v2267 = vadd.f32 0.0, %v2266
    %v2268 = vpop.f32.mrb[0].mxu0
    %2269 = vdwg.mxu0
    %v2270 = vadd.f32 %v2194, %v2267
    %v2271 = vmul.f32 %v2270, 0.5
    %v2272 = vsel %vm42, %v2270, %v2271
    %v2273 = vtanh.pop %v2272
    %v2274 = vmul.f32 %v2273, 0.5
    %v2275 = vadd.f32 %v2274, 0.5
    %v2276 = vsel %vm42, %v2273, %v2275
    %v2277 = vmul.f32 %v2276, %v2180
    %2279 = vrot.lane.b32.xlu0 %v2276, 64
    %v2280 = vpop.permute.xlu0 %2279
    %v2282 = vmul.f32 %v2276, %v2280
    %2284 = vrot.lane.b32.xlu0 %v2282, 32
    %v2285 = vpop.permute.xlu0 %2284
    %v2287 = vadd.f32 %v2277, %v2285
    %v2288 = vtanh.pop %v2287
    %2290 = vrot.lane.b32.xlu0 %v2288, 64
    %v2291 = vpop.permute.xlu0 %2290
    %v2293 = vmul.f32 %v2276, %v2291
    %vm2294 = vcmp.eq.s32.totalorder %v44, 7
    %v2295 = vsel %vm2294, 1, 0
    %2296 = vset.pattern.permute.xlu0 0
    %2297 = vperm.xlu0 %2296, %v2295
    %v2298 = vpop.permute.xlu0 %2297
    %vm2299 = vcmp.eq.s32.totalorder %v2298, 1
    %v2300 = vsel %vm2299, %v2293, %v2193
    %2302 = vrot.lane.b32.xlu0 %v2300, 32
    %v2303 = vpop.permute.xlu0 %2302
    %vm2305 = vcmask 257024
    %2306 = vst.msk [vmem:[#allocation3] sm:$0xf] %vm2305, %v2303
    %v2307 = vld [vmem:[%s7] sm:$0xff]
    %v2308 = vld [vmem:[%s7 + $0x8] sm:$0xff]
    %v2309 = vld [vmem:[%s7 + $0x10] sm:$0xff]
    %v2310 = vld [vmem:[%s7 + $0x18] sm:$0xff]
    %v2311 = vld [vmem:[%s2] sm:$0xf]
    %v2312 = vld [vmem:[%s8] sm:$0xff]
    %v2313 = vld [vmem:[%s8 + $0x8] sm:$0xff]
    %v2314 = vld [vmem:[%s8 + $0x10] sm:$0xff]
    %v2315 = vld [vmem:[%s8 + $0x18] sm:$0x3]
    %vm2316 = vcmask 211968
    %v2318 = vsel %vm2316, %v2311, 0
    %vm2320 = vcmask 1041408
    %v2322 = vsel %vm2320, %v2315, 0
    %2324 = vmatprep.subr.mxu0 0.0
    %2325 = vmatpush1.msra.mxu0 %v2312
    %2326 = vmatprep.subr.mxu0 0.0
    %2327 = vmatpush1.msra.mxu0 %v2313
    %2328 = vmatprep.subr.mxu0 0.0
    %2329 = vmatpush1.msra.mxu0 %v2314
    %2330 = vmatprep.subr.mxu0 0.0
    %2331 = vmatpush1.msra.mxu0 %v2322
    %2332 = vmatprep.subr.mxu0 0.0
    %2333 = vmatpush1.msra.mxu0 0.0
    %2334 = vmatprep.subr.mxu0 0.0
    %2335 = vmatpush1.msra.mxu0 0.0
    %2336 = vmatprep.subr.mxu0 0.0
    %2337 = vmatpush1.msra.mxu0 0.0
    %2338 = vmatprep.subr.mxu0 0.0
    %2339 = vmatpush1.msra.mxu0 0.0
    %2340 = vmatprep.subr.mxu0 0.0
    %2341 = vmatpush1.msra.mxu0 0.0
    %2342 = vmatprep.subr.mxu0 0.0
    %2343 = vmatpush1.msra.mxu0 0.0
    %2344 = vmatprep.subr.mxu0 0.0
    %2345 = vmatpush1.msra.mxu0 0.0
    %2346 = vmatprep.subr.mxu0 0.0
    %2347 = vmatpush1.msra.mxu0 0.0
    %2348 = vmatprep.subr.mxu0 0.0
    %2349 = vmatpush1.msra.mxu0 0.0
    %2350 = vmatprep.subr.mxu0 0.0
    %2351 = vmatpush1.msra.mxu0 0.0
    %2352 = vmatprep.subr.mxu0 0.0
    %2353 = vmatpush1.msra.mxu0 0.0
    %2354 = vmatprep.subr.mxu0 0.0
    %2355 = vmatpush1.msra.mxu0 0.0
    %2356 = vmatprep.subr.mxu0 0.0
    %2357 = vmatpush1.msra.mxu0 0.0
    %2358 = vmatprep.subr.mxu0 0.0
    %2359 = vmatpush1.msra.mxu0 0.0
    %2360 = vmatprep.subr.mxu0 0.0
    %2361 = vmatpush1.msra.mxu0 0.0
    %2362 = vmatprep.subr.mxu0 0.0
    %2363 = vmatpush1.msra.mxu0 0.0
    %2364 = vmatprep.subr.mxu0 0.0
    %2365 = vmatpush1.msra.mxu0 0.0
    %2366 = vmatprep.subr.mxu0 0.0
    %2367 = vmatpush1.msra.mxu0 0.0
    %2368 = vmatprep.subr.mxu0 0.0
    %2369 = vmatpush1.msra.mxu0 0.0
    %2370 = vmatprep.subr.mxu0 0.0
    %2371 = vmatpush1.msra.mxu0 0.0
    %2372 = vmatprep.subr.mxu0 0.0
    %2373 = vmatpush1.msra.mxu0 0.0
    %2374 = vmatprep.subr.mxu0 0.0
    %2375 = vmatpush1.msra.mxu0 0.0
    %2376 = vmatprep.subr.mxu0 0.0
    %2377 = vmatpush1.msra.mxu0 0.0
    %2378 = vmatprep.subr.mxu0 0.0
    %2379 = vmatpush1.msra.mxu0 0.0
    %2380 = vmatprep.subr.mxu0 0.0
    %2381 = vmatpush1.msra.mxu0 0.0
    %2382 = vmatprep.subr.mxu0 0.0
    %2383 = vmatpush1.msra.mxu0 0.0
    %2384 = vmatprep.subr.mxu0 0.0
    %2385 = vmatpush1.msra.mxu0 0.0
    %2386 = vmatprep.subr.mxu0 0.0
    %2387 = vmatpush1.msra.mxu0 0.0
    %2388 = vmatprep.mubr.f32.mxu0 0.0
    %2389 = vmatmul.mubr.f32.gmra.mrb[0].mxu0 %v2318
    %v2390 = vpop.f32.mrb[0].mxu0
    %v2391 = vadd.f32 0.0, %v2390
    %v2392 = vpop.f32.mrb[0].mxu0
    %2393 = vdwg.mxu0
    %v2394 = vsel %vm55, %v2303, 0
    %2396 = vmatprep.subr.mxu0 0.0
    %2397 = vmatpush1.msra.mxu0 %v2307
    %2398 = vmatprep.subr.mxu0 0.0
    %2399 = vmatpush1.msra.mxu0 %v2308
    %2400 = vmatprep.subr.mxu0 0.0
    %2401 = vmatpush1.msra.mxu0 %v2309
    %2402 = vmatprep.subr.mxu0 0.0
    %2403 = vmatpush1.msra.mxu0 %v2310
    %2404 = vmatprep.subr.mxu0 0.0
    %2405 = vmatpush1.msra.mxu0 0.0
    %2406 = vmatprep.subr.mxu0 0.0
    %2407 = vmatpush1.msra.mxu0 0.0
    %2408 = vmatprep.subr.mxu0 0.0
    %2409 = vmatpush1.msra.mxu0 0.0
    %2410 = vmatprep.subr.mxu0 0.0
    %2411 = vmatpush1.msra.mxu0 0.0
    %2412 = vmatprep.subr.mxu0 0.0
    %2413 = vmatpush1.msra.mxu0 0.0
    %2414 = vmatprep.subr.mxu0 0.0
    %2415 = vmatpush1.msra.mxu0 0.0
    %2416 = vmatprep.subr.mxu0 0.0
    %2417 = vmatpush1.msra.mxu0 0.0
    %2418 = vmatprep.subr.mxu0 0.0
    %2419 = vmatpush1.msra.mxu0 0.0
    %2420 = vmatprep.subr.mxu0 0.0
    %2421 = vmatpush1.msra.mxu0 0.0
    %2422 = vmatprep.subr.mxu0 0.0
    %2423 = vmatpush1.msra.mxu0 0.0
    %2424 = vmatprep.subr.mxu0 0.0
    %2425 = vmatpush1.msra.mxu0 0.0
    %2426 = vmatprep.subr.mxu0 0.0
    %2427 = vmatpush1.msra.mxu0 0.0
    %2428 = vmatprep.subr.mxu0 0.0
    %2429 = vmatpush1.msra.mxu0 0.0
    %2430 = vmatprep.subr.mxu0 0.0
    %2431 = vmatpush1.msra.mxu0 0.0
    %2432 = vmatprep.subr.mxu0 0.0
    %2433 = vmatpush1.msra.mxu0 0.0
    %2434 = vmatprep.subr.mxu0 0.0
    %2435 = vmatpush1.msra.mxu0 0.0
    %2436 = vmatprep.subr.mxu0 0.0
    %2437 = vmatpush1.msra.mxu0 0.0
    %2438 = vmatprep.subr.mxu0 0.0
    %2439 = vmatpush1.msra.mxu0 0.0
    %2440 = vmatprep.subr.mxu0 0.0
    %2441 = vmatpush1.msra.mxu0 0.0
    %2442 = vmatprep.subr.mxu0 0.0
    %2443 = vmatpush1.msra.mxu0 0.0
    %2444 = vmatprep.subr.mxu0 0.0
    %2445 = vmatpush1.msra.mxu0 0.0
    %2446 = vmatprep.subr.mxu0 0.0
    %2447 = vmatpush1.msra.mxu0 0.0
    %2448 = vmatprep.subr.mxu0 0.0
    %2449 = vmatpush1.msra.mxu0 0.0
    %2450 = vmatprep.subr.mxu0 0.0
    %2451 = vmatpush1.msra.mxu0 0.0
    %2452 = vmatprep.subr.mxu0 0.0
    %2453 = vmatpush1.msra.mxu0 0.0
    %2454 = vmatprep.subr.mxu0 0.0
    %2455 = vmatpush1.msra.mxu0 0.0
    %2456 = vmatprep.subr.mxu0 0.0
    %2457 = vmatpush1.msra.mxu0 0.0
    %2458 = vmatprep.subr.mxu0 0.0
    %2459 = vmatpush1.msra.mxu0 0.0
    %2460 = vmatprep.mubr.f32.mxu0 0.0
    %2461 = vmatmul.mubr.f32.gmra.mrb[0].mxu0 %v2394
    %v2462 = vpop.f32.mrb[0].mxu0
    %v2463 = vadd.f32 %v2391, %v2462
    %v2464 = vpop.f32.mrb[0].mxu0
    %2465 = vdwg.mxu0
    %v2466 = vld [vmem:[%s9] sm:$0x1]
    %v2468 = vlaneseq
    %v2469 = vshrl.u32 %v2468, 7
    %v2470 = vsub.s32 0, %v2469
    %v2471 = vrot.slane %v2466, %v2470
    %v2473 = vadd.f32 %v2463, %v2471
    %vm2474 = vcmask 11264
    %2475 = vst.msk [vmem:[%s11] sm:$0xf] %vm2474, %v2473
    // Predicated region
    $region42: #{shortcut_lstm_forward.1} parent=1 // pred_check
      _
    $region43: #{shortcut_lstm_forward.1} parent=1 // pred_check_branch
      %2477 = sbr.rel (0) target = $region45
    $region44: #{shortcut_lstm_forward.1} parent=1 // pred_region
      %s2479 = ssub.s32 64, 64
      %2480 = vsyncadd [#allocation4], %s2479
      %s2482 = sshll.u32 [#allocation3], 4
      %s2483 = int_to_ptr.vmem [resolvable:$true] %s2482
      %2485 = dma.vmem_to_hbm [thread:$0]  %s2483, 64, %s10, [#allocation4]
    $region45: #{shortcut_lstm_forward.1} parent=1 // pred_fallthru
      _
    // Predicated region
    $region46: #{shortcut_lstm_forward.1} parent=1 // pred_check
      _
    $region47: #{shortcut_lstm_forward.1} parent=1 // pred_check_branch
      %2487 = sbr.rel (0) target = $region49
    $region48: #{shortcut_lstm_forward.1} parent=1 // pred_region
      _
    $region49: #{shortcut_lstm_forward.1} parent=1 // pred_fallthru
      _
    // Predicated region
    $region50: #{shortcut_lstm_forward.1} parent=1 // pred_check
      _
    $region51: #{shortcut_lstm_forward.1} parent=1 // pred_check_branch
      %2489 = sbr.rel (0) target = $region53
    $region52: #{shortcut_lstm_forward.1} parent=1 // pred_region
      %2490 = dma.done [#allocation4], 64
    $region53: #{shortcut_lstm_forward.1} parent=1 // pred_fallthru
      _
    // Predicated region
    $region54: #{shortcut_lstm_forward.1} parent=1 // pred_check
      _
    $region55: #{shortcut_lstm_forward.1} parent=1 // pred_check_branch
      %2492 = sbr.rel (0) target = $region57
    $region56: #{shortcut_lstm_forward.1} parent=1 // pred_region
      _
    $region57: #{shortcut_lstm_forward.1} parent=1 // pred_fallthru
      _
    %2493 = vsyncpa [#allocation4], 1

</llo_original>
